<compile_context>
chip_gen: v7x
topology: tpu7x:2x2x1
jax: 0.10.0
libtpu: 0.0.40
codegen_flags: <defaults>
</compile_context>

<pallas_src>
import functools

import jax
import jax.numpy as jnp
from jax.experimental import pallas as pl
from jax.experimental.pallas import tpu as pltpu

NEG_SLOPE = 0.01   # nn.LeakyReLU default negative_slope
IN_EPS = 1e-5      # nn.InstanceNorm3d default eps (affine=False, no running stats)
LANE = 128         # TPU lane width


# ----------------------------------------------------------------------------
# Pallas kernel: GEMM + bias (+ optional fused InstanceNorm + LeakyReLU)
#   a_ref: (M, K)  bf16   one batch sample's im2col patch matrix
#   w_ref: (K, Np) bf16   lane-padded weights (Np = Cout rounded up to 128)
#   b_ref: (1, Np) f32    lane-padded bias
#   o_ref: (M, Np) f32    lane-dense output
# ----------------------------------------------------------------------------
def _conv_fused_kernel(a_ref, w_ref, b_ref, o_ref, *, mode, neg_slope, eps):
    acc = jnp.dot(a_ref[...], w_ref[...], preferred_element_type=jnp.float32)
    acc = acc + b_ref[...]                                    # (1, Np) broadcast
    if mode == "inorm_lrelu":
        # InstanceNorm3d over spatial (rows) per channel (lane), this sample.
        inv_m = jnp.float32(1.0 / acc.shape[0])
        mean = jnp.sum(acc, axis=0, keepdims=True) * inv_m
        mean_sq = jnp.sum(acc * acc, axis=0, keepdims=True) * inv_m
        var = jnp.maximum(mean_sq - mean * mean, 0.0)         # biased variance
        acc = (acc - mean) * jax.lax.rsqrt(var + eps)
    if mode in ("lrelu", "inorm_lrelu"):
        acc = jnp.where(acc >= 0, acc, neg_slope * acc)
    o_ref[...] = acc.astype(o_ref.dtype)


# ----------------------------------------------------------------------------
# Glue: reflect padding + channel-last im2col (trace-time slicing)
# ----------------------------------------------------------------------------
def _im2col_3d_cl(xp, k, s):
    """xp: padded channel-last (N, Dp, Hp, Wp, C) ->
       ((N, Do*Ho*Wo, k^3*C), (Do, Ho, Wo)).  K order is (kd, kh, kw, c)."""
    N, Dp, Hp, Wp, C = xp.shape
    Do = (Dp - k) // s + 1
    Ho = (Hp - k) // s + 1
    Wo = (Wp - k) // s + 1
    cols = []
    for kd in range(k):
        for kh in range(k):
            for kw in range(k):
                cols.append(xp[:, kd:kd + s * Do:s,
                                  kh:kh + s * Ho:s,
                                  kw:kw + s * Wo:s, :])        # (N, Do, Ho, Wo, C)
    pat = jnp.stack(cols, axis=-2)                             # (N, Do, Ho, Wo, k^3, C)
    return pat.reshape(N, Do * Ho * Wo, k ** 3 * C), (Do, Ho, Wo)


def conv3d_reflect_fused(x_cl, w, b, *, stride, pad, mode):
    """x_cl: (N, D, H, W, Cin) channel-last, w: (Cout, Cin, k, k, k), b: (Cout,).
       mode in {"none", "lrelu", "inorm_lrelu"}.  Returns (N, Do, Ho, Wo, Cout)."""
    N, D, H, W, Cin = x_cl.shape
    Cout, Cin_w, k, _, _ = w.shape
    assert Cin_w == Cin
    assert pad < min(D, H, W), "reflect padding requires pad < spatial size"

    xp = jnp.pad(x_cl, ((0, 0), (pad, pad), (pad, pad), (pad, pad), (0, 0)),
                 mode='reflect').astype(jnp.bfloat16)          # padding_mode='reflect'
    cols, (Do, Ho, Wo) = _im2col_3d_cl(xp, k, stride)          # (N, M, K) bf16
    M = Do * Ho * Wo
    K = Cin * k ** 3
    Np = pl.cdiv(Cout, LANE) * LANE                            # lane-dense output width

    # PyTorch weight (Cout, Cin, kd, kh, kw) -> (kd, kh, kw, Cin, Cout) -> (K, Cout)
    w_mat = jnp.transpose(w, (2, 3, 4, 1, 0)).reshape(K, Cout)
    w_mat = jnp.pad(w_mat, ((0, 0), (0, Np - Cout))).astype(jnp.bfloat16)
    b_row = jnp.pad(b, (0, Np - Cout)).reshape(1, Np).astype(jnp.float32)

    out = pl.pallas_call(
        functools.partial(_conv_fused_kernel, mode=mode,
                          neg_slope=NEG_SLOPE, eps=IN_EPS),
        grid=(N,),                                             # one step per sample
        in_specs=[
            pl.BlockSpec((None, M, K), lambda n: (n, 0, 0)),   # sample's patches
            pl.BlockSpec((K, Np), lambda n: (0, 0)),           # weights, resident
            pl.BlockSpec((1, Np), lambda n: (0, 0)),           # lane-padded bias
        ],
        out_specs=pl.BlockSpec((None, M, Np), lambda n: (n, 0, 0)),
        out_shape=jax.ShapeDtypeStruct((N, M, Np), jnp.float32),
        compiler_params=pltpu.CompilerParams(
            dimension_semantics=("parallel",)),
    )(cols, w_mat, b_row)

    return out[:, :, :Cout].reshape(N, Do, Ho, Wo, Cout)


# ----------------------------------------------------------------------------
# End activation (matches the PyTorch helper, incl. its alpha=0.01 defaults)
# ----------------------------------------------------------------------------
def build_end_activation(x, activation='linear', alpha=None):
    if activation == 'softmax':
        return jax.nn.softmax(x, axis=1)
    elif activation == 'sigmoid':
        return jax.nn.sigmoid(x)
    elif activation == 'elu':
        a = 0.01 if alpha is None else alpha
        return jnp.where(x > 0, x, a * (jnp.exp(x) - 1.0))
    elif activation == 'lrelu':
        a = 0.01 if alpha is None else alpha
        return jnp.where(x >= 0, x, a * x)
    elif activation == 'relu':
        return jnp.maximum(x, 0.0)
    elif activation == 'tanh':
        return jnp.tanh(x)
    return x


# ----------------------------------------------------------------------------
# Parameter init (deterministic, PyTorch-default-style uniform bounds)
# ----------------------------------------------------------------------------
def init_params(key, in_channel, basedim=8, downdepth=2, k=4):
    chans = [(in_channel, basedim)]
    for dpt in range(downdepth):
        chans.append((basedim * 2 ** dpt, basedim * 2 ** (dpt + 1)))
    chans.append((basedim * 2 ** downdepth, 1))
    params = []
    for cin, cout in chans:
        key, kw_, kb_ = jax.random.split(key, 3)
        fan_in = cin * k ** 3
        bound = 1.0 / jnp.sqrt(jnp.float32(fan_in))
        w = jax.random.uniform(kw_, (cout, cin, k, k, k), jnp.float32, -bound, bound)
        b = jax.random.uniform(kb_, (cout,), jnp.float32, -bound, bound)
        params.append((w, b))
    return params


# ----------------------------------------------------------------------------
# Forward pass: mirrors AdverserialNetwork.forward (downdepth=2, model_type='3d')
# ----------------------------------------------------------------------------
def adverserial_forward(x, params, activation_function=None):
    """x: (N, Cin, D, H, W) NCDHW at the module boundary (PyTorch convention)."""
    x_cl = jnp.transpose(x, (0, 2, 3, 4, 1))   # channel-last internally
    features = []

    # block 0: Conv3d(k=4, s=2, reflect pad 2) + LeakyReLU (fused)
    w, b = params[0]
    x_cl = conv3d_reflect_fused(x_cl, w, b, stride=2, pad=2, mode="lrelu")
    features.append(jnp.transpose(x_cl, (0, 4, 1, 2, 3)))

    # blocks 1..depth: Conv3d(s=2) + InstanceNorm3d + LeakyReLU (fused)
    for w, b in params[1:-1]:
        x_cl = conv3d_reflect_fused(x_cl, w, b, stride=2, pad=2, mode="inorm_lrelu")
        features.append(jnp.transpose(x_cl, (0, 4, 1, 2, 3)))

    # final: Conv3d(s=1) -> 1 channel, no norm/act
    w, b = params[-1]
    x_cl = conv3d_reflect_fused(x_cl, w, b, stride=1, pad=2, mode="none")
    out = jnp.transpose(x_cl, (0, 4, 1, 2, 3))
    features.append(out)

    prob = build_end_activation(out, activation_function)  # None -> linear (identity)
    return prob, features
    # TODO(synk): the torch.optim.Adam optimizer in __init__ is training-only
    # state, not part of the forward pass, so it is intentionally not reproduced.


if __name__ == "__main__":
    key = jax.random.PRNGKey(0)
    kx, kp = jax.random.split(key)
    # Small 3D input consistent with Conv3d / NCDHW: batch=2, channels=4, spatial=16
    x = jax.random.normal(kx, (2, 4, 16, 16, 16), jnp.float32)
    params = init_params(kp, in_channel=4, basedim=8, downdepth=2)

    fwd = jax.jit(lambda xx, pp: adverserial_forward(xx, pp, None))
    prob, features = fwd(x, params)

    jax.block_until_ready(prob)
    for f in features:
        jax.block_until_ready(f)

    # sanity: expected shapes 16->9->5->3 (stride2 x3) ->4 (stride1), channels 8,16,32,1
    assert features[0].shape == (2, 8, 9, 9, 9)
    assert features[1].shape == (2, 16, 5, 5, 5)
    assert features[2].shape == (2, 32, 3, 3, 3)
    assert features[3].shape == (2, 1, 4, 4, 4)
    assert prob.shape == (2, 1, 4, 4, 4)
    assert bool(jnp.all(jnp.isfinite(prob)))
    print("KERNEL_OK")
</pallas_src>

<mosaic_0001>
module attributes {stable_mosaic.version = 11 : i64} {
  func.func @_conv_fused_kernel(%arg0: i32, %arg1: memref<1x729x256xbf16, #tpu.memory_space<vmem>>, %arg2: memref<256x128xbf16, #tpu.memory_space<vmem>>, %arg3: memref<1x128xf32, #tpu.memory_space<vmem>>, %arg4: memref<1x729x128xf32, #tpu.memory_space<vmem>>) attributes {dimension_semantics = [#tpu.dimension_semantics<parallel>], iteration_bounds = array<i64: 2>, scalar_prefetch = 0 : i64, scratch_operands = 0 : i64, tpu.core_type = #tpu.core_type<tc>, window_params = [{transform_indices = @transform_0, window_bounds = array<i64: 1, 729, 256>}, {pipeline_mode = #tpu.pipeline_mode<synchronous>, transform_indices = @transform_1, window_bounds = array<i64: 256, 128>}, {pipeline_mode = #tpu.pipeline_mode<synchronous>, transform_indices = @transform_2, window_bounds = array<i64: 1, 128>}, {transform_indices = @transform_3, window_bounds = array<i64: 1, 729, 128>}]} {
    %c0 = arith.constant 0 : index
    %c0_0 = arith.constant 0 : index
    %c0_1 = arith.constant 0 : index
    %0 = vector.load %arg1[%c0, %c0_0, %c0_1] : memref<1x729x256xbf16, #tpu.memory_space<vmem>>, vector<1x729x256xbf16>
    %1 = vector.shape_cast %0 : vector<1x729x256xbf16> to vector<729x256xbf16>
    %c0_2 = arith.constant 0 : index
    %c0_3 = arith.constant 0 : index
    %2 = vector.load %arg2[%c0_2, %c0_3] : memref<256x128xbf16, #tpu.memory_space<vmem>>, vector<256x128xbf16>
    %cst = arith.constant dense<0.000000e+00> : vector<729x128xf32>
    %3 = tpu.matmul %1, %2, %cst {dimension_numbers = #tpu.dot_dimension_numbers<[1], [0], [0], [1], [0, 0, 1, 1], [], []>} : vector<729x256xbf16>, vector<256x128xbf16>, vector<729x128xf32> -> vector<729x128xf32>
    %c0_4 = arith.constant 0 : index
    %c0_5 = arith.constant 0 : index
    %4 = vector.load %arg3[%c0_4, %c0_5] : memref<1x128xf32, #tpu.memory_space<vmem>>, vector<1x128xf32>
    %5 = vector.broadcast %4 : vector<1x128xf32> to vector<729x128xf32>
    %6 = arith.addf %3, %5 : vector<729x128xf32>
    %cst_6 = arith.constant 0.000000e+00 : f32
    %7 = vector.broadcast %cst_6 : f32 to vector<729x128xf32>
    %8 = arith.cmpf oge, %6, %7 : vector<729x128xf32>
    %cst_7 = arith.constant 0.00999999977 : f32
    %9 = vector.broadcast %cst_7 : f32 to vector<729x128xf32>
    %10 = arith.mulf %9, %6 : vector<729x128xf32>
    %11 = arith.select %8, %6, %10 : vector<729x128xi1>, vector<729x128xf32>
    %c0_8 = arith.constant 0 : index
    %c0_9 = arith.constant 0 : index
    %c0_10 = arith.constant 0 : index
    %12 = vector.load %arg4[%c0_8, %c0_9, %c0_10] : memref<1x729x128xf32, #tpu.memory_space<vmem>>, vector<1x729x128xf32>
    %13 = vector.shape_cast %12 : vector<1x729x128xf32> to vector<729x128xf32>
    %14 = vector.shape_cast %11 : vector<729x128xf32> to vector<1x729x128xf32>
    tpu.vector_store %arg4[%c0_8, %c0_9, %c0_10], %14 {strides = array<i32>} : memref<1x729x128xf32, #tpu.memory_space<vmem>>, vector<1x729x128xf32>,
    return
  }
  func.func @transform_0(%arg0: i32) -> (i32, i32, i32) {
    %c0_i32 = arith.constant 0 : i32
    %c0_i32_0 = arith.constant 0 : i32
    %c0_i32_1 = arith.constant 0 : i32
    return %arg0, %c0_i32, %c0_i32_0 : i32, i32, i32
  }
  func.func @transform_1(%arg0: i32) -> (i32, i32) {
    %c0_i32 = arith.constant 0 : i32
    %c0_i32_0 = arith.constant 0 : i32
    %c0_i32_1 = arith.constant 0 : i32
    return %c0_i32, %c0_i32_0 : i32, i32
  }
  func.func @transform_2(%arg0: i32) -> (i32, i32) {
    %c0_i32 = arith.constant 0 : i32
    %c0_i32_0 = arith.constant 0 : i32
    %c0_i32_1 = arith.constant 0 : i32
    return %c0_i32, %c0_i32_0 : i32, i32
  }
  func.func @transform_3(%arg0: i32) -> (i32, i32, i32) {
    %c0_i32 = arith.constant 0 : i32
    %c0_i32_0 = arith.constant 0 : i32
    %c0_i32_1 = arith.constant 0 : i32
    return %arg0, %c0_i32, %c0_i32_0 : i32, i32, i32
  }
}

module attributes {stable_mosaic.version = 11 : i64} {
  func.func @_conv_fused_kernel(%arg0: i32, %arg1: memref<1x125x512xbf16, #tpu.memory_space<vmem>>, %arg2: memref<512x128xbf16, #tpu.memory_space<vmem>>, %arg3: memref<1x128xf32, #tpu.memory_space<vmem>>, %arg4: memref<1x125x128xf32, #tpu.memory_space<vmem>>) attributes {dimension_semantics = [#tpu.dimension_semantics<parallel>], iteration_bounds = array<i64: 2>, scalar_prefetch = 0 : i64, scratch_operands = 0 : i64, tpu.core_type = #tpu.core_type<tc>, window_params = [{transform_indices = @transform_0, window_bounds = array<i64: 1, 125, 512>}, {pipeline_mode = #tpu.pipeline_mode<synchronous>, transform_indices = @transform_1, window_bounds = array<i64: 512, 128>}, {pipeline_mode = #tpu.pipeline_mode<synchronous>, transform_indices = @transform_2, window_bounds = array<i64: 1, 128>}, {transform_indices = @transform_3, window_bounds = array<i64: 1, 125, 128>}]} {
    %c0 = arith.constant 0 : index
    %c0_0 = arith.constant 0 : index
    %c0_1 = arith.constant 0 : index
    %0 = vector.load %arg1[%c0, %c0_0, %c0_1] : memref<1x125x512xbf16, #tpu.memory_space<vmem>>, vector<1x125x512xbf16>
    %1 = vector.shape_cast %0 : vector<1x125x512xbf16> to vector<125x512xbf16>
    %c0_2 = arith.constant 0 : index
    %c0_3 = arith.constant 0 : index
    %2 = vector.load %arg2[%c0_2, %c0_3] : memref<512x128xbf16, #tpu.memory_space<vmem>>, vector<512x128xbf16>
    %cst = arith.constant dense<0.000000e+00> : vector<125x128xf32>
    %3 = tpu.matmul %1, %2, %cst {dimension_numbers = #tpu.dot_dimension_numbers<[1], [0], [0], [1], [0, 0, 1, 1], [], []>} : vector<125x512xbf16>, vector<512x128xbf16>, vector<125x128xf32> -> vector<125x128xf32>
    %c0_4 = arith.constant 0 : index
    %c0_5 = arith.constant 0 : index
    %4 = vector.load %arg3[%c0_4, %c0_5] : memref<1x128xf32, #tpu.memory_space<vmem>>, vector<1x128xf32>
    %5 = vector.broadcast %4 : vector<1x128xf32> to vector<125x128xf32>
    %6 = arith.addf %3, %5 : vector<125x128xf32>
    %cst_6 = arith.constant dense<0.000000e+00> : vector<128xf32>
    %7 = vector.multi_reduction <add>, %6, %cst_6 [0] : vector<125x128xf32> to vector<128xf32>
    %8 = vector.shape_cast %7 : vector<128xf32> to vector<1x128xf32>
    %cst_7 = arith.constant 8.000000e-03 : f32
    %9 = vector.broadcast %cst_7 : f32 to vector<1x128xf32>
    %10 = arith.mulf %8, %9 : vector<1x128xf32>
    %11 = arith.mulf %6, %6 : vector<125x128xf32>
    %cst_8 = arith.constant dense<0.000000e+00> : vector<128xf32>
    %12 = vector.multi_reduction <add>, %11, %cst_8 [0] : vector<125x128xf32> to vector<128xf32>
    %13 = vector.shape_cast %12 : vector<128xf32> to vector<1x128xf32>
    %cst_9 = arith.constant 8.000000e-03 : f32
    %14 = vector.broadcast %cst_9 : f32 to vector<1x128xf32>
    %15 = arith.mulf %13, %14 : vector<1x128xf32>
    %16 = arith.mulf %10, %10 : vector<1x128xf32>
    %17 = arith.subf %15, %16 : vector<1x128xf32>
    %cst_10 = arith.constant 0.000000e+00 : f32
    %18 = vector.broadcast %cst_10 : f32 to vector<1x128xf32>
    %19 = arith.maximumf %17, %18 : vector<1x128xf32>
    %20 = vector.broadcast %10 : vector<1x128xf32> to vector<125x128xf32>
    %21 = arith.subf %6, %20 : vector<125x128xf32>
    %cst_11 = arith.constant 9.99999974E-6 : f32
    %22 = vector.broadcast %cst_11 : f32 to vector<1x128xf32>
    %23 = arith.addf %19, %22 : vector<1x128xf32>
    %24 = math.rsqrt %23 : vector<1x128xf32>
    %25 = vector.broadcast %24 : vector<1x128xf32> to vector<125x128xf32>
    %26 = arith.mulf %21, %25 : vector<125x128xf32>
    %cst_12 = arith.constant 0.000000e+00 : f32
    %27 = vector.broadcast %cst_12 : f32 to vector<125x128xf32>
    %28 = arith.cmpf oge, %26, %27 : vector<125x128xf32>
    %cst_13 = arith.constant 0.00999999977 : f32
    %29 = vector.broadcast %cst_13 : f32 to vector<125x128xf32>
    %30 = arith.mulf %29, %26 : vector<125x128xf32>
    %31 = arith.select %28, %26, %30 : vector<125x128xi1>, vector<125x128xf32>
    %c0_14 = arith.constant 0 : index
    %c0_15 = arith.constant 0 : index
    %c0_16 = arith.constant 0 : index
    %32 = vector.load %arg4[%c0_14, %c0_15, %c0_16] : memref<1x125x128xf32, #tpu.memory_space<vmem>>, vector<1x125x128xf32>
    %33 = vector.shape_cast %32 : vector<1x125x128xf32> to vector<125x128xf32>
    %34 = vector.shape_cast %31 : vector<125x128xf32> to vector<1x125x128xf32>
    tpu.vector_store %arg4[%c0_14, %c0_15, %c0_16], %34 {strides = array<i32>} : memref<1x125x128xf32, #tpu.memory_space<vmem>>, vector<1x125x128xf32>,
    return
  }
  func.func @transform_0(%arg0: i32) -> (i32, i32, i32) {
    %c0_i32 = arith.constant 0 : i32
    %c0_i32_0 = arith.constant 0 : i32
    %c0_i32_1 = arith.constant 0 : i32
    return %arg0, %c0_i32, %c0_i32_0 : i32, i32, i32
  }
  func.func @transform_1(%arg0: i32) -> (i32, i32) {
    %c0_i32 = arith.constant 0 : i32
    %c0_i32_0 = arith.constant 0 : i32
    %c0_i32_1 = arith.constant 0 : i32
    return %c0_i32, %c0_i32_0 : i32, i32
  }
  func.func @transform_2(%arg0: i32) -> (i32, i32) {
    %c0_i32 = arith.constant 0 : i32
    %c0_i32_0 = arith.constant 0 : i32
    %c0_i32_1 = arith.constant 0 : i32
    return %c0_i32, %c0_i32_0 : i32, i32
  }
  func.func @transform_3(%arg0: i32) -> (i32, i32, i32) {
    %c0_i32 = arith.constant 0 : i32
    %c0_i32_0 = arith.constant 0 : i32
    %c0_i32_1 = arith.constant 0 : i32
    return %arg0, %c0_i32, %c0_i32_0 : i32, i32, i32
  }
}

module attributes {stable_mosaic.version = 11 : i64} {
  func.func @_conv_fused_kernel(%arg0: i32, %arg1: memref<1x27x1024xbf16, #tpu.memory_space<vmem>>, %arg2: memref<1024x128xbf16, #tpu.memory_space<vmem>>, %arg3: memref<1x128xf32, #tpu.memory_space<vmem>>, %arg4: memref<1x27x128xf32, #tpu.memory_space<vmem>>) attributes {dimension_semantics = [#tpu.dimension_semantics<parallel>], iteration_bounds = array<i64: 2>, scalar_prefetch = 0 : i64, scratch_operands = 0 : i64, tpu.core_type = #tpu.core_type<tc>, window_params = [{transform_indices = @transform_0, window_bounds = array<i64: 1, 27, 1024>}, {pipeline_mode = #tpu.pipeline_mode<synchronous>, transform_indices = @transform_1, window_bounds = array<i64: 1024, 128>}, {pipeline_mode = #tpu.pipeline_mode<synchronous>, transform_indices = @transform_2, window_bounds = array<i64: 1, 128>}, {transform_indices = @transform_3, window_bounds = array<i64: 1, 27, 128>}]} {
    %c0 = arith.constant 0 : index
    %c0_0 = arith.constant 0 : index
    %c0_1 = arith.constant 0 : index
    %0 = vector.load %arg1[%c0, %c0_0, %c0_1] : memref<1x27x1024xbf16, #tpu.memory_space<vmem>>, vector<1x27x1024xbf16>
    %1 = vector.shape_cast %0 : vector<1x27x1024xbf16> to vector<27x1024xbf16>
    %c0_2 = arith.constant 0 : index
    %c0_3 = arith.constant 0 : index
    %2 = vector.load %arg2[%c0_2, %c0_3] : memref<1024x128xbf16, #tpu.memory_space<vmem>>, vector<1024x128xbf16>
    %cst = arith.constant dense<0.000000e+00> : vector<27x128xf32>
    %3 = tpu.matmul %1, %2, %cst {dimension_numbers = #tpu.dot_dimension_numbers<[1], [0], [0], [1], [0, 0, 1, 1], [], []>} : vector<27x1024xbf16>, vector<1024x128xbf16>, vector<27x128xf32> -> vector<27x128xf32>
    %c0_4 = arith.constant 0 : index
    %c0_5 = arith.constant 0 : index
    %4 = vector.load %arg3[%c0_4, %c0_5] : memref<1x128xf32, #tpu.memory_space<vmem>>, vector<1x128xf32>
    %5 = vector.broadcast %4 : vector<1x128xf32> to vector<27x128xf32>
    %6 = arith.addf %3, %5 : vector<27x128xf32>
    %cst_6 = arith.constant dense<0.000000e+00> : vector<128xf32>
    %7 = vector.multi_reduction <add>, %6, %cst_6 [0] : vector<27x128xf32> to vector<128xf32>
    %8 = vector.shape_cast %7 : vector<128xf32> to vector<1x128xf32>
    %cst_7 = arith.constant 0.0370370373 : f32
    %9 = vector.broadcast %cst_7 : f32 to vector<1x128xf32>
    %10 = arith.mulf %8, %9 : vector<1x128xf32>
    %11 = arith.mulf %6, %6 : vector<27x128xf32>
    %cst_8 = arith.constant dense<0.000000e+00> : vector<128xf32>
    %12 = vector.multi_reduction <add>, %11, %cst_8 [0] : vector<27x128xf32> to vector<128xf32>
    %13 = vector.shape_cast %12 : vector<128xf32> to vector<1x128xf32>
    %cst_9 = arith.constant 0.0370370373 : f32
    %14 = vector.broadcast %cst_9 : f32 to vector<1x128xf32>
    %15 = arith.mulf %13, %14 : vector<1x128xf32>
    %16 = arith.mulf %10, %10 : vector<1x128xf32>
    %17 = arith.subf %15, %16 : vector<1x128xf32>
    %cst_10 = arith.constant 0.000000e+00 : f32
    %18 = vector.broadcast %cst_10 : f32 to vector<1x128xf32>
    %19 = arith.maximumf %17, %18 : vector<1x128xf32>
    %20 = vector.broadcast %10 : vector<1x128xf32> to vector<27x128xf32>
    %21 = arith.subf %6, %20 : vector<27x128xf32>
    %cst_11 = arith.constant 9.99999974E-6 : f32
    %22 = vector.broadcast %cst_11 : f32 to vector<1x128xf32>
    %23 = arith.addf %19, %22 : vector<1x128xf32>
    %24 = math.rsqrt %23 : vector<1x128xf32>
    %25 = vector.broadcast %24 : vector<1x128xf32> to vector<27x128xf32>
    %26 = arith.mulf %21, %25 : vector<27x128xf32>
    %cst_12 = arith.constant 0.000000e+00 : f32
    %27 = vector.broadcast %cst_12 : f32 to vector<27x128xf32>
    %28 = arith.cmpf oge, %26, %27 : vector<27x128xf32>
    %cst_13 = arith.constant 0.00999999977 : f32
    %29 = vector.broadcast %cst_13 : f32 to vector<27x128xf32>
    %30 = arith.mulf %29, %26 : vector<27x128xf32>
    %31 = arith.select %28, %26, %30 : vector<27x128xi1>, vector<27x128xf32>
    %c0_14 = arith.constant 0 : index
    %c0_15 = arith.constant 0 : index
    %c0_16 = arith.constant 0 : index
    %32 = vector.load %arg4[%c0_14, %c0_15, %c0_16] : memref<1x27x128xf32, #tpu.memory_space<vmem>>, vector<1x27x128xf32>
    %33 = vector.shape_cast %32 : vector<1x27x128xf32> to vector<27x128xf32>
    %34 = vector.shape_cast %31 : vector<27x128xf32> to vector<1x27x128xf32>
    tpu.vector_store %arg4[%c0_14, %c0_15, %c0_16], %34 {strides = array<i32>} : memref<1x27x128xf32, #tpu.memory_space<vmem>>, vector<1x27x128xf32>,
    return
  }
  func.func @transform_0(%arg0: i32) -> (i32, i32, i32) {
    %c0_i32 = arith.constant 0 : i32
    %c0_i32_0 = arith.constant 0 : i32
    %c0_i32_1 = arith.constant 0 : i32
    return %arg0, %c0_i32, %c0_i32_0 : i32, i32, i32
  }
  func.func @transform_1(%arg0: i32) -> (i32, i32) {
    %c0_i32 = arith.constant 0 : i32
    %c0_i32_0 = arith.constant 0 : i32
    %c0_i32_1 = arith.constant 0 : i32
    return %c0_i32, %c0_i32_0 : i32, i32
  }
  func.func @transform_2(%arg0: i32) -> (i32, i32) {
    %c0_i32 = arith.constant 0 : i32
    %c0_i32_0 = arith.constant 0 : i32
    %c0_i32_1 = arith.constant 0 : i32
    return %c0_i32, %c0_i32_0 : i32, i32
  }
  func.func @transform_3(%arg0: i32) -> (i32, i32, i32) {
    %c0_i32 = arith.constant 0 : i32
    %c0_i32_0 = arith.constant 0 : i32
    %c0_i32_1 = arith.constant 0 : i32
    return %arg0, %c0_i32, %c0_i32_0 : i32, i32, i32
  }
}

module attributes {stable_mosaic.version = 11 : i64} {
  func.func @_conv_fused_kernel(%arg0: i32, %arg1: memref<1x64x2048xbf16, #tpu.memory_space<vmem>>, %arg2: memref<2048x128xbf16, #tpu.memory_space<vmem>>, %arg3: memref<1x128xf32, #tpu.memory_space<vmem>>, %arg4: memref<1x64x128xf32, #tpu.memory_space<vmem>>) attributes {dimension_semantics = [#tpu.dimension_semantics<parallel>], iteration_bounds = array<i64: 2>, scalar_prefetch = 0 : i64, scratch_operands = 0 : i64, tpu.core_type = #tpu.core_type<tc>, window_params = [{transform_indices = @transform_0, window_bounds = array<i64: 1, 64, 2048>}, {pipeline_mode = #tpu.pipeline_mode<synchronous>, transform_indices = @transform_1, window_bounds = array<i64: 2048, 128>}, {pipeline_mode = #tpu.pipeline_mode<synchronous>, transform_indices = @transform_2, window_bounds = array<i64: 1, 128>}, {transform_indices = @transform_3, window_bounds = array<i64: 1, 64, 128>}]} {
    %c0 = arith.constant 0 : index
    %c0_0 = arith.constant 0 : index
    %c0_1 = arith.constant 0 : index
    %0 = vector.load %arg1[%c0, %c0_0, %c0_1] : memref<1x64x2048xbf16, #tpu.memory_space<vmem>>, vector<1x64x2048xbf16>
    %1 = vector.shape_cast %0 : vector<1x64x2048xbf16> to vector<64x2048xbf16>
    %c0_2 = arith.constant 0 : index
    %c0_3 = arith.constant 0 : index
    %2 = vector.load %arg2[%c0_2, %c0_3] : memref<2048x128xbf16, #tpu.memory_space<vmem>>, vector<2048x128xbf16>
    %cst = arith.constant dense<0.000000e+00> : vector<64x128xf32>
    %3 = tpu.matmul %1, %2, %cst {dimension_numbers = #tpu.dot_dimension_numbers<[1], [0], [0], [1], [0, 0, 1, 1], [], []>} : vector<64x2048xbf16>, vector<2048x128xbf16>, vector<64x128xf32> -> vector<64x128xf32>
    %c0_4 = arith.constant 0 : index
    %c0_5 = arith.constant 0 : index
    %4 = vector.load %arg3[%c0_4, %c0_5] : memref<1x128xf32, #tpu.memory_space<vmem>>, vector<1x128xf32>
    %5 = vector.broadcast %4 : vector<1x128xf32> to vector<64x128xf32>
    %6 = arith.addf %3, %5 : vector<64x128xf32>
    %c0_6 = arith.constant 0 : index
    %c0_7 = arith.constant 0 : index
    %c0_8 = arith.constant 0 : index
    %7 = vector.load %arg4[%c0_6, %c0_7, %c0_8] : memref<1x64x128xf32, #tpu.memory_space<vmem>>, vector<1x64x128xf32>
    %8 = vector.shape_cast %7 : vector<1x64x128xf32> to vector<64x128xf32>
    %9 = vector.shape_cast %6 : vector<64x128xf32> to vector<1x64x128xf32>
    tpu.vector_store %arg4[%c0_6, %c0_7, %c0_8], %9 {strides = array<i32>} : memref<1x64x128xf32, #tpu.memory_space<vmem>>, vector<1x64x128xf32>,
    return
  }
  func.func @transform_0(%arg0: i32) -> (i32, i32, i32) {
    %c0_i32 = arith.constant 0 : i32
    %c0_i32_0 = arith.constant 0 : i32
    %c0_i32_1 = arith.constant 0 : i32
    return %arg0, %c0_i32, %c0_i32_0 : i32, i32, i32
  }
  func.func @transform_1(%arg0: i32) -> (i32, i32) {
    %c0_i32 = arith.constant 0 : i32
    %c0_i32_0 = arith.constant 0 : i32
    %c0_i32_1 = arith.constant 0 : i32
    return %c0_i32, %c0_i32_0 : i32, i32
  }
  func.func @transform_2(%arg0: i32) -> (i32, i32) {
    %c0_i32 = arith.constant 0 : i32
    %c0_i32_0 = arith.constant 0 : i32
    %c0_i32_1 = arith.constant 0 : i32
    return %c0_i32, %c0_i32_0 : i32, i32
  }
  func.func @transform_3(%arg0: i32) -> (i32, i32, i32) {
    %c0_i32 = arith.constant 0 : i32
    %c0_i32_0 = arith.constant 0 : i32
    %c0_i32_1 = arith.constant 0 : i32
    return %arg0, %c0_i32, %c0_i32_0 : i32, i32, i32
  }
}

</mosaic_0001>

<llo_original>
// kernel: _lambda_.4
$region0: #{_lambda_.4}
  #allocation0 [shape = 'u32[]', space=smem, size = 0x4, offset = 0x4, fixed_abs, tag = 'smem constant byte address 0x4 - core index']
  #allocation1 [shape = 'u32[144,128]{1,0:T(1,128)}', space=vmem, size = 0x12000, scoped, tag = 'internal scratch']
  %s0 = inlined_call_operand.vmem [shape: bf16[2,729,256], index: 0, kind: input, shape index: {}]
  %s1 = inlined_call_operand.vmem [shape: bf16[256,128], index: 1, kind: input, shape index: {}]
  %s2 = inlined_call_operand.vmem [shape: f32[1,128], index: 2, kind: input, shape index: {}]
  %s3 = inlined_call_operand.vmem [shape: f32[2,729,128], index: 3, kind: output, shape index: {}]
  %s4 = sld [smem:[#allocation0]]
  $region45: #{_lambda_.4} parent=0
    _
  %s6 = ssub.s32 1, %s4
  %s7 = scalar_select 0, %s6, %s4
  loop: start=0, step=1, limit=4
  $region2: #{_lambda_.4} parent=0 // loop_pre_header
    _
  $region3: #{_lambda_.4} parent=0 // loop_header
    %s9 = sphi 0, %s13
    %p10 = scmp.ge.s32.totalorder %s9, 4
    %s19 = sphi 0, %s21
    %s22 = sphi 0, %s19
    %s23 = sphi 0, %s22
    %s39 = sphi 0, %s23
    %s43 = sphi 0, %s43
    %s45 = sphi 0, %s43
    %s46 = sphi 0, %s45
    %s60 = sphi 0, %s46
    %s64 = sphi 0, %s64
    %s66 = sphi 0, %s64
    %s67 = sphi 0, %s66
    %s81 = sphi 0, %s67
    %s87 = sphi 0, %s89
    %s90 = sphi 0, %s87
    %s91 = sphi 0, %s90
    %s107 = sphi 0, %s91
  $region4: #{_lambda_.4} parent=0 // loop_header_branch
    %12 = sbr.rel (%p10) target = $region8
  $region5: #{_lambda_.4} parent=0 // loop_body
    %s14 = ssub.s32 %s9, 1
    %s15 = ssub.s32 %s9, 2
    %s16 = sadd.s32 %s9, 1
    %s17 = ssub.s32 %s9, %s16
    %p18 = scmp.eq.s32.totalorder %s17, 0
    %s20 = sadd.s32 %s19, 1
    %s21 = scalar_select %p18, %s19, %s20
    %p24 = pneg %p18
    %p25 = scmp.eq.s32.totalorder %s9, 1
    %p26 = por %p24, %p25
    %p27 = scmp.ne.s32.totalorder %s19, %s22
    %p28 = scmp.eq.s32.totalorder %s9, 0
    %p29 = por %p27, %p28
    %p30 = scmp.ne.s32.totalorder %s19, %s22
    %p31 = scmp.eq.s32.totalorder %s14, 1
    %p32 = por %p30, %p31
    %p33 = scmp.ne.s32.totalorder %s22, %s23
    %p34 = scmp.eq.s32.totalorder %s14, 0
    %p35 = por %p33, %p34
    %p36 = scmp.ne.s32.totalorder %s22, %s23
    %p37 = scmp.eq.s32.totalorder %s15, 1
    %p38 = por %p36, %p37
    %p40 = scmp.ne.s32.totalorder %s23, %s39
    %p41 = scmp.eq.s32.totalorder %s15, 0
    %p42 = por %p40, %p41
    %s44 = sadd.s32 %s43, 1
    %p47 = scmp.eq.s32.totalorder %s9, 1
    %p48 = scmp.ne.s32.totalorder %s43, %s45
    %p49 = scmp.eq.s32.totalorder %s9, 0
    %p50 = por %p48, %p49
    %p51 = scmp.ne.s32.totalorder %s43, %s45
    %p52 = scmp.eq.s32.totalorder %s14, 1
    %p53 = por %p51, %p52
    %p54 = scmp.ne.s32.totalorder %s45, %s46
    %p55 = scmp.eq.s32.totalorder %s14, 0
    %p56 = por %p54, %p55
    %p57 = scmp.ne.s32.totalorder %s45, %s46
    %p58 = scmp.eq.s32.totalorder %s15, 1
    %p59 = por %p57, %p58
    %p61 = scmp.ne.s32.totalorder %s46, %s60
    %p62 = scmp.eq.s32.totalorder %s15, 0
    %p63 = por %p61, %p62
    %s65 = sadd.s32 %s64, 1
    %p68 = scmp.eq.s32.totalorder %s9, 1
    %p69 = scmp.ne.s32.totalorder %s64, %s66
    %p70 = scmp.eq.s32.totalorder %s9, 0
    %p71 = por %p69, %p70
    %p72 = scmp.ne.s32.totalorder %s64, %s66
    %p73 = scmp.eq.s32.totalorder %s14, 1
    %p74 = por %p72, %p73
    %p75 = scmp.ne.s32.totalorder %s66, %s67
    %p76 = scmp.eq.s32.totalorder %s14, 0
    %p77 = por %p75, %p76
    %p78 = scmp.ne.s32.totalorder %s66, %s67
    %p79 = scmp.eq.s32.totalorder %s15, 1
    %p80 = por %p78, %p79
    %p82 = scmp.ne.s32.totalorder %s67, %s81
    %p83 = scmp.eq.s32.totalorder %s15, 0
    %p84 = por %p82, %p83
    %s85 = ssub.s32 %s9, %s16
    %p86 = scmp.eq.s32.totalorder %s85, 0
    %s88 = sadd.s32 %s87, 1
    %s89 = scalar_select %p86, %s87, %s88
    %p92 = pneg %p86
    %p93 = scmp.eq.s32.totalorder %s9, 1
    %p94 = por %p92, %p93
    %p95 = scmp.ne.s32.totalorder %s87, %s90
    %p96 = scmp.eq.s32.totalorder %s9, 0
    %p97 = por %p95, %p96
    %p98 = scmp.ne.s32.totalorder %s87, %s90
    %p99 = scmp.eq.s32.totalorder %s14, 1
    %p100 = por %p98, %p99
    %p101 = scmp.ne.s32.totalorder %s90, %s91
    %p102 = scmp.eq.s32.totalorder %s14, 0
    %p103 = por %p101, %p102
    %p104 = scmp.ne.s32.totalorder %s90, %s91
    %p105 = scmp.eq.s32.totalorder %s15, 1
    %p106 = por %p104, %p105
    %p108 = scmp.ne.s32.totalorder %s91, %s107
    %p109 = scmp.eq.s32.totalorder %s15, 0
    %p110 = por %p108, %p109
    %p111 = scmp.le.s32.totalorder 1, %s9
    %p112 = scmp.lt.s32.totalorder %s9, 3
    %p113 = pnand %p111, %p112
    %p114 = pneg %p113
    // Predicated region
    $region9: #{_lambda_.4} parent=5 // pred_check
      _
    $region10: #{_lambda_.4} parent=5 // pred_check_branch
      %116 = sbr.rel (%p113) target = $region12
    $region11: #{_lambda_.4} parent=5 // pred_region
      %s117 = ssub.s32 %s9, 1
      // Predicated region
      $region13: #{_lambda_.4} parent=11 // pred_check
        %p118 = pneg %p56
      $region14: #{_lambda_.4} parent=11 // pred_check_branch
        %120 = sbr.rel (%p118) target = $region16
      $region15: #{_lambda_.4} parent=11 // pred_region
        _
      $region16: #{_lambda_.4} parent=11 // pred_fallthru
        _
      // Predicated region
      $region17: #{_lambda_.4} parent=11 // pred_check
        %p121 = pneg %p77
      $region18: #{_lambda_.4} parent=11 // pred_check_branch
        %123 = sbr.rel (%p121) target = $region20
      $region19: #{_lambda_.4} parent=11 // pred_region
        _
      $region20: #{_lambda_.4} parent=11 // pred_fallthru
        _
    $region12: #{_lambda_.4} parent=5 // pred_fallthru
      _
    %p124 = scmp.lt.s32.totalorder %s9, 2
    // Predicated region
    $region21: #{_lambda_.4} parent=5 // pred_check
      %p125 = pneg %p124
    $region22: #{_lambda_.4} parent=5 // pred_check_branch
      %127 = sbr.rel (%p125) target = $region24
    $region23: #{_lambda_.4} parent=5 // pred_region
      // Predicated region
      $region25: #{_lambda_.4} parent=23 // pred_check
        %p128 = pneg %p29
      $region26: #{_lambda_.4} parent=23 // pred_check_branch
        %130 = sbr.rel (%p128) target = $region28
      $region27: #{_lambda_.4} parent=23 // pred_region
        %p131 = scmp.lt.s32.totalorder %s9, 1
        %s132 = scalar_select %p131, %s9, 1
        %s133 = smul.addr %s132, 184
        %s134 = smul.addr %s133, 4
        %s135 = scalar_lea.vmem %s0, %s134
      $region28: #{_lambda_.4} parent=23 // pred_fallthru
        _
    $region24: #{_lambda_.4} parent=5 // pred_fallthru
      _
    %p136 = scmp.le.s32.totalorder 1, %s9
    %p137 = scmp.lt.s32.totalorder %s9, 3
    %p138 = pnand %p136, %p137
    %p139 = pneg %p138
    // Predicated region
    $region29: #{_lambda_.4} parent=5 // pred_check
      _
    $region30: #{_lambda_.4} parent=5 // pred_check_branch
      %141 = sbr.rel (%p138) target = $region32
    $region31: #{_lambda_.4} parent=5 // pred_region
      %s142 = ssub.s32 %s9, 1
      %p143 = scmp.lt.s32.totalorder %s14, 1
      %s144 = scalar_select %p143, %s14, 1
      %s145 = smul.addr %s144, 184
      %s146 = smul.addr %s145, 4
      %s147 = scalar_lea.vmem %s0, %s146
      %p148 = pneg %p35
      %p149 = pneg %p32
      %p150 = pneg %p56
      %p151 = pneg %p53
      %p152 = pneg %p77
      %p153 = pneg %p74
      %p154 = pneg %p103
      %p155 = pneg %p100
      %p156 = scmp.lt.s32.totalorder %s14, 1
      %s157 = scalar_select %p156, %s14, 1
      %s158 = smul.addr %s157, 92
      %s159 = smul.addr %s158, 8
      %s160 = scalar_lea.vmem %s3, %s159
      %p161 = scmp.lt.s32.totalorder %s14, 1
      %s162 = scalar_select %p161, %s14, 1
      %s163 = smul.addr %s162, 184
      %s164 = smul.addr %s163, 4
      %s165 = scalar_lea.vmem %s0, %s164
      %p166 = scmp.lt.s32.totalorder %s14, 1
      %s167 = scalar_select %p166, %s14, 1
      %s168 = smul.addr %s167, 92
      %s169 = smul.addr %s168, 8
      %s170 = scalar_lea.vmem %s3, %s169
      %v172 = vld [vmem:[%s165] sm:$0xff]
      %v173 = vld [vmem:[%s165 + $0x8] sm:$0xff]
      %v174 = vld [vmem:[%s165 + $0x10] sm:$0xff]
      %v175 = vld [vmem:[%s165 + $0x18] sm:$0xff]
      %v176 = vld [vmem:[%s165 + $0x20] sm:$0xff]
      %v177 = vld [vmem:[%s165 + $0x28] sm:$0xff]
      %v178 = vld [vmem:[%s165 + $0x30] sm:$0xff]
      %v179 = vld [vmem:[%s165 + $0x38] sm:$0xff]
      %v180 = vld [vmem:[%s165 + $0x40] sm:$0xff]
      %v181 = vld [vmem:[%s165 + $0x48] sm:$0xff]
      %v182 = vld [vmem:[%s165 + $0x50] sm:$0xff]
      %v183 = vld [vmem:[%s165 + $0x58] sm:$0xff]
      %v184 = vld [vmem:[%s165 + $0x60] sm:$0xff]
      %v185 = vld [vmem:[%s165 + $0x68] sm:$0xff]
      %v186 = vld [vmem:[%s165 + $0x70] sm:$0xff]
      %v187 = vld [vmem:[%s165 + $0x78] sm:$0xff]
      %v188 = vld [vmem:[%s165 + $0x80] sm:$0xff]
      %v189 = vld [vmem:[%s165 + $0x88] sm:$0xff]
      %v190 = vld [vmem:[%s165 + $0x90] sm:$0xff]
      %v191 = vld [vmem:[%s165 + $0x98] sm:$0xff]
      %v192 = vld [vmem:[%s165 + $0xa0] sm:$0xff]
      %v193 = vld [vmem:[%s165 + $0xa8] sm:$0xff]
      %v194 = vld [vmem:[%s165 + $0xb0] sm:$0xff]
      %v195 = vld [vmem:[%s165 + $0xb8] sm:$0xff]
      %v196 = vld [vmem:[%s165 + $0xc0] sm:$0xff]
      %v197 = vld [vmem:[%s165 + $0xc8] sm:$0xff]
      %v198 = vld [vmem:[%s165 + $0xd0] sm:$0xff]
      %v199 = vld [vmem:[%s165 + $0xd8] sm:$0xff]
      %v200 = vld [vmem:[%s165 + $0xe0] sm:$0xff]
      %v201 = vld [vmem:[%s165 + $0xe8] sm:$0xff]
      %v202 = vld [vmem:[%s165 + $0xf0] sm:$0xff]
      %v203 = vld [vmem:[%s165 + $0xf8] sm:$0xff]
      %v204 = vld [vmem:[%s165 + $0x100] sm:$0xff]
      %v205 = vld [vmem:[%s165 + $0x108] sm:$0xff]
      %v206 = vld [vmem:[%s165 + $0x110] sm:$0xff]
      %v207 = vld [vmem:[%s165 + $0x118] sm:$0xff]
      %v208 = vld [vmem:[%s165 + $0x120] sm:$0xff]
      %v209 = vld [vmem:[%s165 + $0x128] sm:$0xff]
      %v210 = vld [vmem:[%s165 + $0x130] sm:$0xff]
      %v211 = vld [vmem:[%s165 + $0x138] sm:$0xff]
      %v212 = vld [vmem:[%s165 + $0x140] sm:$0xff]
      %v213 = vld [vmem:[%s165 + $0x148] sm:$0xff]
      %v214 = vld [vmem:[%s165 + $0x150] sm:$0xff]
      %v215 = vld [vmem:[%s165 + $0x158] sm:$0xff]
      %v216 = vld [vmem:[%s165 + $0x160] sm:$0xff]
      %v217 = vld [vmem:[%s165 + $0x168] sm:$0xff]
      %v218 = vld [vmem:[%s165 + $0x170] sm:$0xff]
      %v219 = vld [vmem:[%s165 + $0x178] sm:$0xff]
      %v220 = vld [vmem:[%s165 + $0x180] sm:$0xff]
      %v221 = vld [vmem:[%s165 + $0x188] sm:$0xff]
      %v222 = vld [vmem:[%s165 + $0x190] sm:$0xff]
      %v223 = vld [vmem:[%s165 + $0x198] sm:$0xff]
      %v224 = vld [vmem:[%s165 + $0x1a0] sm:$0xff]
      %v225 = vld [vmem:[%s165 + $0x1a8] sm:$0xff]
      %v226 = vld [vmem:[%s165 + $0x1b0] sm:$0xff]
      %v227 = vld [vmem:[%s165 + $0x1b8] sm:$0xff]
      %v228 = vld [vmem:[%s165 + $0x1c0] sm:$0xff]
      %v229 = vld [vmem:[%s165 + $0x1c8] sm:$0xff]
      %v230 = vld [vmem:[%s165 + $0x1d0] sm:$0xff]
      %v231 = vld [vmem:[%s165 + $0x1d8] sm:$0xff]
      %v232 = vld [vmem:[%s165 + $0x1e0] sm:$0xff]
      %v233 = vld [vmem:[%s165 + $0x1e8] sm:$0xff]
      %v234 = vld [vmem:[%s165 + $0x1f0] sm:$0xff]
      %v235 = vld [vmem:[%s165 + $0x1f8] sm:$0xff]
      %v236 = vld [vmem:[%s165 + $0x200] sm:$0xff]
      %v237 = vld [vmem:[%s165 + $0x208] sm:$0xff]
      %v238 = vld [vmem:[%s165 + $0x210] sm:$0xff]
      %v239 = vld [vmem:[%s165 + $0x218] sm:$0xff]
      %v240 = vld [vmem:[%s165 + $0x220] sm:$0xff]
      %v241 = vld [vmem:[%s165 + $0x228] sm:$0xff]
      %v242 = vld [vmem:[%s165 + $0x230] sm:$0xff]
      %v243 = vld [vmem:[%s165 + $0x238] sm:$0xff]
      %v244 = vld [vmem:[%s165 + $0x240] sm:$0xff]
      %v245 = vld [vmem:[%s165 + $0x248] sm:$0xff]
      %v246 = vld [vmem:[%s165 + $0x250] sm:$0xff]
      %v247 = vld [vmem:[%s165 + $0x258] sm:$0xff]
      %v248 = vld [vmem:[%s165 + $0x260] sm:$0xff]
      %v249 = vld [vmem:[%s165 + $0x268] sm:$0xff]
      %v250 = vld [vmem:[%s165 + $0x270] sm:$0xff]
      %v251 = vld [vmem:[%s165 + $0x278] sm:$0xff]
      %v252 = vld [vmem:[%s165 + $0x280] sm:$0xff]
      %v253 = vld [vmem:[%s165 + $0x288] sm:$0xff]
      %v254 = vld [vmem:[%s165 + $0x290] sm:$0xff]
      %v255 = vld [vmem:[%s165 + $0x298] sm:$0xff]
      %v256 = vld [vmem:[%s165 + $0x2a0] sm:$0xff]
      %v257 = vld [vmem:[%s165 + $0x2a8] sm:$0xff]
      %v258 = vld [vmem:[%s165 + $0x2b0] sm:$0xff]
      %v259 = vld [vmem:[%s165 + $0x2b8] sm:$0xff]
      %v260 = vld [vmem:[%s165 + $0x2c0] sm:$0xff]
      %v261 = vld [vmem:[%s165 + $0x2c8] sm:$0xff]
      %v262 = vld [vmem:[%s165 + $0x2d0] sm:$0xff]
      %v263 = vld [vmem:[%s165 + $0x2d8] sm:$0x11]
      %v264 = vld [vmem:[%s1] sm:$0xf]
      %v265 = vld [vmem:[%s1 + $0x4] sm:$0xf]
      %v266 = vld [vmem:[%s1 + $0x8] sm:$0xf]
      %v267 = vld [vmem:[%s1 + $0xc] sm:$0xf]
      %v268 = vld [vmem:[%s1 + $0x10] sm:$0xf]
      %v269 = vld [vmem:[%s1 + $0x14] sm:$0xf]
      %v270 = vld [vmem:[%s1 + $0x18] sm:$0xf]
      %v271 = vld [vmem:[%s1 + $0x1c] sm:$0xf]
      %v272 = vld [vmem:[%s1 + $0x20] sm:$0xf]
      %v273 = vld [vmem:[%s1 + $0x24] sm:$0xf]
      %v274 = vld [vmem:[%s1 + $0x28] sm:$0xf]
      %v275 = vld [vmem:[%s1 + $0x2c] sm:$0xf]
      %v276 = vld [vmem:[%s1 + $0x30] sm:$0xf]
      %v277 = vld [vmem:[%s1 + $0x34] sm:$0xf]
      %v278 = vld [vmem:[%s1 + $0x38] sm:$0xf]
      %v279 = vld [vmem:[%s1 + $0x3c] sm:$0xf]
      %v280 = vld [vmem:[%s1 + $0x40] sm:$0xf]
      %v281 = vld [vmem:[%s1 + $0x44] sm:$0xf]
      %v282 = vld [vmem:[%s1 + $0x48] sm:$0xf]
      %v283 = vld [vmem:[%s1 + $0x4c] sm:$0xf]
      %v284 = vld [vmem:[%s1 + $0x50] sm:$0xf]
      %v285 = vld [vmem:[%s1 + $0x54] sm:$0xf]
      %v286 = vld [vmem:[%s1 + $0x58] sm:$0xf]
      %v287 = vld [vmem:[%s1 + $0x5c] sm:$0xf]
      %v288 = vld [vmem:[%s1 + $0x60] sm:$0xf]
      %v289 = vld [vmem:[%s1 + $0x64] sm:$0xf]
      %v290 = vld [vmem:[%s1 + $0x68] sm:$0xf]
      %v291 = vld [vmem:[%s1 + $0x6c] sm:$0xf]
      %v292 = vld [vmem:[%s1 + $0x70] sm:$0xf]
      %v293 = vld [vmem:[%s1 + $0x74] sm:$0xf]
      %v294 = vld [vmem:[%s1 + $0x78] sm:$0xf]
      %v295 = vld [vmem:[%s1 + $0x7c] sm:$0xf]
      %v296 = vld [vmem:[%s2] sm:$0x1]
      %v298 = vlaneseq
      %v299 = vshrl.u32 %v298, 7
      %v300 = vsub.s32 0, %v299
      %v301 = vrot.slane %v296, %v300
      %v395 = vunpack.c.l.b16 %v172
      %v396 = vunpack.c.h.b16 %v172
      %v397 = vunpack.c.l.b16 %v173
      %v398 = vunpack.c.h.b16 %v173
      %v399 = vunpack.c.l.b16 %v174
      %v400 = vunpack.c.h.b16 %v174
      %v401 = vunpack.c.l.b16 %v175
      %v402 = vunpack.c.h.b16 %v175
      %v403 = vunpack.c.l.b16 %v176
      %v404 = vunpack.c.h.b16 %v176
      %v405 = vunpack.c.l.b16 %v177
      %v406 = vunpack.c.h.b16 %v177
      %v407 = vunpack.c.l.b16 %v178
      %v408 = vunpack.c.h.b16 %v178
      %v409 = vunpack.c.l.b16 %v179
      %v410 = vunpack.c.h.b16 %v179
      %v411 = vunpack.c.l.b16 %v180
      %v412 = vunpack.c.h.b16 %v180
      %v413 = vunpack.c.l.b16 %v181
      %v414 = vunpack.c.h.b16 %v181
      %v415 = vunpack.c.l.b16 %v182
      %v416 = vunpack.c.h.b16 %v182
      %v417 = vunpack.c.l.b16 %v183
      %v418 = vunpack.c.h.b16 %v183
      %v419 = vunpack.c.l.b16 %v184
      %v420 = vunpack.c.h.b16 %v184
      %v421 = vunpack.c.l.b16 %v185
      %v422 = vunpack.c.h.b16 %v185
      %v423 = vunpack.c.l.b16 %v186
      %v424 = vunpack.c.h.b16 %v186
      %v425 = vunpack.c.l.b16 %v187
      %v426 = vunpack.c.h.b16 %v187
      %v427 = vunpack.c.l.b16 %v188
      %v428 = vunpack.c.h.b16 %v188
      %v429 = vunpack.c.l.b16 %v189
      %v430 = vunpack.c.h.b16 %v189
      %v431 = vunpack.c.l.b16 %v190
      %v432 = vunpack.c.h.b16 %v190
      %v433 = vunpack.c.l.b16 %v191
      %v434 = vunpack.c.h.b16 %v191
      %v435 = vunpack.c.l.b16 %v192
      %v436 = vunpack.c.h.b16 %v192
      %v437 = vunpack.c.l.b16 %v193
      %v438 = vunpack.c.h.b16 %v193
      %v439 = vunpack.c.l.b16 %v194
      %v440 = vunpack.c.h.b16 %v194
      %v441 = vunpack.c.l.b16 %v195
      %v442 = vunpack.c.h.b16 %v195
      %v443 = vunpack.c.l.b16 %v196
      %v444 = vunpack.c.h.b16 %v196
      %v445 = vunpack.c.l.b16 %v197
      %v446 = vunpack.c.h.b16 %v197
      %v447 = vunpack.c.l.b16 %v198
      %v448 = vunpack.c.h.b16 %v198
      %v449 = vunpack.c.l.b16 %v199
      %v450 = vunpack.c.h.b16 %v199
      %v451 = vunpack.c.l.b16 %v200
      %v452 = vunpack.c.h.b16 %v200
      %v453 = vunpack.c.l.b16 %v201
      %v454 = vunpack.c.h.b16 %v201
      %v455 = vunpack.c.l.b16 %v202
      %v456 = vunpack.c.h.b16 %v202
      %v457 = vunpack.c.l.b16 %v203
      %v458 = vunpack.c.h.b16 %v203
      %v459 = vunpack.c.l.b16 %v204
      %v460 = vunpack.c.h.b16 %v204
      %v461 = vunpack.c.l.b16 %v205
      %v462 = vunpack.c.h.b16 %v205
      %v463 = vunpack.c.l.b16 %v206
      %v464 = vunpack.c.h.b16 %v206
      %v465 = vunpack.c.l.b16 %v207
      %v466 = vunpack.c.h.b16 %v207
      %v467 = vunpack.c.l.b16 %v208
      %v468 = vunpack.c.h.b16 %v208
      %v469 = vunpack.c.l.b16 %v209
      %v470 = vunpack.c.h.b16 %v209
      %v471 = vunpack.c.l.b16 %v210
      %v472 = vunpack.c.h.b16 %v210
      %v473 = vunpack.c.l.b16 %v211
      %v474 = vunpack.c.h.b16 %v211
      %v475 = vunpack.c.l.b16 %v212
      %v476 = vunpack.c.h.b16 %v212
      %v477 = vunpack.c.l.b16 %v213
      %v478 = vunpack.c.h.b16 %v213
      %v479 = vunpack.c.l.b16 %v214
      %v480 = vunpack.c.h.b16 %v214
      %v481 = vunpack.c.l.b16 %v215
      %v482 = vunpack.c.h.b16 %v215
      %v483 = vunpack.c.l.b16 %v216
      %v484 = vunpack.c.h.b16 %v216
      %v485 = vunpack.c.l.b16 %v217
      %v486 = vunpack.c.h.b16 %v217
      %v487 = vunpack.c.l.b16 %v218
      %v488 = vunpack.c.h.b16 %v218
      %v489 = vunpack.c.l.b16 %v219
      %v490 = vunpack.c.h.b16 %v219
      %v491 = vunpack.c.l.b16 %v220
      %v492 = vunpack.c.h.b16 %v220
      %v493 = vunpack.c.l.b16 %v221
      %v494 = vunpack.c.h.b16 %v221
      %v495 = vunpack.c.l.b16 %v222
      %v496 = vunpack.c.h.b16 %v222
      %v497 = vunpack.c.l.b16 %v223
      %v498 = vunpack.c.h.b16 %v223
      %v499 = vunpack.c.l.b16 %v224
      %v500 = vunpack.c.h.b16 %v224
      %v501 = vunpack.c.l.b16 %v225
      %v502 = vunpack.c.h.b16 %v225
      %v503 = vunpack.c.l.b16 %v226
      %v504 = vunpack.c.h.b16 %v226
      %v505 = vunpack.c.l.b16 %v227
      %v506 = vunpack.c.h.b16 %v227
      %v507 = vunpack.c.l.b16 %v228
      %v508 = vunpack.c.h.b16 %v228
      %v509 = vunpack.c.l.b16 %v229
      %v510 = vunpack.c.h.b16 %v229
      %v511 = vunpack.c.l.b16 %v230
      %v512 = vunpack.c.h.b16 %v230
      %v513 = vunpack.c.l.b16 %v231
      %v514 = vunpack.c.h.b16 %v231
      %v515 = vunpack.c.l.b16 %v232
      %v516 = vunpack.c.h.b16 %v232
      %v517 = vunpack.c.l.b16 %v233
      %v518 = vunpack.c.h.b16 %v233
      %v519 = vunpack.c.l.b16 %v234
      %v520 = vunpack.c.h.b16 %v234
      %v521 = vunpack.c.l.b16 %v235
      %v522 = vunpack.c.h.b16 %v235
      %v523 = vunpack.c.l.b16 %v236
      %v524 = vunpack.c.h.b16 %v236
      %v525 = vunpack.c.l.b16 %v237
      %v526 = vunpack.c.h.b16 %v237
      %v527 = vunpack.c.l.b16 %v238
      %v528 = vunpack.c.h.b16 %v238
      %v529 = vunpack.c.l.b16 %v239
      %v530 = vunpack.c.h.b16 %v239
      %v531 = vunpack.c.l.b16 %v240
      %v532 = vunpack.c.h.b16 %v240
      %v533 = vunpack.c.l.b16 %v241
      %v534 = vunpack.c.h.b16 %v241
      %v535 = vunpack.c.l.b16 %v242
      %v536 = vunpack.c.h.b16 %v242
      %v537 = vunpack.c.l.b16 %v243
      %v538 = vunpack.c.h.b16 %v243
      %v539 = vunpack.c.l.b16 %v244
      %v540 = vunpack.c.h.b16 %v244
      %v541 = vunpack.c.l.b16 %v245
      %v542 = vunpack.c.h.b16 %v245
      %v543 = vunpack.c.l.b16 %v246
      %v544 = vunpack.c.h.b16 %v246
      %v545 = vunpack.c.l.b16 %v247
      %v546 = vunpack.c.h.b16 %v247
      %v547 = vunpack.c.l.b16 %v248
      %v548 = vunpack.c.h.b16 %v248
      %v549 = vunpack.c.l.b16 %v249
      %v550 = vunpack.c.h.b16 %v249
      %v551 = vunpack.c.l.b16 %v250
      %v552 = vunpack.c.h.b16 %v250
      %v553 = vunpack.c.l.b16 %v251
      %v554 = vunpack.c.h.b16 %v251
      %v555 = vunpack.c.l.b16 %v252
      %v556 = vunpack.c.h.b16 %v252
      %v557 = vunpack.c.l.b16 %v253
      %v558 = vunpack.c.h.b16 %v253
      %v559 = vunpack.c.l.b16 %v254
      %v560 = vunpack.c.h.b16 %v254
      %v561 = vunpack.c.l.b16 %v255
      %v562 = vunpack.c.h.b16 %v255
      %v563 = vunpack.c.l.b16 %v256
      %v564 = vunpack.c.h.b16 %v256
      %v565 = vunpack.c.l.b16 %v257
      %v566 = vunpack.c.h.b16 %v257
      %v567 = vunpack.c.l.b16 %v258
      %v568 = vunpack.c.h.b16 %v258
      %v569 = vunpack.c.l.b16 %v259
      %v570 = vunpack.c.h.b16 %v259
      %v571 = vunpack.c.l.b16 %v260
      %v572 = vunpack.c.h.b16 %v260
      %v573 = vunpack.c.l.b16 %v261
      %v574 = vunpack.c.h.b16 %v261
      %v575 = vunpack.c.l.b16 %v262
      %v576 = vunpack.c.h.b16 %v262
      %v577 = vunpack.c.l.b16 %v263
      %v578 = vunpack.c.h.b16 %v263
      %v579 = vpack.c.b16 %v397, %v395
      %v580 = vpack.c.b16 %v398, %v396
      %v581 = vpack.c.b16 %v401, %v399
      %v582 = vpack.c.b16 %v402, %v400
      %v583 = vpack.c.b16 %v405, %v403
      %v584 = vpack.c.b16 %v406, %v404
      %v585 = vpack.c.b16 %v409, %v407
      %v586 = vpack.c.b16 %v410, %v408
      %v587 = vpack.c.b16 %v413, %v411
      %v588 = vpack.c.b16 %v414, %v412
      %v589 = vpack.c.b16 %v417, %v415
      %v590 = vpack.c.b16 %v418, %v416
      %v591 = vpack.c.b16 %v421, %v419
      %v592 = vpack.c.b16 %v422, %v420
      %v593 = vpack.c.b16 %v425, %v423
      %v594 = vpack.c.b16 %v426, %v424
      %v595 = vpack.c.b16 %v429, %v427
      %v596 = vpack.c.b16 %v430, %v428
      %v597 = vpack.c.b16 %v433, %v431
      %v598 = vpack.c.b16 %v434, %v432
      %v599 = vpack.c.b16 %v437, %v435
      %v600 = vpack.c.b16 %v438, %v436
      %v601 = vpack.c.b16 %v441, %v439
      %v602 = vpack.c.b16 %v442, %v440
      %v603 = vpack.c.b16 %v445, %v443
      %v604 = vpack.c.b16 %v446, %v444
      %v605 = vpack.c.b16 %v449, %v447
      %v606 = vpack.c.b16 %v450, %v448
      %v607 = vpack.c.b16 %v453, %v451
      %v608 = vpack.c.b16 %v454, %v452
      %v609 = vpack.c.b16 %v457, %v455
      %v610 = vpack.c.b16 %v458, %v456
      %v611 = vpack.c.b16 %v461, %v459
      %v612 = vpack.c.b16 %v462, %v460
      %v613 = vpack.c.b16 %v465, %v463
      %v614 = vpack.c.b16 %v466, %v464
      %v615 = vpack.c.b16 %v469, %v467
      %v616 = vpack.c.b16 %v470, %v468
      %v617 = vpack.c.b16 %v473, %v471
      %v618 = vpack.c.b16 %v474, %v472
      %v619 = vpack.c.b16 %v477, %v475
      %v620 = vpack.c.b16 %v478, %v476
      %v621 = vpack.c.b16 %v481, %v479
      %v622 = vpack.c.b16 %v482, %v480
      %v623 = vpack.c.b16 %v485, %v483
      %v624 = vpack.c.b16 %v486, %v484
      %v625 = vpack.c.b16 %v489, %v487
      %v626 = vpack.c.b16 %v490, %v488
      %v627 = vpack.c.b16 %v493, %v491
      %v628 = vpack.c.b16 %v494, %v492
      %v629 = vpack.c.b16 %v497, %v495
      %v630 = vpack.c.b16 %v498, %v496
      %v631 = vpack.c.b16 %v501, %v499
      %v632 = vpack.c.b16 %v502, %v500
      %v633 = vpack.c.b16 %v505, %v503
      %v634 = vpack.c.b16 %v506, %v504
      %v635 = vpack.c.b16 %v509, %v507
      %v636 = vpack.c.b16 %v510, %v508
      %v637 = vpack.c.b16 %v513, %v511
      %v638 = vpack.c.b16 %v514, %v512
      %v639 = vpack.c.b16 %v517, %v515
      %v640 = vpack.c.b16 %v518, %v516
      %v641 = vpack.c.b16 %v521, %v519
      %v642 = vpack.c.b16 %v522, %v520
      %v643 = vpack.c.b16 %v525, %v523
      %v644 = vpack.c.b16 %v526, %v524
      %v645 = vpack.c.b16 %v529, %v527
      %v646 = vpack.c.b16 %v530, %v528
      %v647 = vpack.c.b16 %v533, %v531
      %v648 = vpack.c.b16 %v534, %v532
      %v649 = vpack.c.b16 %v537, %v535
      %v650 = vpack.c.b16 %v538, %v536
      %v651 = vpack.c.b16 %v541, %v539
      %v652 = vpack.c.b16 %v542, %v540
      %v653 = vpack.c.b16 %v545, %v543
      %v654 = vpack.c.b16 %v546, %v544
      %v655 = vpack.c.b16 %v549, %v547
      %v656 = vpack.c.b16 %v550, %v548
      %v657 = vpack.c.b16 %v553, %v551
      %v658 = vpack.c.b16 %v554, %v552
      %v659 = vpack.c.b16 %v557, %v555
      %v660 = vpack.c.b16 %v558, %v556
      %v661 = vpack.c.b16 %v561, %v559
      %v662 = vpack.c.b16 %v562, %v560
      %v663 = vpack.c.b16 %v565, %v563
      %v664 = vpack.c.b16 %v566, %v564
      %v665 = vpack.c.b16 %v569, %v567
      %v666 = vpack.c.b16 %v570, %v568
      %v667 = vpack.c.b16 %v573, %v571
      %v668 = vpack.c.b16 %v574, %v572
      %v669 = vpack.c.b16 %v577, %v575
      %v670 = vpack.c.b16 %v578, %v576
      %v795 = vunpack.c.l.b16 %v264
      %v796 = vunpack.c.l.b16 %v265
      %v797 = vunpack.c.l.b16 %v266
      %v798 = vunpack.c.l.b16 %v267
      %v799 = vunpack.c.l.b16 %v268
      %v800 = vunpack.c.l.b16 %v269
      %v801 = vunpack.c.l.b16 %v270
      %v802 = vunpack.c.l.b16 %v271
      %v803 = vunpack.c.l.b16 %v272
      %v804 = vunpack.c.l.b16 %v273
      %v805 = vunpack.c.l.b16 %v274
      %v806 = vunpack.c.l.b16 %v275
      %v807 = vunpack.c.l.b16 %v276
      %v808 = vunpack.c.l.b16 %v277
      %v809 = vunpack.c.l.b16 %v278
      %v810 = vunpack.c.l.b16 %v279
      %v811 = vunpack.c.l.b16 %v280
      %v812 = vunpack.c.l.b16 %v281
      %v813 = vunpack.c.l.b16 %v282
      %v814 = vunpack.c.l.b16 %v283
      %v815 = vunpack.c.l.b16 %v284
      %v816 = vunpack.c.l.b16 %v285
      %v817 = vunpack.c.l.b16 %v286
      %v818 = vunpack.c.l.b16 %v287
      %v819 = vunpack.c.l.b16 %v288
      %v820 = vunpack.c.l.b16 %v289
      %v821 = vunpack.c.l.b16 %v290
      %v822 = vunpack.c.l.b16 %v291
      %v823 = vunpack.c.l.b16 %v292
      %v824 = vunpack.c.l.b16 %v293
      %v825 = vunpack.c.l.b16 %v294
      %v826 = vunpack.c.l.b16 %v295
      %v827 = vpack.c.b16 %v796, %v795
      %v828 = vpack.c.b16 %v798, %v797
      %v829 = vpack.c.b16 %v800, %v799
      %v830 = vpack.c.b16 %v802, %v801
      %v831 = vpack.c.b16 %v804, %v803
      %v832 = vpack.c.b16 %v806, %v805
      %v833 = vpack.c.b16 %v808, %v807
      %v834 = vpack.c.b16 %v810, %v809
      %v835 = vpack.c.b16 %v812, %v811
      %v836 = vpack.c.b16 %v814, %v813
      %v837 = vpack.c.b16 %v816, %v815
      %v838 = vpack.c.b16 %v818, %v817
      %v839 = vpack.c.b16 %v820, %v819
      %v840 = vpack.c.b16 %v822, %v821
      %v841 = vpack.c.b16 %v824, %v823
      %v842 = vpack.c.b16 %v826, %v825
      %859 = vmatprep.subr.bf16.mxu0 0
      %860 = vmatpush1.bf16.msra.mxu0 %v827
      %861 = vmatprep.subr.bf16.mxu0 0
      %862 = vmatpush1.bf16.msra.mxu0 %v828
      %863 = vmatprep.subr.bf16.mxu0 0
      %864 = vmatpush1.bf16.msra.mxu0 %v829
      %865 = vmatprep.subr.bf16.mxu0 0
      %866 = vmatpush1.bf16.msra.mxu0 %v830
      %867 = vmatprep.subr.bf16.mxu0 0
      %868 = vmatpush1.bf16.msra.mxu0 %v831
      %869 = vmatprep.subr.bf16.mxu0 0
      %870 = vmatpush1.bf16.msra.mxu0 %v832
      %871 = vmatprep.subr.bf16.mxu0 0
      %872 = vmatpush1.bf16.msra.mxu0 %v833
      %873 = vmatprep.subr.bf16.mxu0 0
      %874 = vmatpush1.bf16.msra.mxu0 %v834
      %875 = vmatprep.subr.bf16.mxu0 0
      %876 = vmatpush1.bf16.msra.mxu0 %v835
      %877 = vmatprep.subr.bf16.mxu0 0
      %878 = vmatpush1.bf16.msra.mxu0 %v836
      %879 = vmatprep.subr.bf16.mxu0 0
      %880 = vmatpush1.bf16.msra.mxu0 %v837
      %881 = vmatprep.subr.bf16.mxu0 0
      %882 = vmatpush1.bf16.msra.mxu0 %v838
      %883 = vmatprep.subr.bf16.mxu0 0
      %884 = vmatpush1.bf16.msra.mxu0 %v839
      %885 = vmatprep.subr.bf16.mxu0 0
      %886 = vmatpush1.bf16.msra.mxu0 %v840
      %887 = vmatprep.subr.bf16.mxu0 0
      %888 = vmatpush1.bf16.msra.mxu0 %v841
      %889 = vmatprep.subr.bf16.mxu0 0
      %890 = vmatpush1.bf16.msra.mxu0 %v842
      %891 = vmatprep.mubr.bf16.mxu0 %v580
      %892 = vmatmul.mubr.bf16.gmra.mrb[0].mxu0 %v579
      %v893 = vpop.f32.mrb[0].mxu0
      %v894 = vadd.f32 %v301, %v893
      %v895 = vpop.f32.mrb[0].mxu0
      %v896 = vpop.f32.mrb[0].mxu0
      %v897 = vadd.f32 %v301, %v896
      %v898 = vpop.f32.mrb[0].mxu0
      %899 = vmatprep.mubr.bf16.mxu0 %v582
      %900 = vmatmul.mubr.bf16.gmra.mrb[0].mxu0 %v581
      %v901 = vpop.f32.mrb[0].mxu0
      %v902 = vadd.f32 %v301, %v901
      %v903 = vpop.f32.mrb[0].mxu0
      %v904 = vpop.f32.mrb[0].mxu0
      %v905 = vadd.f32 %v301, %v904
      %v906 = vpop.f32.mrb[0].mxu0
      %907 = vmatprep.mubr.bf16.mxu0 %v584
      %908 = vmatmul.mubr.bf16.gmra.mrb[0].mxu0 %v583
      %v909 = vpop.f32.mrb[0].mxu0
      %v910 = vadd.f32 %v301, %v909
      %v911 = vpop.f32.mrb[0].mxu0
      %v912 = vpop.f32.mrb[0].mxu0
      %v913 = vadd.f32 %v301, %v912
      %v914 = vpop.f32.mrb[0].mxu0
      %915 = vmatprep.mubr.bf16.mxu0 %v586
      %916 = vmatmul.mubr.bf16.gmra.mrb[0].mxu0 %v585
      %v917 = vpop.f32.mrb[0].mxu0
      %v918 = vadd.f32 %v301, %v917
      %v919 = vpop.f32.mrb[0].mxu0
      %v920 = vpop.f32.mrb[0].mxu0
      %v921 = vadd.f32 %v301, %v920
      %v922 = vpop.f32.mrb[0].mxu0
      %923 = vmatprep.mubr.bf16.mxu0 %v588
      %924 = vmatmul.mubr.bf16.gmra.mrb[0].mxu0 %v587
      %v925 = vpop.f32.mrb[0].mxu0
      %v926 = vadd.f32 %v301, %v925
      %v927 = vpop.f32.mrb[0].mxu0
      %v928 = vpop.f32.mrb[0].mxu0
      %v929 = vadd.f32 %v301, %v928
      %v930 = vpop.f32.mrb[0].mxu0
      %931 = vmatprep.mubr.bf16.mxu0 %v590
      %932 = vmatmul.mubr.bf16.gmra.mrb[0].mxu0 %v589
      %v933 = vpop.f32.mrb[0].mxu0
      %v934 = vadd.f32 %v301, %v933
      %v935 = vpop.f32.mrb[0].mxu0
      %v936 = vpop.f32.mrb[0].mxu0
      %v937 = vadd.f32 %v301, %v936
      %v938 = vpop.f32.mrb[0].mxu0
      %939 = vmatprep.mubr.bf16.mxu0 %v592
      %940 = vmatmul.mubr.bf16.gmra.mrb[0].mxu0 %v591
      %v941 = vpop.f32.mrb[0].mxu0
      %v942 = vadd.f32 %v301, %v941
      %v943 = vpop.f32.mrb[0].mxu0
      %v944 = vpop.f32.mrb[0].mxu0
      %v945 = vadd.f32 %v301, %v944
      %v946 = vpop.f32.mrb[0].mxu0
      %947 = vmatprep.mubr.bf16.mxu0 %v594
      %948 = vmatmul.mubr.bf16.gmra.mrb[0].mxu0 %v593
      %v949 = vpop.f32.mrb[0].mxu0
      %v950 = vadd.f32 %v301, %v949
      %v951 = vpop.f32.mrb[0].mxu0
      %v952 = vpop.f32.mrb[0].mxu0
      %v953 = vadd.f32 %v301, %v952
      %v954 = vpop.f32.mrb[0].mxu0
      %955 = vmatprep.mubr.bf16.mxu0 %v596
      %956 = vmatmul.mubr.bf16.gmra.mrb[0].mxu0 %v595
      %v957 = vpop.f32.mrb[0].mxu0
      %v958 = vadd.f32 %v301, %v957
      %v959 = vpop.f32.mrb[0].mxu0
      %v960 = vpop.f32.mrb[0].mxu0
      %v961 = vadd.f32 %v301, %v960
      %v962 = vpop.f32.mrb[0].mxu0
      %963 = vmatprep.mubr.bf16.mxu0 %v598
      %964 = vmatmul.mubr.bf16.gmra.mrb[0].mxu0 %v597
      %v965 = vpop.f32.mrb[0].mxu0
      %v966 = vadd.f32 %v301, %v965
      %v967 = vpop.f32.mrb[0].mxu0
      %v968 = vpop.f32.mrb[0].mxu0
      %v969 = vadd.f32 %v301, %v968
      %v970 = vpop.f32.mrb[0].mxu0
      %971 = vmatprep.mubr.bf16.mxu0 %v600
      %972 = vmatmul.mubr.bf16.gmra.mrb[0].mxu0 %v599
      %v973 = vpop.f32.mrb[0].mxu0
      %v974 = vadd.f32 %v301, %v973
      %v975 = vpop.f32.mrb[0].mxu0
      %v976 = vpop.f32.mrb[0].mxu0
      %v977 = vadd.f32 %v301, %v976
      %v978 = vpop.f32.mrb[0].mxu0
      %979 = vmatprep.mubr.bf16.mxu0 %v602
      %980 = vmatmul.mubr.bf16.gmra.mrb[0].mxu0 %v601
      %v981 = vpop.f32.mrb[0].mxu0
      %v982 = vadd.f32 %v301, %v981
      %v983 = vpop.f32.mrb[0].mxu0
      %v984 = vpop.f32.mrb[0].mxu0
      %v985 = vadd.f32 %v301, %v984
      %v986 = vpop.f32.mrb[0].mxu0
      %987 = vmatprep.mubr.bf16.mxu0 %v604
      %988 = vmatmul.mubr.bf16.gmra.mrb[0].mxu0 %v603
      %v989 = vpop.f32.mrb[0].mxu0
      %v990 = vadd.f32 %v301, %v989
      %v991 = vpop.f32.mrb[0].mxu0
      %v992 = vpop.f32.mrb[0].mxu0
      %v993 = vadd.f32 %v301, %v992
      %v994 = vpop.f32.mrb[0].mxu0
      %995 = vmatprep.mubr.bf16.mxu0 %v606
      %996 = vmatmul.mubr.bf16.gmra.mrb[0].mxu0 %v605
      %v997 = vpop.f32.mrb[0].mxu0
      %v998 = vadd.f32 %v301, %v997
      %v999 = vpop.f32.mrb[0].mxu0
      %v1000 = vpop.f32.mrb[0].mxu0
      %v1001 = vadd.f32 %v301, %v1000
      %v1002 = vpop.f32.mrb[0].mxu0
      %1003 = vmatprep.mubr.bf16.mxu0 %v608
      %1004 = vmatmul.mubr.bf16.gmra.mrb[0].mxu0 %v607
      %v1005 = vpop.f32.mrb[0].mxu0
      %v1006 = vadd.f32 %v301, %v1005
      %v1007 = vpop.f32.mrb[0].mxu0
      %v1008 = vpop.f32.mrb[0].mxu0
      %v1009 = vadd.f32 %v301, %v1008
      %v1010 = vpop.f32.mrb[0].mxu0
      %1011 = vmatprep.mubr.bf16.mxu0 %v610
      %1012 = vmatmul.mubr.bf16.gmra.mrb[0].mxu0 %v609
      %v1013 = vpop.f32.mrb[0].mxu0
      %v1014 = vadd.f32 %v301, %v1013
      %v1015 = vpop.f32.mrb[0].mxu0
      %v1016 = vpop.f32.mrb[0].mxu0
      %v1017 = vadd.f32 %v301, %v1016
      %v1018 = vpop.f32.mrb[0].mxu0
      %1019 = vmatprep.mubr.bf16.mxu0 %v612
      %1020 = vmatmul.mubr.bf16.gmra.mrb[0].mxu0 %v611
      %v1021 = vpop.f32.mrb[0].mxu0
      %v1022 = vadd.f32 %v301, %v1021
      %v1023 = vpop.f32.mrb[0].mxu0
      %v1024 = vpop.f32.mrb[0].mxu0
      %v1025 = vadd.f32 %v301, %v1024
      %v1026 = vpop.f32.mrb[0].mxu0
      %1027 = vmatprep.mubr.bf16.mxu0 %v614
      %1028 = vmatmul.mubr.bf16.gmra.mrb[0].mxu0 %v613
      %v1029 = vpop.f32.mrb[0].mxu0
      %v1030 = vadd.f32 %v301, %v1029
      %v1031 = vpop.f32.mrb[0].mxu0
      %v1032 = vpop.f32.mrb[0].mxu0
      %v1033 = vadd.f32 %v301, %v1032
      %v1034 = vpop.f32.mrb[0].mxu0
      %1035 = vmatprep.mubr.bf16.mxu0 %v616
      %1036 = vmatmul.mubr.bf16.gmra.mrb[0].mxu0 %v615
      %v1037 = vpop.f32.mrb[0].mxu0
      %v1038 = vadd.f32 %v301, %v1037
      %v1039 = vpop.f32.mrb[0].mxu0
      %v1040 = vpop.f32.mrb[0].mxu0
      %v1041 = vadd.f32 %v301, %v1040
      %v1042 = vpop.f32.mrb[0].mxu0
      %1043 = vmatprep.mubr.bf16.mxu0 %v618
      %1044 = vmatmul.mubr.bf16.gmra.mrb[0].mxu0 %v617
      %v1045 = vpop.f32.mrb[0].mxu0
      %v1046 = vadd.f32 %v301, %v1045
      %v1047 = vpop.f32.mrb[0].mxu0
      %v1048 = vpop.f32.mrb[0].mxu0
      %v1049 = vadd.f32 %v301, %v1048
      %v1050 = vpop.f32.mrb[0].mxu0
      %1051 = vmatprep.mubr.bf16.mxu0 %v620
      %1052 = vmatmul.mubr.bf16.gmra.mrb[0].mxu0 %v619
      %v1053 = vpop.f32.mrb[0].mxu0
      %v1054 = vadd.f32 %v301, %v1053
      %v1055 = vpop.f32.mrb[0].mxu0
      %v1056 = vpop.f32.mrb[0].mxu0
      %v1057 = vadd.f32 %v301, %v1056
      %v1058 = vpop.f32.mrb[0].mxu0
      %1059 = vmatprep.mubr.bf16.mxu0 %v622
      %1060 = vmatmul.mubr.bf16.gmra.mrb[0].mxu0 %v621
      %v1061 = vpop.f32.mrb[0].mxu0
      %v1062 = vadd.f32 %v301, %v1061
      %v1063 = vpop.f32.mrb[0].mxu0
      %v1064 = vpop.f32.mrb[0].mxu0
      %v1065 = vadd.f32 %v301, %v1064
      %v1066 = vpop.f32.mrb[0].mxu0
      %1067 = vmatprep.mubr.bf16.mxu0 %v624
      %1068 = vmatmul.mubr.bf16.gmra.mrb[0].mxu0 %v623
      %v1069 = vpop.f32.mrb[0].mxu0
      %v1070 = vadd.f32 %v301, %v1069
      %v1071 = vpop.f32.mrb[0].mxu0
      %v1072 = vpop.f32.mrb[0].mxu0
      %v1073 = vadd.f32 %v301, %v1072
      %v1074 = vpop.f32.mrb[0].mxu0
      %1075 = vmatprep.mubr.bf16.mxu0 %v626
      %1076 = vmatmul.mubr.bf16.gmra.mrb[0].mxu0 %v625
      %v1077 = vpop.f32.mrb[0].mxu0
      %v1078 = vadd.f32 %v301, %v1077
      %v1079 = vpop.f32.mrb[0].mxu0
      %v1080 = vpop.f32.mrb[0].mxu0
      %v1081 = vadd.f32 %v301, %v1080
      %v1082 = vpop.f32.mrb[0].mxu0
      %1083 = vmatprep.mubr.bf16.mxu0 %v628
      %1084 = vmatmul.mubr.bf16.gmra.mrb[0].mxu0 %v627
      %v1085 = vpop.f32.mrb[0].mxu0
      %v1086 = vadd.f32 %v301, %v1085
      %v1087 = vpop.f32.mrb[0].mxu0
      %v1088 = vpop.f32.mrb[0].mxu0
      %v1089 = vadd.f32 %v301, %v1088
      %v1090 = vpop.f32.mrb[0].mxu0
      %1091 = vmatprep.mubr.bf16.mxu0 %v630
      %1092 = vmatmul.mubr.bf16.gmra.mrb[0].mxu0 %v629
      %v1093 = vpop.f32.mrb[0].mxu0
      %v1094 = vadd.f32 %v301, %v1093
      %v1095 = vpop.f32.mrb[0].mxu0
      %v1096 = vpop.f32.mrb[0].mxu0
      %v1097 = vadd.f32 %v301, %v1096
      %v1098 = vpop.f32.mrb[0].mxu0
      %1099 = vmatprep.mubr.bf16.mxu0 %v632
      %1100 = vmatmul.mubr.bf16.gmra.mrb[0].mxu0 %v631
      %v1101 = vpop.f32.mrb[0].mxu0
      %v1102 = vadd.f32 %v301, %v1101
      %v1103 = vpop.f32.mrb[0].mxu0
      %v1104 = vpop.f32.mrb[0].mxu0
      %v1105 = vadd.f32 %v301, %v1104
      %v1106 = vpop.f32.mrb[0].mxu0
      %1107 = vmatprep.mubr.bf16.mxu0 %v634
      %1108 = vmatmul.mubr.bf16.gmra.mrb[0].mxu0 %v633
      %v1109 = vpop.f32.mrb[0].mxu0
      %v1110 = vadd.f32 %v301, %v1109
      %v1111 = vpop.f32.mrb[0].mxu0
      %v1112 = vpop.f32.mrb[0].mxu0
      %v1113 = vadd.f32 %v301, %v1112
      %v1114 = vpop.f32.mrb[0].mxu0
      %1115 = vmatprep.mubr.bf16.mxu0 %v636
      %1116 = vmatmul.mubr.bf16.gmra.mrb[0].mxu0 %v635
      %v1117 = vpop.f32.mrb[0].mxu0
      %v1118 = vadd.f32 %v301, %v1117
      %v1119 = vpop.f32.mrb[0].mxu0
      %v1120 = vpop.f32.mrb[0].mxu0
      %v1121 = vadd.f32 %v301, %v1120
      %v1122 = vpop.f32.mrb[0].mxu0
      %1123 = vmatprep.mubr.bf16.mxu0 %v638
      %1124 = vmatmul.mubr.bf16.gmra.mrb[0].mxu0 %v637
      %v1125 = vpop.f32.mrb[0].mxu0
      %v1126 = vadd.f32 %v301, %v1125
      %v1127 = vpop.f32.mrb[0].mxu0
      %v1128 = vpop.f32.mrb[0].mxu0
      %v1129 = vadd.f32 %v301, %v1128
      %v1130 = vpop.f32.mrb[0].mxu0
      %1131 = vmatprep.mubr.bf16.mxu0 %v640
      %1132 = vmatmul.mubr.bf16.gmra.mrb[0].mxu0 %v639
      %v1133 = vpop.f32.mrb[0].mxu0
      %v1134 = vadd.f32 %v301, %v1133
      %v1135 = vpop.f32.mrb[0].mxu0
      %v1136 = vpop.f32.mrb[0].mxu0
      %v1137 = vadd.f32 %v301, %v1136
      %v1138 = vpop.f32.mrb[0].mxu0
      %1139 = vmatprep.mubr.bf16.mxu0 %v642
      %1140 = vmatmul.mubr.bf16.gmra.mrb[0].mxu0 %v641
      %v1141 = vpop.f32.mrb[0].mxu0
      %v1142 = vadd.f32 %v301, %v1141
      %v1143 = vpop.f32.mrb[0].mxu0
      %v1144 = vpop.f32.mrb[0].mxu0
      %v1145 = vadd.f32 %v301, %v1144
      %v1146 = vpop.f32.mrb[0].mxu0
      %1147 = vmatprep.mubr.bf16.mxu0 %v644
      %1148 = vmatmul.mubr.bf16.gmra.mrb[0].mxu0 %v643
      %v1149 = vpop.f32.mrb[0].mxu0
      %v1150 = vadd.f32 %v301, %v1149
      %v1151 = vpop.f32.mrb[0].mxu0
      %v1152 = vpop.f32.mrb[0].mxu0
      %v1153 = vadd.f32 %v301, %v1152
      %v1154 = vpop.f32.mrb[0].mxu0
      %1155 = vmatprep.mubr.bf16.mxu0 %v646
      %1156 = vmatmul.mubr.bf16.gmra.mrb[0].mxu0 %v645
      %v1157 = vpop.f32.mrb[0].mxu0
      %v1158 = vadd.f32 %v301, %v1157
      %v1159 = vpop.f32.mrb[0].mxu0
      %v1160 = vpop.f32.mrb[0].mxu0
      %v1161 = vadd.f32 %v301, %v1160
      %v1162 = vpop.f32.mrb[0].mxu0
      %1163 = vmatprep.mubr.bf16.mxu0 %v648
      %1164 = vmatmul.mubr.bf16.gmra.mrb[0].mxu0 %v647
      %v1165 = vpop.f32.mrb[0].mxu0
      %v1166 = vadd.f32 %v301, %v1165
      %v1167 = vpop.f32.mrb[0].mxu0
      %v1168 = vpop.f32.mrb[0].mxu0
      %v1169 = vadd.f32 %v301, %v1168
      %v1170 = vpop.f32.mrb[0].mxu0
      %1171 = vmatprep.mubr.bf16.mxu0 %v650
      %1172 = vmatmul.mubr.bf16.gmra.mrb[0].mxu0 %v649
      %v1173 = vpop.f32.mrb[0].mxu0
      %v1174 = vadd.f32 %v301, %v1173
      %v1175 = vpop.f32.mrb[0].mxu0
      %v1176 = vpop.f32.mrb[0].mxu0
      %v1177 = vadd.f32 %v301, %v1176
      %v1178 = vpop.f32.mrb[0].mxu0
      %1179 = vmatprep.mubr.bf16.mxu0 %v652
      %1180 = vmatmul.mubr.bf16.gmra.mrb[0].mxu0 %v651
      %v1181 = vpop.f32.mrb[0].mxu0
      %v1182 = vadd.f32 %v301, %v1181
      %v1183 = vpop.f32.mrb[0].mxu0
      %v1184 = vpop.f32.mrb[0].mxu0
      %v1185 = vadd.f32 %v301, %v1184
      %v1186 = vpop.f32.mrb[0].mxu0
      %1187 = vmatprep.mubr.bf16.mxu0 %v654
      %1188 = vmatmul.mubr.bf16.gmra.mrb[0].mxu0 %v653
      %v1189 = vpop.f32.mrb[0].mxu0
      %v1190 = vadd.f32 %v301, %v1189
      %v1191 = vpop.f32.mrb[0].mxu0
      %v1192 = vpop.f32.mrb[0].mxu0
      %v1193 = vadd.f32 %v301, %v1192
      %v1194 = vpop.f32.mrb[0].mxu0
      %1195 = vmatprep.mubr.bf16.mxu0 %v656
      %1196 = vmatmul.mubr.bf16.gmra.mrb[0].mxu0 %v655
      %v1197 = vpop.f32.mrb[0].mxu0
      %v1198 = vadd.f32 %v301, %v1197
      %v1199 = vpop.f32.mrb[0].mxu0
      %v1200 = vpop.f32.mrb[0].mxu0
      %v1201 = vadd.f32 %v301, %v1200
      %v1202 = vpop.f32.mrb[0].mxu0
      %1203 = vmatprep.mubr.bf16.mxu0 %v658
      %1204 = vmatmul.mubr.bf16.gmra.mrb[0].mxu0 %v657
      %v1205 = vpop.f32.mrb[0].mxu0
      %v1206 = vadd.f32 %v301, %v1205
      %v1207 = vpop.f32.mrb[0].mxu0
      %v1208 = vpop.f32.mrb[0].mxu0
      %v1209 = vadd.f32 %v301, %v1208
      %v1210 = vpop.f32.mrb[0].mxu0
      %1211 = vmatprep.mubr.bf16.mxu0 %v660
      %1212 = vmatmul.mubr.bf16.gmra.mrb[0].mxu0 %v659
      %v1213 = vpop.f32.mrb[0].mxu0
      %v1214 = vadd.f32 %v301, %v1213
      %v1215 = vpop.f32.mrb[0].mxu0
      %v1216 = vpop.f32.mrb[0].mxu0
      %v1217 = vadd.f32 %v301, %v1216
      %v1218 = vpop.f32.mrb[0].mxu0
      %1219 = vmatprep.mubr.bf16.mxu0 %v662
      %1220 = vmatmul.mubr.bf16.gmra.mrb[0].mxu0 %v661
      %v1221 = vpop.f32.mrb[0].mxu0
      %v1222 = vadd.f32 %v301, %v1221
      %v1223 = vpop.f32.mrb[0].mxu0
      %v1224 = vpop.f32.mrb[0].mxu0
      %v1225 = vadd.f32 %v301, %v1224
      %v1226 = vpop.f32.mrb[0].mxu0
      %1227 = vmatprep.mubr.bf16.mxu0 %v664
      %1228 = vmatmul.mubr.bf16.gmra.mrb[0].mxu0 %v663
      %v1229 = vpop.f32.mrb[0].mxu0
      %v1230 = vadd.f32 %v301, %v1229
      %v1231 = vpop.f32.mrb[0].mxu0
      %v1232 = vpop.f32.mrb[0].mxu0
      %v1233 = vadd.f32 %v301, %v1232
      %v1234 = vpop.f32.mrb[0].mxu0
      %1235 = vmatprep.mubr.bf16.mxu0 %v666
      %1236 = vmatmul.mubr.bf16.gmra.mrb[0].mxu0 %v665
      %v1237 = vpop.f32.mrb[0].mxu0
      %v1238 = vadd.f32 %v301, %v1237
      %v1239 = vpop.f32.mrb[0].mxu0
      %v1240 = vpop.f32.mrb[0].mxu0
      %v1241 = vadd.f32 %v301, %v1240
      %v1242 = vpop.f32.mrb[0].mxu0
      %1243 = vmatprep.mubr.bf16.mxu0 %v668
      %1244 = vmatmul.mubr.bf16.gmra.mrb[0].mxu0 %v667
      %v1245 = vpop.f32.mrb[0].mxu0
      %v1246 = vadd.f32 %v301, %v1245
      %v1247 = vpop.f32.mrb[0].mxu0
      %v1248 = vpop.f32.mrb[0].mxu0
      %v1249 = vadd.f32 %v301, %v1248
      %v1250 = vpop.f32.mrb[0].mxu0
      %1251 = vmatprep.mubr.bf16.mxu0 %v670
      %1252 = vmatmul.mubr.bf16.gmra.mrb[0].mxu0 %v669
      %v1253 = vpop.f32.mrb[0].mxu0
      %v1254 = vadd.f32 %v301, %v1253
      %v1255 = vpop.f32.mrb[0].mxu0
      %v1256 = vpop.f32.mrb[0].mxu0
      %v1257 = vadd.f32 %v301, %v1256
      %v1258 = vpop.f32.mrb[0].mxu0
      %1259 = vdwg.mxu0
      %vm1260 = vcmp.ge.f32.partialorder %v894, 0.0
      %vm1261 = vcmp.ge.f32.partialorder %v897, 0.0
      %vm1262 = vcmp.ge.f32.partialorder %v902, 0.0
      %vm1263 = vcmp.ge.f32.partialorder %v905, 0.0
      %vm1264 = vcmp.ge.f32.partialorder %v910, 0.0
      %vm1265 = vcmp.ge.f32.partialorder %v913, 0.0
      %vm1266 = vcmp.ge.f32.partialorder %v918, 0.0
      %vm1267 = vcmp.ge.f32.partialorder %v921, 0.0
      %vm1268 = vcmp.ge.f32.partialorder %v926, 0.0
      %vm1269 = vcmp.ge.f32.partialorder %v929, 0.0
      %vm1270 = vcmp.ge.f32.partialorder %v934, 0.0
      %vm1271 = vcmp.ge.f32.partialorder %v937, 0.0
      %vm1272 = vcmp.ge.f32.partialorder %v942, 0.0
      %vm1273 = vcmp.ge.f32.partialorder %v945, 0.0
      %vm1274 = vcmp.ge.f32.partialorder %v950, 0.0
      %vm1275 = vcmp.ge.f32.partialorder %v953, 0.0
      %vm1276 = vcmp.ge.f32.partialorder %v958, 0.0
      %vm1277 = vcmp.ge.f32.partialorder %v961, 0.0
      %vm1278 = vcmp.ge.f32.partialorder %v966, 0.0
      %vm1279 = vcmp.ge.f32.partialorder %v969, 0.0
      %vm1280 = vcmp.ge.f32.partialorder %v974, 0.0
      %vm1281 = vcmp.ge.f32.partialorder %v977, 0.0
      %vm1282 = vcmp.ge.f32.partialorder %v982, 0.0
      %vm1283 = vcmp.ge.f32.partialorder %v985, 0.0
      %vm1284 = vcmp.ge.f32.partialorder %v990, 0.0
      %vm1285 = vcmp.ge.f32.partialorder %v993, 0.0
      %vm1286 = vcmp.ge.f32.partialorder %v998, 0.0
      %vm1287 = vcmp.ge.f32.partialorder %v1001, 0.0
      %vm1288 = vcmp.ge.f32.partialorder %v1006, 0.0
      %vm1289 = vcmp.ge.f32.partialorder %v1009, 0.0
      %vm1290 = vcmp.ge.f32.partialorder %v1014, 0.0
      %vm1291 = vcmp.ge.f32.partialorder %v1017, 0.0
      %vm1292 = vcmp.ge.f32.partialorder %v1022, 0.0
      %vm1293 = vcmp.ge.f32.partialorder %v1025, 0.0
      %vm1294 = vcmp.ge.f32.partialorder %v1030, 0.0
      %vm1295 = vcmp.ge.f32.partialorder %v1033, 0.0
      %vm1296 = vcmp.ge.f32.partialorder %v1038, 0.0
      %vm1297 = vcmp.ge.f32.partialorder %v1041, 0.0
      %vm1298 = vcmp.ge.f32.partialorder %v1046, 0.0
      %vm1299 = vcmp.ge.f32.partialorder %v1049, 0.0
      %vm1300 = vcmp.ge.f32.partialorder %v1054, 0.0
      %vm1301 = vcmp.ge.f32.partialorder %v1057, 0.0
      %vm1302 = vcmp.ge.f32.partialorder %v1062, 0.0
      %vm1303 = vcmp.ge.f32.partialorder %v1065, 0.0
      %vm1304 = vcmp.ge.f32.partialorder %v1070, 0.0
      %vm1305 = vcmp.ge.f32.partialorder %v1073, 0.0
      %vm1306 = vcmp.ge.f32.partialorder %v1078, 0.0
      %vm1307 = vcmp.ge.f32.partialorder %v1081, 0.0
      %vm1308 = vcmp.ge.f32.partialorder %v1086, 0.0
      %vm1309 = vcmp.ge.f32.partialorder %v1089, 0.0
      %vm1310 = vcmp.ge.f32.partialorder %v1094, 0.0
      %vm1311 = vcmp.ge.f32.partialorder %v1097, 0.0
      %vm1312 = vcmp.ge.f32.partialorder %v1102, 0.0
      %vm1313 = vcmp.ge.f32.partialorder %v1105, 0.0
      %vm1314 = vcmp.ge.f32.partialorder %v1110, 0.0
      %vm1315 = vcmp.ge.f32.partialorder %v1113, 0.0
      %vm1316 = vcmp.ge.f32.partialorder %v1118, 0.0
      %vm1317 = vcmp.ge.f32.partialorder %v1121, 0.0
      %vm1318 = vcmp.ge.f32.partialorder %v1126, 0.0
      %vm1319 = vcmp.ge.f32.partialorder %v1129, 0.0
      %vm1320 = vcmp.ge.f32.partialorder %v1134, 0.0
      %vm1321 = vcmp.ge.f32.partialorder %v1137, 0.0
      %vm1322 = vcmp.ge.f32.partialorder %v1142, 0.0
      %vm1323 = vcmp.ge.f32.partialorder %v1145, 0.0
      %vm1324 = vcmp.ge.f32.partialorder %v1150, 0.0
      %vm1325 = vcmp.ge.f32.partialorder %v1153, 0.0
      %vm1326 = vcmp.ge.f32.partialorder %v1158, 0.0
      %vm1327 = vcmp.ge.f32.partialorder %v1161, 0.0
      %vm1328 = vcmp.ge.f32.partialorder %v1166, 0.0
      %vm1329 = vcmp.ge.f32.partialorder %v1169, 0.0
      %vm1330 = vcmp.ge.f32.partialorder %v1174, 0.0
      %vm1331 = vcmp.ge.f32.partialorder %v1177, 0.0
      %vm1332 = vcmp.ge.f32.partialorder %v1182, 0.0
      %vm1333 = vcmp.ge.f32.partialorder %v1185, 0.0
      %vm1334 = vcmp.ge.f32.partialorder %v1190, 0.0
      %vm1335 = vcmp.ge.f32.partialorder %v1193, 0.0
      %vm1336 = vcmp.ge.f32.partialorder %v1198, 0.0
      %vm1337 = vcmp.ge.f32.partialorder %v1201, 0.0
      %vm1338 = vcmp.ge.f32.partialorder %v1206, 0.0
      %vm1339 = vcmp.ge.f32.partialorder %v1209, 0.0
      %vm1340 = vcmp.ge.f32.partialorder %v1214, 0.0
      %vm1341 = vcmp.ge.f32.partialorder %v1217, 0.0
      %vm1342 = vcmp.ge.f32.partialorder %v1222, 0.0
      %vm1343 = vcmp.ge.f32.partialorder %v1225, 0.0
      %vm1344 = vcmp.ge.f32.partialorder %v1230, 0.0
      %vm1345 = vcmp.ge.f32.partialorder %v1233, 0.0
      %vm1346 = vcmp.ge.f32.partialorder %v1238, 0.0
      %vm1347 = vcmp.ge.f32.partialorder %v1241, 0.0
      %vm1348 = vcmp.ge.f32.partialorder %v1246, 0.0
      %vm1349 = vcmp.ge.f32.partialorder %v1249, 0.0
      %vm1350 = vcmp.ge.f32.partialorder %v1254, 0.0
      %vm1351 = vcmp.ge.f32.partialorder %v1257, 0.0
      %v1352 = vmul.f32 %v894, 0.01
      %v1353 = vmul.f32 %v897, 0.01
      %v1354 = vmul.f32 %v902, 0.01
      %v1355 = vmul.f32 %v905, 0.01
      %v1356 = vmul.f32 %v910, 0.01
      %v1357 = vmul.f32 %v913, 0.01
      %v1358 = vmul.f32 %v918, 0.01
      %v1359 = vmul.f32 %v921, 0.01
      %v1360 = vmul.f32 %v926, 0.01
      %v1361 = vmul.f32 %v929, 0.01
      %v1362 = vmul.f32 %v934, 0.01
      %v1363 = vmul.f32 %v937, 0.01
      %v1364 = vmul.f32 %v942, 0.01
      %v1365 = vmul.f32 %v945, 0.01
      %v1366 = vmul.f32 %v950, 0.01
      %v1367 = vmul.f32 %v953, 0.01
      %v1368 = vmul.f32 %v958, 0.01
      %v1369 = vmul.f32 %v961, 0.01
      %v1370 = vmul.f32 %v966, 0.01
      %v1371 = vmul.f32 %v969, 0.01
      %v1372 = vmul.f32 %v974, 0.01
      %v1373 = vmul.f32 %v977, 0.01
      %v1374 = vmul.f32 %v982, 0.01
      %v1375 = vmul.f32 %v985, 0.01
      %v1376 = vmul.f32 %v990, 0.01
      %v1377 = vmul.f32 %v993, 0.01
      %v1378 = vmul.f32 %v998, 0.01
      %v1379 = vmul.f32 %v1001, 0.01
      %v1380 = vmul.f32 %v1006, 0.01
      %v1381 = vmul.f32 %v1009, 0.01
      %v1382 = vmul.f32 %v1014, 0.01
      %v1383 = vmul.f32 %v1017, 0.01
      %v1384 = vmul.f32 %v1022, 0.01
      %v1385 = vmul.f32 %v1025, 0.01
      %v1386 = vmul.f32 %v1030, 0.01
      %v1387 = vmul.f32 %v1033, 0.01
      %v1388 = vmul.f32 %v1038, 0.01
      %v1389 = vmul.f32 %v1041, 0.01
      %v1390 = vmul.f32 %v1046, 0.01
      %v1391 = vmul.f32 %v1049, 0.01
      %v1392 = vmul.f32 %v1054, 0.01
      %v1393 = vmul.f32 %v1057, 0.01
      %v1394 = vmul.f32 %v1062, 0.01
      %v1395 = vmul.f32 %v1065, 0.01
      %v1396 = vmul.f32 %v1070, 0.01
      %v1397 = vmul.f32 %v1073, 0.01
      %v1398 = vmul.f32 %v1078, 0.01
      %v1399 = vmul.f32 %v1081, 0.01
      %v1400 = vmul.f32 %v1086, 0.01
      %v1401 = vmul.f32 %v1089, 0.01
      %v1402 = vmul.f32 %v1094, 0.01
      %v1403 = vmul.f32 %v1097, 0.01
      %v1404 = vmul.f32 %v1102, 0.01
      %v1405 = vmul.f32 %v1105, 0.01
      %v1406 = vmul.f32 %v1110, 0.01
      %v1407 = vmul.f32 %v1113, 0.01
      %v1408 = vmul.f32 %v1118, 0.01
      %v1409 = vmul.f32 %v1121, 0.01
      %v1410 = vmul.f32 %v1126, 0.01
      %v1411 = vmul.f32 %v1129, 0.01
      %v1412 = vmul.f32 %v1134, 0.01
      %v1413 = vmul.f32 %v1137, 0.01
      %v1414 = vmul.f32 %v1142, 0.01
      %v1415 = vmul.f32 %v1145, 0.01
      %v1416 = vmul.f32 %v1150, 0.01
      %v1417 = vmul.f32 %v1153, 0.01
      %v1418 = vmul.f32 %v1158, 0.01
      %v1419 = vmul.f32 %v1161, 0.01
      %v1420 = vmul.f32 %v1166, 0.01
      %v1421 = vmul.f32 %v1169, 0.01
      %v1422 = vmul.f32 %v1174, 0.01
      %v1423 = vmul.f32 %v1177, 0.01
      %v1424 = vmul.f32 %v1182, 0.01
      %v1425 = vmul.f32 %v1185, 0.01
      %v1426 = vmul.f32 %v1190, 0.01
      %v1427 = vmul.f32 %v1193, 0.01
      %v1428 = vmul.f32 %v1198, 0.01
      %v1429 = vmul.f32 %v1201, 0.01
      %v1430 = vmul.f32 %v1206, 0.01
      %v1431 = vmul.f32 %v1209, 0.01
      %v1432 = vmul.f32 %v1214, 0.01
      %v1433 = vmul.f32 %v1217, 0.01
      %v1434 = vmul.f32 %v1222, 0.01
      %v1435 = vmul.f32 %v1225, 0.01
      %v1436 = vmul.f32 %v1230, 0.01
      %v1437 = vmul.f32 %v1233, 0.01
      %v1438 = vmul.f32 %v1238, 0.01
      %v1439 = vmul.f32 %v1241, 0.01
      %v1440 = vmul.f32 %v1246, 0.01
      %v1441 = vmul.f32 %v1249, 0.01
      %v1442 = vmul.f32 %v1254, 0.01
      %v1443 = vmul.f32 %v1257, 0.01
      %v1444 = vsel %vm1260, %v894, %v1352
      %v1445 = vsel %vm1261, %v897, %v1353
      %v1446 = vsel %vm1262, %v902, %v1354
      %v1447 = vsel %vm1263, %v905, %v1355
      %v1448 = vsel %vm1264, %v910, %v1356
      %v1449 = vsel %vm1265, %v913, %v1357
      %v1450 = vsel %vm1266, %v918, %v1358
      %v1451 = vsel %vm1267, %v921, %v1359
      %v1452 = vsel %vm1268, %v926, %v1360
      %v1453 = vsel %vm1269, %v929, %v1361
      %v1454 = vsel %vm1270, %v934, %v1362
      %v1455 = vsel %vm1271, %v937, %v1363
      %v1456 = vsel %vm1272, %v942, %v1364
      %v1457 = vsel %vm1273, %v945, %v1365
      %v1458 = vsel %vm1274, %v950, %v1366
      %v1459 = vsel %vm1275, %v953, %v1367
      %v1460 = vsel %vm1276, %v958, %v1368
      %v1461 = vsel %vm1277, %v961, %v1369
      %v1462 = vsel %vm1278, %v966, %v1370
      %v1463 = vsel %vm1279, %v969, %v1371
      %v1464 = vsel %vm1280, %v974, %v1372
      %v1465 = vsel %vm1281, %v977, %v1373
      %v1466 = vsel %vm1282, %v982, %v1374
      %v1467 = vsel %vm1283, %v985, %v1375
      %v1468 = vsel %vm1284, %v990, %v1376
      %v1469 = vsel %vm1285, %v993, %v1377
      %v1470 = vsel %vm1286, %v998, %v1378
      %v1471 = vsel %vm1287, %v1001, %v1379
      %v1472 = vsel %vm1288, %v1006, %v1380
      %v1473 = vsel %vm1289, %v1009, %v1381
      %v1474 = vsel %vm1290, %v1014, %v1382
      %v1475 = vsel %vm1291, %v1017, %v1383
      %v1476 = vsel %vm1292, %v1022, %v1384
      %v1477 = vsel %vm1293, %v1025, %v1385
      %v1478 = vsel %vm1294, %v1030, %v1386
      %v1479 = vsel %vm1295, %v1033, %v1387
      %v1480 = vsel %vm1296, %v1038, %v1388
      %v1481 = vsel %vm1297, %v1041, %v1389
      %v1482 = vsel %vm1298, %v1046, %v1390
      %v1483 = vsel %vm1299, %v1049, %v1391
      %v1484 = vsel %vm1300, %v1054, %v1392
      %v1485 = vsel %vm1301, %v1057, %v1393
      %v1486 = vsel %vm1302, %v1062, %v1394
      %v1487 = vsel %vm1303, %v1065, %v1395
      %v1488 = vsel %vm1304, %v1070, %v1396
      %v1489 = vsel %vm1305, %v1073, %v1397
      %v1490 = vsel %vm1306, %v1078, %v1398
      %v1491 = vsel %vm1307, %v1081, %v1399
      %v1492 = vsel %vm1308, %v1086, %v1400
      %v1493 = vsel %vm1309, %v1089, %v1401
      %v1494 = vsel %vm1310, %v1094, %v1402
      %v1495 = vsel %vm1311, %v1097, %v1403
      %v1496 = vsel %vm1312, %v1102, %v1404
      %v1497 = vsel %vm1313, %v1105, %v1405
      %v1498 = vsel %vm1314, %v1110, %v1406
      %v1499 = vsel %vm1315, %v1113, %v1407
      %v1500 = vsel %vm1316, %v1118, %v1408
      %v1501 = vsel %vm1317, %v1121, %v1409
      %v1502 = vsel %vm1318, %v1126, %v1410
      %v1503 = vsel %vm1319, %v1129, %v1411
      %v1504 = vsel %vm1320, %v1134, %v1412
      %v1505 = vsel %vm1321, %v1137, %v1413
      %v1506 = vsel %vm1322, %v1142, %v1414
      %v1507 = vsel %vm1323, %v1145, %v1415
      %v1508 = vsel %vm1324, %v1150, %v1416
      %v1509 = vsel %vm1325, %v1153, %v1417
      %v1510 = vsel %vm1326, %v1158, %v1418
      %v1511 = vsel %vm1327, %v1161, %v1419
      %v1512 = vsel %vm1328, %v1166, %v1420
      %v1513 = vsel %vm1329, %v1169, %v1421
      %v1514 = vsel %vm1330, %v1174, %v1422
      %v1515 = vsel %vm1331, %v1177, %v1423
      %v1516 = vsel %vm1332, %v1182, %v1424
      %v1517 = vsel %vm1333, %v1185, %v1425
      %v1518 = vsel %vm1334, %v1190, %v1426
      %v1519 = vsel %vm1335, %v1193, %v1427
      %v1520 = vsel %vm1336, %v1198, %v1428
      %v1521 = vsel %vm1337, %v1201, %v1429
      %v1522 = vsel %vm1338, %v1206, %v1430
      %v1523 = vsel %vm1339, %v1209, %v1431
      %v1524 = vsel %vm1340, %v1214, %v1432
      %v1525 = vsel %vm1341, %v1217, %v1433
      %v1526 = vsel %vm1342, %v1222, %v1434
      %v1527 = vsel %vm1343, %v1225, %v1435
      %v1528 = vsel %vm1344, %v1230, %v1436
      %v1529 = vsel %vm1345, %v1233, %v1437
      %v1530 = vsel %vm1346, %v1238, %v1438
      %v1531 = vsel %vm1347, %v1241, %v1439
      %v1532 = vsel %vm1348, %v1246, %v1440
      %v1533 = vsel %vm1349, %v1249, %v1441
      %v1534 = vsel %vm1350, %v1254, %v1442
      %v1535 = vsel %vm1351, %v1257, %v1443
      %1536 = vst [vmem:[%s170] sm:$0xff] %v1444
      %1537 = vst [vmem:[%s170 + $0x8] sm:$0xff] %v1445
      %1538 = vst [vmem:[%s170 + $0x10] sm:$0xff] %v1446
      %1539 = vst [vmem:[%s170 + $0x18] sm:$0xff] %v1447
      %1540 = vst [vmem:[%s170 + $0x20] sm:$0xff] %v1448
      %1541 = vst [vmem:[%s170 + $0x28] sm:$0xff] %v1449
      %1542 = vst [vmem:[%s170 + $0x30] sm:$0xff] %v1450
      %1543 = vst [vmem:[%s170 + $0x38] sm:$0xff] %v1451
      %1544 = vst [vmem:[%s170 + $0x40] sm:$0xff] %v1452
      %1545 = vst [vmem:[%s170 + $0x48] sm:$0xff] %v1453
      %1546 = vst [vmem:[%s170 + $0x50] sm:$0xff] %v1454
      %1547 = vst [vmem:[%s170 + $0x58] sm:$0xff] %v1455
      %1548 = vst [vmem:[%s170 + $0x60] sm:$0xff] %v1456
      %1549 = vst [vmem:[%s170 + $0x68] sm:$0xff] %v1457
      %1550 = vst [vmem:[%s170 + $0x70] sm:$0xff] %v1458
      %1551 = vst [vmem:[%s170 + $0x78] sm:$0xff] %v1459
      %1552 = vst [vmem:[%s170 + $0x80] sm:$0xff] %v1460
      %1553 = vst [vmem:[%s170 + $0x88] sm:$0xff] %v1461
      %1554 = vst [vmem:[%s170 + $0x90] sm:$0xff] %v1462
      %1555 = vst [vmem:[%s170 + $0x98] sm:$0xff] %v1463
      %1556 = vst [vmem:[%s170 + $0xa0] sm:$0xff] %v1464
      %1557 = vst [vmem:[%s170 + $0xa8] sm:$0xff] %v1465
      %1558 = vst [vmem:[%s170 + $0xb0] sm:$0xff] %v1466
      %1559 = vst [vmem:[%s170 + $0xb8] sm:$0xff] %v1467
      %1560 = vst [vmem:[%s170 + $0xc0] sm:$0xff] %v1468
      %1561 = vst [vmem:[%s170 + $0xc8] sm:$0xff] %v1469
      %1562 = vst [vmem:[%s170 + $0xd0] sm:$0xff] %v1470
      %1563 = vst [vmem:[%s170 + $0xd8] sm:$0xff] %v1471
      %1564 = vst [vmem:[%s170 + $0xe0] sm:$0xff] %v1472
      %1565 = vst [vmem:[%s170 + $0xe8] sm:$0xff] %v1473
      %1566 = vst [vmem:[%s170 + $0xf0] sm:$0xff] %v1474
      %1567 = vst [vmem:[%s170 + $0xf8] sm:$0xff] %v1475
      %1568 = vst [vmem:[%s170 + $0x100] sm:$0xff] %v1476
      %1569 = vst [vmem:[%s170 + $0x108] sm:$0xff] %v1477
      %1570 = vst [vmem:[%s170 + $0x110] sm:$0xff] %v1478
      %1571 = vst [vmem:[%s170 + $0x118] sm:$0xff] %v1479
      %1572 = vst [vmem:[%s170 + $0x120] sm:$0xff] %v1480
      %1573 = vst [vmem:[%s170 + $0x128] sm:$0xff] %v1481
      %1574 = vst [vmem:[%s170 + $0x130] sm:$0xff] %v1482
      %1575 = vst [vmem:[%s170 + $0x138] sm:$0xff] %v1483
      %1576 = vst [vmem:[%s170 + $0x140] sm:$0xff] %v1484
      %1577 = vst [vmem:[%s170 + $0x148] sm:$0xff] %v1485
      %1578 = vst [vmem:[%s170 + $0x150] sm:$0xff] %v1486
      %1579 = vst [vmem:[%s170 + $0x158] sm:$0xff] %v1487
      %1580 = vst [vmem:[%s170 + $0x160] sm:$0xff] %v1488
      %1581 = vst [vmem:[%s170 + $0x168] sm:$0xff] %v1489
      %1582 = vst [vmem:[%s170 + $0x170] sm:$0xff] %v1490
      %1583 = vst [vmem:[%s170 + $0x178] sm:$0xff] %v1491
      %1584 = vst [vmem:[%s170 + $0x180] sm:$0xff] %v1492
      %1585 = vst [vmem:[%s170 + $0x188] sm:$0xff] %v1493
      %1586 = vst [vmem:[%s170 + $0x190] sm:$0xff] %v1494
      %1587 = vst [vmem:[%s170 + $0x198] sm:$0xff] %v1495
      %1588 = vst [vmem:[%s170 + $0x1a0] sm:$0xff] %v1496
      %1589 = vst [vmem:[%s170 + $0x1a8] sm:$0xff] %v1497
      %1590 = vst [vmem:[%s170 + $0x1b0] sm:$0xff] %v1498
      %1591 = vst [vmem:[%s170 + $0x1b8] sm:$0xff] %v1499
      %1592 = vst [vmem:[%s170 + $0x1c0] sm:$0xff] %v1500
      %1593 = vst [vmem:[%s170 + $0x1c8] sm:$0xff] %v1501
      %1594 = vst [vmem:[%s170 + $0x1d0] sm:$0xff] %v1502
      %1595 = vst [vmem:[%s170 + $0x1d8] sm:$0xff] %v1503
      %1596 = vst [vmem:[%s170 + $0x1e0] sm:$0xff] %v1504
      %1597 = vst [vmem:[%s170 + $0x1e8] sm:$0xff] %v1505
      %1598 = vst [vmem:[%s170 + $0x1f0] sm:$0xff] %v1506
      %1599 = vst [vmem:[%s170 + $0x1f8] sm:$0xff] %v1507
      %1600 = vst [vmem:[%s170 + $0x200] sm:$0xff] %v1508
      %1601 = vst [vmem:[%s170 + $0x208] sm:$0xff] %v1509
      %1602 = vst [vmem:[%s170 + $0x210] sm:$0xff] %v1510
      %1603 = vst [vmem:[%s170 + $0x218] sm:$0xff] %v1511
      %1604 = vst [vmem:[%s170 + $0x220] sm:$0xff] %v1512
      %1605 = vst [vmem:[%s170 + $0x228] sm:$0xff] %v1513
      %1606 = vst [vmem:[%s170 + $0x230] sm:$0xff] %v1514
      %1607 = vst [vmem:[%s170 + $0x238] sm:$0xff] %v1515
      %1608 = vst [vmem:[%s170 + $0x240] sm:$0xff] %v1516
      %1609 = vst [vmem:[%s170 + $0x248] sm:$0xff] %v1517
      %1610 = vst [vmem:[%s170 + $0x250] sm:$0xff] %v1518
      %1611 = vst [vmem:[%s170 + $0x258] sm:$0xff] %v1519
      %1612 = vst [vmem:[%s170 + $0x260] sm:$0xff] %v1520
      %1613 = vst [vmem:[%s170 + $0x268] sm:$0xff] %v1521
      %1614 = vst [vmem:[%s170 + $0x270] sm:$0xff] %v1522
      %1615 = vst [vmem:[%s170 + $0x278] sm:$0xff] %v1523
      %1616 = vst [vmem:[%s170 + $0x280] sm:$0xff] %v1524
      %1617 = vst [vmem:[%s170 + $0x288] sm:$0xff] %v1525
      %1618 = vst [vmem:[%s170 + $0x290] sm:$0xff] %v1526
      %1619 = vst [vmem:[%s170 + $0x298] sm:$0xff] %v1527
      %1620 = vst [vmem:[%s170 + $0x2a0] sm:$0xff] %v1528
      %1621 = vst [vmem:[%s170 + $0x2a8] sm:$0xff] %v1529
      %1622 = vst [vmem:[%s170 + $0x2b0] sm:$0xff] %v1530
      %1623 = vst [vmem:[%s170 + $0x2b8] sm:$0xff] %v1531
      %1624 = vst [vmem:[%s170 + $0x2c0] sm:$0xff] %v1532
      %1625 = vst [vmem:[%s170 + $0x2c8] sm:$0xff] %v1533
      %1626 = vst [vmem:[%s170 + $0x2d0] sm:$0xff] %v1534
      %1627 = vst [vmem:[%s170 + $0x2d8] sm:$0x1] %v1535
      %p1628 = scmp.lt.s32.totalorder %s14, 1
      %s1629 = scalar_select %p1628, %s14, 1
      %s1630 = smul.addr %s1629, 92
      %s1631 = smul.addr %s1630, 8
      %s1632 = scalar_lea.vmem %s3, %s1631
      // Predicated region
      $region33: #{_lambda_.4} parent=31 // pred_check
        %p1633 = pneg %p100
      $region34: #{_lambda_.4} parent=31 // pred_check_branch
        %1635 = sbr.rel (%p1633) target = $region36
      $region35: #{_lambda_.4} parent=31 // pred_region
        _
      $region36: #{_lambda_.4} parent=31 // pred_fallthru
        _
    $region32: #{_lambda_.4} parent=5 // pred_fallthru
      _
    %p1636 = scmp.le.s32.totalorder 2, %s9
    // Predicated region
    $region37: #{_lambda_.4} parent=5 // pred_check
      %p1637 = pneg %p1636
    $region38: #{_lambda_.4} parent=5 // pred_check_branch
      %1639 = sbr.rel (%p1637) target = $region40
    $region39: #{_lambda_.4} parent=5 // pred_region
      %s1640 = ssub.s32 %s9, 2
      // Predicated region
      $region41: #{_lambda_.4} parent=39 // pred_check
        %p1641 = pneg %p106
      $region42: #{_lambda_.4} parent=39 // pred_check_branch
        %1643 = sbr.rel (%p1641) target = $region44
      $region43: #{_lambda_.4} parent=39 // pred_region
        %p1644 = scmp.lt.s32.totalorder %s15, 1
        %s1645 = scalar_select %p1644, %s15, 1
        %s1646 = smul.addr %s1645, 92
        %s1647 = smul.addr %s1646, 8
        %s1648 = scalar_lea.vmem %s3, %s1647
      $region44: #{_lambda_.4} parent=39 // pred_fallthru
        _
    $region40: #{_lambda_.4} parent=5 // pred_fallthru
      _
  $region6: #{_lambda_.4} parent=0 // loop_footer
    %s13 = sadd.s32 1, %s9
  $region7: #{_lambda_.4} parent=0 // loop_footer_branch
    %8 = sbr.rel target = $region3
  $region8: #{_lambda_.4} parent=0 // loop_exit
    _

// kernel: _lambda_.5
$region0: #{_lambda_.5}
  #allocation0 [shape = 'u32[]', space=smem, size = 0x4, offset = 0x4, fixed_abs, tag = 'smem constant byte address 0x4 - core index']
  #allocation1 [shape = 'u32[144,128]{1,0:T(1,128)}', space=vmem, size = 0x12000, scoped, tag = 'internal scratch']
  %s0 = inlined_call_operand.vmem [shape: bf16[2,125,512], index: 0, kind: input, shape index: {}]
  %s1 = inlined_call_operand.vmem [shape: bf16[512,128], index: 1, kind: input, shape index: {}]
  %s2 = inlined_call_operand.vmem [shape: f32[1,128], index: 2, kind: input, shape index: {}]
  %s3 = inlined_call_operand.vmem [shape: f32[2,125,128], index: 3, kind: output, shape index: {}]
  %s4 = sld [smem:[#allocation0]]
  $region45: #{_lambda_.5} parent=0
    _
  %s6 = ssub.s32 1, %s4
  %s7 = scalar_select 0, %s6, %s4
  loop: start=0, step=1, limit=4
  $region2: #{_lambda_.5} parent=0 // loop_pre_header
    _
  $region3: #{_lambda_.5} parent=0 // loop_header
    %s9 = sphi 0, %s13
    %p10 = scmp.ge.s32.totalorder %s9, 4
    %s19 = sphi 0, %s21
    %s22 = sphi 0, %s19
    %s23 = sphi 0, %s22
    %s39 = sphi 0, %s23
    %s43 = sphi 0, %s43
    %s45 = sphi 0, %s43
    %s46 = sphi 0, %s45
    %s60 = sphi 0, %s46
    %s64 = sphi 0, %s64
    %s66 = sphi 0, %s64
    %s67 = sphi 0, %s66
    %s81 = sphi 0, %s67
    %s87 = sphi 0, %s89
    %s90 = sphi 0, %s87
    %s91 = sphi 0, %s90
    %s107 = sphi 0, %s91
  $region4: #{_lambda_.5} parent=0 // loop_header_branch
    %12 = sbr.rel (%p10) target = $region8
  $region5: #{_lambda_.5} parent=0 // loop_body
    %s14 = ssub.s32 %s9, 1
    %s15 = ssub.s32 %s9, 2
    %s16 = sadd.s32 %s9, 1
    %s17 = ssub.s32 %s9, %s16
    %p18 = scmp.eq.s32.totalorder %s17, 0
    %s20 = sadd.s32 %s19, 1
    %s21 = scalar_select %p18, %s19, %s20
    %p24 = pneg %p18
    %p25 = scmp.eq.s32.totalorder %s9, 1
    %p26 = por %p24, %p25
    %p27 = scmp.ne.s32.totalorder %s19, %s22
    %p28 = scmp.eq.s32.totalorder %s9, 0
    %p29 = por %p27, %p28
    %p30 = scmp.ne.s32.totalorder %s19, %s22
    %p31 = scmp.eq.s32.totalorder %s14, 1
    %p32 = por %p30, %p31
    %p33 = scmp.ne.s32.totalorder %s22, %s23
    %p34 = scmp.eq.s32.totalorder %s14, 0
    %p35 = por %p33, %p34
    %p36 = scmp.ne.s32.totalorder %s22, %s23
    %p37 = scmp.eq.s32.totalorder %s15, 1
    %p38 = por %p36, %p37
    %p40 = scmp.ne.s32.totalorder %s23, %s39
    %p41 = scmp.eq.s32.totalorder %s15, 0
    %p42 = por %p40, %p41
    %s44 = sadd.s32 %s43, 1
    %p47 = scmp.eq.s32.totalorder %s9, 1
    %p48 = scmp.ne.s32.totalorder %s43, %s45
    %p49 = scmp.eq.s32.totalorder %s9, 0
    %p50 = por %p48, %p49
    %p51 = scmp.ne.s32.totalorder %s43, %s45
    %p52 = scmp.eq.s32.totalorder %s14, 1
    %p53 = por %p51, %p52
    %p54 = scmp.ne.s32.totalorder %s45, %s46
    %p55 = scmp.eq.s32.totalorder %s14, 0
    %p56 = por %p54, %p55
    %p57 = scmp.ne.s32.totalorder %s45, %s46
    %p58 = scmp.eq.s32.totalorder %s15, 1
    %p59 = por %p57, %p58
    %p61 = scmp.ne.s32.totalorder %s46, %s60
    %p62 = scmp.eq.s32.totalorder %s15, 0
    %p63 = por %p61, %p62
    %s65 = sadd.s32 %s64, 1
    %p68 = scmp.eq.s32.totalorder %s9, 1
    %p69 = scmp.ne.s32.totalorder %s64, %s66
    %p70 = scmp.eq.s32.totalorder %s9, 0
    %p71 = por %p69, %p70
    %p72 = scmp.ne.s32.totalorder %s64, %s66
    %p73 = scmp.eq.s32.totalorder %s14, 1
    %p74 = por %p72, %p73
    %p75 = scmp.ne.s32.totalorder %s66, %s67
    %p76 = scmp.eq.s32.totalorder %s14, 0
    %p77 = por %p75, %p76
    %p78 = scmp.ne.s32.totalorder %s66, %s67
    %p79 = scmp.eq.s32.totalorder %s15, 1
    %p80 = por %p78, %p79
    %p82 = scmp.ne.s32.totalorder %s67, %s81
    %p83 = scmp.eq.s32.totalorder %s15, 0
    %p84 = por %p82, %p83
    %s85 = ssub.s32 %s9, %s16
    %p86 = scmp.eq.s32.totalorder %s85, 0
    %s88 = sadd.s32 %s87, 1
    %s89 = scalar_select %p86, %s87, %s88
    %p92 = pneg %p86
    %p93 = scmp.eq.s32.totalorder %s9, 1
    %p94 = por %p92, %p93
    %p95 = scmp.ne.s32.totalorder %s87, %s90
    %p96 = scmp.eq.s32.totalorder %s9, 0
    %p97 = por %p95, %p96
    %p98 = scmp.ne.s32.totalorder %s87, %s90
    %p99 = scmp.eq.s32.totalorder %s14, 1
    %p100 = por %p98, %p99
    %p101 = scmp.ne.s32.totalorder %s90, %s91
    %p102 = scmp.eq.s32.totalorder %s14, 0
    %p103 = por %p101, %p102
    %p104 = scmp.ne.s32.totalorder %s90, %s91
    %p105 = scmp.eq.s32.totalorder %s15, 1
    %p106 = por %p104, %p105
    %p108 = scmp.ne.s32.totalorder %s91, %s107
    %p109 = scmp.eq.s32.totalorder %s15, 0
    %p110 = por %p108, %p109
    %p111 = scmp.le.s32.totalorder 1, %s9
    %p112 = scmp.lt.s32.totalorder %s9, 3
    %p113 = pnand %p111, %p112
    %p114 = pneg %p113
    // Predicated region
    $region9: #{_lambda_.5} parent=5 // pred_check
      _
    $region10: #{_lambda_.5} parent=5 // pred_check_branch
      %116 = sbr.rel (%p113) target = $region12
    $region11: #{_lambda_.5} parent=5 // pred_region
      %s117 = ssub.s32 %s9, 1
      // Predicated region
      $region13: #{_lambda_.5} parent=11 // pred_check
        %p118 = pneg %p56
      $region14: #{_lambda_.5} parent=11 // pred_check_branch
        %120 = sbr.rel (%p118) target = $region16
      $region15: #{_lambda_.5} parent=11 // pred_region
        _
      $region16: #{_lambda_.5} parent=11 // pred_fallthru
        _
      // Predicated region
      $region17: #{_lambda_.5} parent=11 // pred_check
        %p121 = pneg %p77
      $region18: #{_lambda_.5} parent=11 // pred_check_branch
        %123 = sbr.rel (%p121) target = $region20
      $region19: #{_lambda_.5} parent=11 // pred_region
        _
      $region20: #{_lambda_.5} parent=11 // pred_fallthru
        _
    $region12: #{_lambda_.5} parent=5 // pred_fallthru
      _
    %p124 = scmp.lt.s32.totalorder %s9, 2
    // Predicated region
    $region21: #{_lambda_.5} parent=5 // pred_check
      %p125 = pneg %p124
    $region22: #{_lambda_.5} parent=5 // pred_check_branch
      %127 = sbr.rel (%p125) target = $region24
    $region23: #{_lambda_.5} parent=5 // pred_region
      // Predicated region
      $region25: #{_lambda_.5} parent=23 // pred_check
        %p128 = pneg %p29
      $region26: #{_lambda_.5} parent=23 // pred_check_branch
        %130 = sbr.rel (%p128) target = $region28
      $region27: #{_lambda_.5} parent=23 // pred_region
        %p131 = scmp.lt.s32.totalorder %s9, 1
        %s132 = scalar_select %p131, %s9, 1
        %s133 = smul.addr %s132, 64
        %s134 = smul.addr %s133, 4
        %s135 = scalar_lea.vmem %s0, %s134
      $region28: #{_lambda_.5} parent=23 // pred_fallthru
        _
    $region24: #{_lambda_.5} parent=5 // pred_fallthru
      _
    %p136 = scmp.le.s32.totalorder 1, %s9
    %p137 = scmp.lt.s32.totalorder %s9, 3
    %p138 = pnand %p136, %p137
    %p139 = pneg %p138
    // Predicated region
    $region29: #{_lambda_.5} parent=5 // pred_check
      _
    $region30: #{_lambda_.5} parent=5 // pred_check_branch
      %141 = sbr.rel (%p138) target = $region32
    $region31: #{_lambda_.5} parent=5 // pred_region
      %s142 = ssub.s32 %s9, 1
      %p143 = scmp.lt.s32.totalorder %s14, 1
      %s144 = scalar_select %p143, %s14, 1
      %s145 = smul.addr %s144, 64
      %s146 = smul.addr %s145, 4
      %s147 = scalar_lea.vmem %s0, %s146
      %p148 = pneg %p35
      %p149 = pneg %p32
      %p150 = pneg %p56
      %p151 = pneg %p53
      %p152 = pneg %p77
      %p153 = pneg %p74
      %p154 = pneg %p103
      %p155 = pneg %p100
      %p156 = scmp.lt.s32.totalorder %s14, 1
      %s157 = scalar_select %p156, %s14, 1
      %s158 = smul.addr %s157, 16
      %s159 = smul.addr %s158, 8
      %s160 = scalar_lea.vmem %s3, %s159
      %p161 = scmp.lt.s32.totalorder %s14, 1
      %s162 = scalar_select %p161, %s14, 1
      %s163 = smul.addr %s162, 64
      %s164 = smul.addr %s163, 4
      %s165 = scalar_lea.vmem %s0, %s164
      %p166 = scmp.lt.s32.totalorder %s14, 1
      %s167 = scalar_select %p166, %s14, 1
      %s168 = smul.addr %s167, 16
      %s169 = smul.addr %s168, 8
      %s170 = scalar_lea.vmem %s3, %s169
      %v172 = vld [vmem:[%s165] sm:$0xff]
      %v173 = vld [vmem:[%s165 + $0x8] sm:$0xff]
      %v174 = vld [vmem:[%s165 + $0x10] sm:$0xff]
      %v175 = vld [vmem:[%s165 + $0x18] sm:$0xff]
      %v176 = vld [vmem:[%s165 + $0x20] sm:$0xff]
      %v177 = vld [vmem:[%s165 + $0x28] sm:$0xff]
      %v178 = vld [vmem:[%s165 + $0x30] sm:$0xff]
      %v179 = vld [vmem:[%s165 + $0x38] sm:$0xff]
      %v180 = vld [vmem:[%s165 + $0x40] sm:$0xff]
      %v181 = vld [vmem:[%s165 + $0x48] sm:$0xff]
      %v182 = vld [vmem:[%s165 + $0x50] sm:$0xff]
      %v183 = vld [vmem:[%s165 + $0x58] sm:$0xff]
      %v184 = vld [vmem:[%s165 + $0x60] sm:$0xff]
      %v185 = vld [vmem:[%s165 + $0x68] sm:$0xff]
      %v186 = vld [vmem:[%s165 + $0x70] sm:$0xff]
      %v187 = vld [vmem:[%s165 + $0x78] sm:$0xff]
      %v188 = vld [vmem:[%s165 + $0x80] sm:$0xff]
      %v189 = vld [vmem:[%s165 + $0x88] sm:$0xff]
      %v190 = vld [vmem:[%s165 + $0x90] sm:$0xff]
      %v191 = vld [vmem:[%s165 + $0x98] sm:$0xff]
      %v192 = vld [vmem:[%s165 + $0xa0] sm:$0xff]
      %v193 = vld [vmem:[%s165 + $0xa8] sm:$0xff]
      %v194 = vld [vmem:[%s165 + $0xb0] sm:$0xff]
      %v195 = vld [vmem:[%s165 + $0xb8] sm:$0xff]
      %v196 = vld [vmem:[%s165 + $0xc0] sm:$0xff]
      %v197 = vld [vmem:[%s165 + $0xc8] sm:$0xff]
      %v198 = vld [vmem:[%s165 + $0xd0] sm:$0xff]
      %v199 = vld [vmem:[%s165 + $0xd8] sm:$0xff]
      %v200 = vld [vmem:[%s165 + $0xe0] sm:$0xff]
      %v201 = vld [vmem:[%s165 + $0xe8] sm:$0xff]
      %v202 = vld [vmem:[%s165 + $0xf0] sm:$0x77]
      %v203 = vld [vmem:[%s165 + $0xf8] sm:$0x77]
      %v204 = vld [vmem:[%s1] sm:$0xf]
      %v205 = vld [vmem:[%s1 + $0x4] sm:$0xf]
      %v206 = vld [vmem:[%s1 + $0x8] sm:$0xf]
      %v207 = vld [vmem:[%s1 + $0xc] sm:$0xf]
      %v208 = vld [vmem:[%s1 + $0x10] sm:$0xf]
      %v209 = vld [vmem:[%s1 + $0x14] sm:$0xf]
      %v210 = vld [vmem:[%s1 + $0x18] sm:$0xf]
      %v211 = vld [vmem:[%s1 + $0x1c] sm:$0xf]
      %v212 = vld [vmem:[%s1 + $0x20] sm:$0xf]
      %v213 = vld [vmem:[%s1 + $0x24] sm:$0xf]
      %v214 = vld [vmem:[%s1 + $0x28] sm:$0xf]
      %v215 = vld [vmem:[%s1 + $0x2c] sm:$0xf]
      %v216 = vld [vmem:[%s1 + $0x30] sm:$0xf]
      %v217 = vld [vmem:[%s1 + $0x34] sm:$0xf]
      %v218 = vld [vmem:[%s1 + $0x38] sm:$0xf]
      %v219 = vld [vmem:[%s1 + $0x3c] sm:$0xf]
      %v220 = vld [vmem:[%s1 + $0x40] sm:$0xf]
      %v221 = vld [vmem:[%s1 + $0x44] sm:$0xf]
      %v222 = vld [vmem:[%s1 + $0x48] sm:$0xf]
      %v223 = vld [vmem:[%s1 + $0x4c] sm:$0xf]
      %v224 = vld [vmem:[%s1 + $0x50] sm:$0xf]
      %v225 = vld [vmem:[%s1 + $0x54] sm:$0xf]
      %v226 = vld [vmem:[%s1 + $0x58] sm:$0xf]
      %v227 = vld [vmem:[%s1 + $0x5c] sm:$0xf]
      %v228 = vld [vmem:[%s1 + $0x60] sm:$0xf]
      %v229 = vld [vmem:[%s1 + $0x64] sm:$0xf]
      %v230 = vld [vmem:[%s1 + $0x68] sm:$0xf]
      %v231 = vld [vmem:[%s1 + $0x6c] sm:$0xf]
      %v232 = vld [vmem:[%s1 + $0x70] sm:$0xf]
      %v233 = vld [vmem:[%s1 + $0x74] sm:$0xf]
      %v234 = vld [vmem:[%s1 + $0x78] sm:$0xf]
      %v235 = vld [vmem:[%s1 + $0x7c] sm:$0xf]
      %v236 = vld [vmem:[%s1 + $0x80] sm:$0xf]
      %v237 = vld [vmem:[%s1 + $0x84] sm:$0xf]
      %v238 = vld [vmem:[%s1 + $0x88] sm:$0xf]
      %v239 = vld [vmem:[%s1 + $0x8c] sm:$0xf]
      %v240 = vld [vmem:[%s1 + $0x90] sm:$0xf]
      %v241 = vld [vmem:[%s1 + $0x94] sm:$0xf]
      %v242 = vld [vmem:[%s1 + $0x98] sm:$0xf]
      %v243 = vld [vmem:[%s1 + $0x9c] sm:$0xf]
      %v244 = vld [vmem:[%s1 + $0xa0] sm:$0xf]
      %v245 = vld [vmem:[%s1 + $0xa4] sm:$0xf]
      %v246 = vld [vmem:[%s1 + $0xa8] sm:$0xf]
      %v247 = vld [vmem:[%s1 + $0xac] sm:$0xf]
      %v248 = vld [vmem:[%s1 + $0xb0] sm:$0xf]
      %v249 = vld [vmem:[%s1 + $0xb4] sm:$0xf]
      %v250 = vld [vmem:[%s1 + $0xb8] sm:$0xf]
      %v251 = vld [vmem:[%s1 + $0xbc] sm:$0xf]
      %v252 = vld [vmem:[%s1 + $0xc0] sm:$0xf]
      %v253 = vld [vmem:[%s1 + $0xc4] sm:$0xf]
      %v254 = vld [vmem:[%s1 + $0xc8] sm:$0xf]
      %v255 = vld [vmem:[%s1 + $0xcc] sm:$0xf]
      %v256 = vld [vmem:[%s1 + $0xd0] sm:$0xf]
      %v257 = vld [vmem:[%s1 + $0xd4] sm:$0xf]
      %v258 = vld [vmem:[%s1 + $0xd8] sm:$0xf]
      %v259 = vld [vmem:[%s1 + $0xdc] sm:$0xf]
      %v260 = vld [vmem:[%s1 + $0xe0] sm:$0xf]
      %v261 = vld [vmem:[%s1 + $0xe4] sm:$0xf]
      %v262 = vld [vmem:[%s1 + $0xe8] sm:$0xf]
      %v263 = vld [vmem:[%s1 + $0xec] sm:$0xf]
      %v264 = vld [vmem:[%s1 + $0xf0] sm:$0xf]
      %v265 = vld [vmem:[%s1 + $0xf4] sm:$0xf]
      %v266 = vld [vmem:[%s1 + $0xf8] sm:$0xf]
      %v267 = vld [vmem:[%s1 + $0xfc] sm:$0xf]
      %v268 = vld [vmem:[%s2] sm:$0x1]
      %v270 = vlaneseq
      %v271 = vshrl.u32 %v270, 7
      %v272 = vsub.s32 0, %v271
      %v273 = vrot.slane %v268, %v272
      %v307 = vunpack.c.l.b16 %v172
      %v308 = vunpack.c.h.b16 %v172
      %v309 = vunpack.c.l.b16 %v173
      %v310 = vunpack.c.h.b16 %v173
      %v311 = vunpack.c.l.b16 %v174
      %v312 = vunpack.c.h.b16 %v174
      %v313 = vunpack.c.l.b16 %v175
      %v314 = vunpack.c.h.b16 %v175
      %v315 = vunpack.c.l.b16 %v176
      %v316 = vunpack.c.h.b16 %v176
      %v317 = vunpack.c.l.b16 %v177
      %v318 = vunpack.c.h.b16 %v177
      %v319 = vunpack.c.l.b16 %v178
      %v320 = vunpack.c.h.b16 %v178
      %v321 = vunpack.c.l.b16 %v179
      %v322 = vunpack.c.h.b16 %v179
      %v323 = vunpack.c.l.b16 %v180
      %v324 = vunpack.c.h.b16 %v180
      %v325 = vunpack.c.l.b16 %v181
      %v326 = vunpack.c.h.b16 %v181
      %v327 = vunpack.c.l.b16 %v182
      %v328 = vunpack.c.h.b16 %v182
      %v329 = vunpack.c.l.b16 %v183
      %v330 = vunpack.c.h.b16 %v183
      %v331 = vunpack.c.l.b16 %v184
      %v332 = vunpack.c.h.b16 %v184
      %v333 = vunpack.c.l.b16 %v185
      %v334 = vunpack.c.h.b16 %v185
      %v335 = vunpack.c.l.b16 %v186
      %v336 = vunpack.c.h.b16 %v186
      %v337 = vunpack.c.l.b16 %v187
      %v338 = vunpack.c.h.b16 %v187
      %v339 = vunpack.c.l.b16 %v188
      %v340 = vunpack.c.h.b16 %v188
      %v341 = vunpack.c.l.b16 %v189
      %v342 = vunpack.c.h.b16 %v189
      %v343 = vunpack.c.l.b16 %v190
      %v344 = vunpack.c.h.b16 %v190
      %v345 = vunpack.c.l.b16 %v191
      %v346 = vunpack.c.h.b16 %v191
      %v347 = vunpack.c.l.b16 %v192
      %v348 = vunpack.c.h.b16 %v192
      %v349 = vunpack.c.l.b16 %v193
      %v350 = vunpack.c.h.b16 %v193
      %v351 = vunpack.c.l.b16 %v194
      %v352 = vunpack.c.h.b16 %v194
      %v353 = vunpack.c.l.b16 %v195
      %v354 = vunpack.c.h.b16 %v195
      %v355 = vunpack.c.l.b16 %v196
      %v356 = vunpack.c.h.b16 %v196
      %v357 = vunpack.c.l.b16 %v197
      %v358 = vunpack.c.h.b16 %v197
      %v359 = vunpack.c.l.b16 %v198
      %v360 = vunpack.c.h.b16 %v198
      %v361 = vunpack.c.l.b16 %v199
      %v362 = vunpack.c.h.b16 %v199
      %v363 = vunpack.c.l.b16 %v200
      %v364 = vunpack.c.h.b16 %v200
      %v365 = vunpack.c.l.b16 %v201
      %v366 = vunpack.c.h.b16 %v201
      %v367 = vunpack.c.l.b16 %v202
      %v368 = vunpack.c.h.b16 %v202
      %v369 = vunpack.c.l.b16 %v203
      %v370 = vunpack.c.h.b16 %v203
      %v371 = vpack.c.b16 %v311, %v307
      %v372 = vpack.c.b16 %v312, %v308
      %v373 = vpack.c.b16 %v313, %v309
      %v374 = vpack.c.b16 %v314, %v310
      %v375 = vpack.c.b16 %v319, %v315
      %v376 = vpack.c.b16 %v320, %v316
      %v377 = vpack.c.b16 %v321, %v317
      %v378 = vpack.c.b16 %v322, %v318
      %v379 = vpack.c.b16 %v327, %v323
      %v380 = vpack.c.b16 %v328, %v324
      %v381 = vpack.c.b16 %v329, %v325
      %v382 = vpack.c.b16 %v330, %v326
      %v383 = vpack.c.b16 %v335, %v331
      %v384 = vpack.c.b16 %v336, %v332
      %v385 = vpack.c.b16 %v337, %v333
      %v386 = vpack.c.b16 %v338, %v334
      %v387 = vpack.c.b16 %v343, %v339
      %v388 = vpack.c.b16 %v344, %v340
      %v389 = vpack.c.b16 %v345, %v341
      %v390 = vpack.c.b16 %v346, %v342
      %v391 = vpack.c.b16 %v351, %v347
      %v392 = vpack.c.b16 %v352, %v348
      %v393 = vpack.c.b16 %v353, %v349
      %v394 = vpack.c.b16 %v354, %v350
      %v395 = vpack.c.b16 %v359, %v355
      %v396 = vpack.c.b16 %v360, %v356
      %v397 = vpack.c.b16 %v361, %v357
      %v398 = vpack.c.b16 %v362, %v358
      %v399 = vpack.c.b16 %v367, %v363
      %v400 = vpack.c.b16 %v368, %v364
      %v401 = vpack.c.b16 %v369, %v365
      %v402 = vpack.c.b16 %v370, %v366
      %v499 = vunpack.c.l.b16 %v204
      %v500 = vunpack.c.l.b16 %v205
      %v501 = vunpack.c.l.b16 %v206
      %v502 = vunpack.c.l.b16 %v207
      %v503 = vunpack.c.l.b16 %v208
      %v504 = vunpack.c.l.b16 %v209
      %v505 = vunpack.c.l.b16 %v210
      %v506 = vunpack.c.l.b16 %v211
      %v507 = vunpack.c.l.b16 %v212
      %v508 = vunpack.c.l.b16 %v213
      %v509 = vunpack.c.l.b16 %v214
      %v510 = vunpack.c.l.b16 %v215
      %v511 = vunpack.c.l.b16 %v216
      %v512 = vunpack.c.l.b16 %v217
      %v513 = vunpack.c.l.b16 %v218
      %v514 = vunpack.c.l.b16 %v219
      %v515 = vunpack.c.l.b16 %v220
      %v516 = vunpack.c.l.b16 %v221
      %v517 = vunpack.c.l.b16 %v222
      %v518 = vunpack.c.l.b16 %v223
      %v519 = vunpack.c.l.b16 %v224
      %v520 = vunpack.c.l.b16 %v225
      %v521 = vunpack.c.l.b16 %v226
      %v522 = vunpack.c.l.b16 %v227
      %v523 = vunpack.c.l.b16 %v228
      %v524 = vunpack.c.l.b16 %v229
      %v525 = vunpack.c.l.b16 %v230
      %v526 = vunpack.c.l.b16 %v231
      %v527 = vunpack.c.l.b16 %v232
      %v528 = vunpack.c.l.b16 %v233
      %v529 = vunpack.c.l.b16 %v234
      %v530 = vunpack.c.l.b16 %v235
      %v531 = vunpack.c.l.b16 %v236
      %v532 = vunpack.c.l.b16 %v237
      %v533 = vunpack.c.l.b16 %v238
      %v534 = vunpack.c.l.b16 %v239
      %v535 = vunpack.c.l.b16 %v240
      %v536 = vunpack.c.l.b16 %v241
      %v537 = vunpack.c.l.b16 %v242
      %v538 = vunpack.c.l.b16 %v243
      %v539 = vunpack.c.l.b16 %v244
      %v540 = vunpack.c.l.b16 %v245
      %v541 = vunpack.c.l.b16 %v246
      %v542 = vunpack.c.l.b16 %v247
      %v543 = vunpack.c.l.b16 %v248
      %v544 = vunpack.c.l.b16 %v249
      %v545 = vunpack.c.l.b16 %v250
      %v546 = vunpack.c.l.b16 %v251
      %v547 = vunpack.c.l.b16 %v252
      %v548 = vunpack.c.l.b16 %v253
      %v549 = vunpack.c.l.b16 %v254
      %v550 = vunpack.c.l.b16 %v255
      %v551 = vunpack.c.l.b16 %v256
      %v552 = vunpack.c.l.b16 %v257
      %v553 = vunpack.c.l.b16 %v258
      %v554 = vunpack.c.l.b16 %v259
      %v555 = vunpack.c.l.b16 %v260
      %v556 = vunpack.c.l.b16 %v261
      %v557 = vunpack.c.l.b16 %v262
      %v558 = vunpack.c.l.b16 %v263
      %v559 = vunpack.c.l.b16 %v264
      %v560 = vunpack.c.l.b16 %v265
      %v561 = vunpack.c.l.b16 %v266
      %v562 = vunpack.c.l.b16 %v267
      %v563 = vpack.c.b16 %v500, %v499
      %v564 = vpack.c.b16 %v502, %v501
      %v565 = vpack.c.b16 %v504, %v503
      %v566 = vpack.c.b16 %v506, %v505
      %v567 = vpack.c.b16 %v508, %v507
      %v568 = vpack.c.b16 %v510, %v509
      %v569 = vpack.c.b16 %v512, %v511
      %v570 = vpack.c.b16 %v514, %v513
      %v571 = vpack.c.b16 %v516, %v515
      %v572 = vpack.c.b16 %v518, %v517
      %v573 = vpack.c.b16 %v520, %v519
      %v574 = vpack.c.b16 %v522, %v521
      %v575 = vpack.c.b16 %v524, %v523
      %v576 = vpack.c.b16 %v526, %v525
      %v577 = vpack.c.b16 %v528, %v527
      %v578 = vpack.c.b16 %v530, %v529
      %v579 = vpack.c.b16 %v532, %v531
      %v580 = vpack.c.b16 %v534, %v533
      %v581 = vpack.c.b16 %v536, %v535
      %v582 = vpack.c.b16 %v538, %v537
      %v583 = vpack.c.b16 %v540, %v539
      %v584 = vpack.c.b16 %v542, %v541
      %v585 = vpack.c.b16 %v544, %v543
      %v586 = vpack.c.b16 %v546, %v545
      %v587 = vpack.c.b16 %v548, %v547
      %v588 = vpack.c.b16 %v550, %v549
      %v589 = vpack.c.b16 %v552, %v551
      %v590 = vpack.c.b16 %v554, %v553
      %v591 = vpack.c.b16 %v556, %v555
      %v592 = vpack.c.b16 %v558, %v557
      %v593 = vpack.c.b16 %v560, %v559
      %v594 = vpack.c.b16 %v562, %v561
      %627 = vmatprep.subr.bf16.mxu0 0
      %628 = vmatpush1.bf16.msra.mxu0 %v563
      %629 = vmatprep.subr.bf16.mxu0 0
      %630 = vmatpush1.bf16.msra.mxu0 %v564
      %631 = vmatprep.subr.bf16.mxu0 0
      %632 = vmatpush1.bf16.msra.mxu0 %v565
      %633 = vmatprep.subr.bf16.mxu0 0
      %634 = vmatpush1.bf16.msra.mxu0 %v566
      %635 = vmatprep.subr.bf16.mxu0 0
      %636 = vmatpush1.bf16.msra.mxu0 %v567
      %637 = vmatprep.subr.bf16.mxu0 0
      %638 = vmatpush1.bf16.msra.mxu0 %v568
      %639 = vmatprep.subr.bf16.mxu0 0
      %640 = vmatpush1.bf16.msra.mxu0 %v569
      %641 = vmatprep.subr.bf16.mxu0 0
      %642 = vmatpush1.bf16.msra.mxu0 %v570
      %643 = vmatprep.subr.bf16.mxu0 0
      %644 = vmatpush1.bf16.msra.mxu0 %v571
      %645 = vmatprep.subr.bf16.mxu0 0
      %646 = vmatpush1.bf16.msra.mxu0 %v572
      %647 = vmatprep.subr.bf16.mxu0 0
      %648 = vmatpush1.bf16.msra.mxu0 %v573
      %649 = vmatprep.subr.bf16.mxu0 0
      %650 = vmatpush1.bf16.msra.mxu0 %v574
      %651 = vmatprep.subr.bf16.mxu0 0
      %652 = vmatpush1.bf16.msra.mxu0 %v575
      %653 = vmatprep.subr.bf16.mxu0 0
      %654 = vmatpush1.bf16.msra.mxu0 %v576
      %655 = vmatprep.subr.bf16.mxu0 0
      %656 = vmatpush1.bf16.msra.mxu0 %v577
      %657 = vmatprep.subr.bf16.mxu0 0
      %658 = vmatpush1.bf16.msra.mxu0 %v578
      %659 = vmatprep.mubr.bf16.mxu0 %v372
      %660 = vmatmul.mubr.bf16.gmra.mrb[0].mxu0 %v371
      %v661 = vpop.f32.mrb[0].mxu0
      %v662 = vadd.f32 %v273, %v661
      %v663 = vpop.f32.mrb[0].mxu0
      %v664 = vpop.f32.mrb[0].mxu0
      %v665 = vadd.f32 %v273, %v664
      %v666 = vpop.f32.mrb[0].mxu0
      %667 = vmatprep.mubr.bf16.mxu0 %v376
      %668 = vmatmul.mubr.bf16.gmra.mrb[0].mxu0 %v375
      %v669 = vpop.f32.mrb[0].mxu0
      %v670 = vadd.f32 %v273, %v669
      %v671 = vpop.f32.mrb[0].mxu0
      %v672 = vpop.f32.mrb[0].mxu0
      %v673 = vadd.f32 %v273, %v672
      %v674 = vpop.f32.mrb[0].mxu0
      %675 = vmatprep.mubr.bf16.mxu0 %v380
      %676 = vmatmul.mubr.bf16.gmra.mrb[0].mxu0 %v379
      %v677 = vpop.f32.mrb[0].mxu0
      %v678 = vadd.f32 %v273, %v677
      %v679 = vpop.f32.mrb[0].mxu0
      %v680 = vpop.f32.mrb[0].mxu0
      %v681 = vadd.f32 %v273, %v680
      %v682 = vpop.f32.mrb[0].mxu0
      %683 = vmatprep.mubr.bf16.mxu0 %v384
      %684 = vmatmul.mubr.bf16.gmra.mrb[0].mxu0 %v383
      %v685 = vpop.f32.mrb[0].mxu0
      %v686 = vadd.f32 %v273, %v685
      %v687 = vpop.f32.mrb[0].mxu0
      %v688 = vpop.f32.mrb[0].mxu0
      %v689 = vadd.f32 %v273, %v688
      %v690 = vpop.f32.mrb[0].mxu0
      %691 = vmatprep.mubr.bf16.mxu0 %v388
      %692 = vmatmul.mubr.bf16.gmra.mrb[0].mxu0 %v387
      %v693 = vpop.f32.mrb[0].mxu0
      %v694 = vadd.f32 %v273, %v693
      %v695 = vpop.f32.mrb[0].mxu0
      %v696 = vpop.f32.mrb[0].mxu0
      %v697 = vadd.f32 %v273, %v696
      %v698 = vpop.f32.mrb[0].mxu0
      %699 = vmatprep.mubr.bf16.mxu0 %v392
      %700 = vmatmul.mubr.bf16.gmra.mrb[0].mxu0 %v391
      %v701 = vpop.f32.mrb[0].mxu0
      %v702 = vadd.f32 %v273, %v701
      %v703 = vpop.f32.mrb[0].mxu0
      %v704 = vpop.f32.mrb[0].mxu0
      %v705 = vadd.f32 %v273, %v704
      %v706 = vpop.f32.mrb[0].mxu0
      %707 = vmatprep.mubr.bf16.mxu0 %v396
      %708 = vmatmul.mubr.bf16.gmra.mrb[0].mxu0 %v395
      %v709 = vpop.f32.mrb[0].mxu0
      %v710 = vadd.f32 %v273, %v709
      %v711 = vpop.f32.mrb[0].mxu0
      %v712 = vpop.f32.mrb[0].mxu0
      %v713 = vadd.f32 %v273, %v712
      %v714 = vpop.f32.mrb[0].mxu0
      %715 = vmatprep.mubr.bf16.mxu0 %v400
      %716 = vmatmul.mubr.bf16.gmra.mrb[0].mxu0 %v399
      %v717 = vpop.f32.mrb[0].mxu0
      %v718 = vadd.f32 %v273, %v717
      %v719 = vpop.f32.mrb[0].mxu0
      %v720 = vpop.f32.mrb[0].mxu0
      %v721 = vadd.f32 %v273, %v720
      %v722 = vpop.f32.mrb[0].mxu0
      %723 = vdwg.mxu0
      %724 = vmatprep.subr.bf16.mxu0 0
      %725 = vmatpush1.bf16.msra.mxu0 %v579
      %726 = vmatprep.subr.bf16.mxu0 0
      %727 = vmatpush1.bf16.msra.mxu0 %v580
      %728 = vmatprep.subr.bf16.mxu0 0
      %729 = vmatpush1.bf16.msra.mxu0 %v581
      %730 = vmatprep.subr.bf16.mxu0 0
      %731 = vmatpush1.bf16.msra.mxu0 %v582
      %732 = vmatprep.subr.bf16.mxu0 0
      %733 = vmatpush1.bf16.msra.mxu0 %v583
      %734 = vmatprep.subr.bf16.mxu0 0
      %735 = vmatpush1.bf16.msra.mxu0 %v584
      %736 = vmatprep.subr.bf16.mxu0 0
      %737 = vmatpush1.bf16.msra.mxu0 %v585
      %738 = vmatprep.subr.bf16.mxu0 0
      %739 = vmatpush1.bf16.msra.mxu0 %v586
      %740 = vmatprep.subr.bf16.mxu0 0
      %741 = vmatpush1.bf16.msra.mxu0 %v587
      %742 = vmatprep.subr.bf16.mxu0 0
      %743 = vmatpush1.bf16.msra.mxu0 %v588
      %744 = vmatprep.subr.bf16.mxu0 0
      %745 = vmatpush1.bf16.msra.mxu0 %v589
      %746 = vmatprep.subr.bf16.mxu0 0
      %747 = vmatpush1.bf16.msra.mxu0 %v590
      %748 = vmatprep.subr.bf16.mxu0 0
      %749 = vmatpush1.bf16.msra.mxu0 %v591
      %750 = vmatprep.subr.bf16.mxu0 0
      %751 = vmatpush1.bf16.msra.mxu0 %v592
      %752 = vmatprep.subr.bf16.mxu0 0
      %753 = vmatpush1.bf16.msra.mxu0 %v593
      %754 = vmatprep.subr.bf16.mxu0 0
      %755 = vmatpush1.bf16.msra.mxu0 %v594
      %756 = vmatprep.mubr.bf16.mxu0 %v374
      %757 = vmatmul.mubr.bf16.gmra.mrb[0].mxu0 %v373
      %v758 = vpop.f32.mrb[0].mxu0
      %v759 = vadd.f32 %v662, %v758
      %v760 = vpop.f32.mrb[0].mxu0
      %v761 = vpop.f32.mrb[0].mxu0
      %v762 = vadd.f32 %v665, %v761
      %v763 = vpop.f32.mrb[0].mxu0
      %764 = vmatprep.mubr.bf16.mxu0 %v378
      %765 = vmatmul.mubr.bf16.gmra.mrb[0].mxu0 %v377
      %v766 = vpop.f32.mrb[0].mxu0
      %v767 = vadd.f32 %v670, %v766
      %v768 = vpop.f32.mrb[0].mxu0
      %v769 = vpop.f32.mrb[0].mxu0
      %v770 = vadd.f32 %v673, %v769
      %v771 = vpop.f32.mrb[0].mxu0
      %772 = vmatprep.mubr.bf16.mxu0 %v382
      %773 = vmatmul.mubr.bf16.gmra.mrb[0].mxu0 %v381
      %v774 = vpop.f32.mrb[0].mxu0
      %v775 = vadd.f32 %v678, %v774
      %v776 = vpop.f32.mrb[0].mxu0
      %v777 = vpop.f32.mrb[0].mxu0
      %v778 = vadd.f32 %v681, %v777
      %v779 = vpop.f32.mrb[0].mxu0
      %780 = vmatprep.mubr.bf16.mxu0 %v386
      %781 = vmatmul.mubr.bf16.gmra.mrb[0].mxu0 %v385
      %v782 = vpop.f32.mrb[0].mxu0
      %v783 = vadd.f32 %v686, %v782
      %v784 = vpop.f32.mrb[0].mxu0
      %v785 = vpop.f32.mrb[0].mxu0
      %v786 = vadd.f32 %v689, %v785
      %v787 = vpop.f32.mrb[0].mxu0
      %788 = vmatprep.mubr.bf16.mxu0 %v390
      %789 = vmatmul.mubr.bf16.gmra.mrb[0].mxu0 %v389
      %v790 = vpop.f32.mrb[0].mxu0
      %v791 = vadd.f32 %v694, %v790
      %v792 = vpop.f32.mrb[0].mxu0
      %v793 = vpop.f32.mrb[0].mxu0
      %v794 = vadd.f32 %v697, %v793
      %v795 = vpop.f32.mrb[0].mxu0
      %796 = vmatprep.mubr.bf16.mxu0 %v394
      %797 = vmatmul.mubr.bf16.gmra.mrb[0].mxu0 %v393
      %v798 = vpop.f32.mrb[0].mxu0
      %v799 = vadd.f32 %v702, %v798
      %v800 = vpop.f32.mrb[0].mxu0
      %v801 = vpop.f32.mrb[0].mxu0
      %v802 = vadd.f32 %v705, %v801
      %v803 = vpop.f32.mrb[0].mxu0
      %804 = vmatprep.mubr.bf16.mxu0 %v398
      %805 = vmatmul.mubr.bf16.gmra.mrb[0].mxu0 %v397
      %v806 = vpop.f32.mrb[0].mxu0
      %v807 = vadd.f32 %v710, %v806
      %v808 = vpop.f32.mrb[0].mxu0
      %v809 = vpop.f32.mrb[0].mxu0
      %v810 = vadd.f32 %v713, %v809
      %v811 = vpop.f32.mrb[0].mxu0
      %812 = vmatprep.mubr.bf16.mxu0 %v402
      %813 = vmatmul.mubr.bf16.gmra.mrb[0].mxu0 %v401
      %v814 = vpop.f32.mrb[0].mxu0
      %v815 = vadd.f32 %v718, %v814
      %v816 = vpop.f32.mrb[0].mxu0
      %v817 = vpop.f32.mrb[0].mxu0
      %v818 = vadd.f32 %v721, %v817
      %v819 = vpop.f32.mrb[0].mxu0
      %820 = vdwg.mxu0
      %v821 = vadd.f32 %v759, %v762
      %v822 = vadd.f32 %v821, %v767
      %v823 = vadd.f32 %v822, %v770
      %v824 = vadd.f32 %v823, %v775
      %v825 = vadd.f32 %v824, %v778
      %v826 = vadd.f32 %v825, %v783
      %v827 = vadd.f32 %v826, %v786
      %v828 = vadd.f32 %v827, %v791
      %v829 = vadd.f32 %v828, %v794
      %v830 = vadd.f32 %v829, %v799
      %v831 = vadd.f32 %v830, %v802
      %v832 = vadd.f32 %v831, %v807
      %v833 = vadd.f32 %v832, %v810
      %v834 = vadd.f32 %v833, %v815
      %vm835 = vcmask 1044480
      %v836 = vsel %vm835, %v818, 0.0
      %v837 = vadd.f32 %v834, %v836
      %v838 = vrot.slane %v837, 4
      %v839 = vadd.f32 %v837, %v838
      %v840 = vrot.slane %v839, 2
      %v841 = vadd.f32 %v839, %v840
      %v842 = vrot.slane %v841, 1
      %v843 = vadd.f32 %v841, %v842
      %v844 = vmul.f32 %v843, 0.008
      %v845 = vmul.f32 %v759, %v759
      %v846 = vmul.f32 %v762, %v762
      %v847 = vmul.f32 %v767, %v767
      %v848 = vmul.f32 %v770, %v770
      %v849 = vmul.f32 %v775, %v775
      %v850 = vmul.f32 %v778, %v778
      %v851 = vmul.f32 %v783, %v783
      %v852 = vmul.f32 %v786, %v786
      %v853 = vmul.f32 %v791, %v791
      %v854 = vmul.f32 %v794, %v794
      %v855 = vmul.f32 %v799, %v799
      %v856 = vmul.f32 %v802, %v802
      %v857 = vmul.f32 %v807, %v807
      %v858 = vmul.f32 %v810, %v810
      %v859 = vmul.f32 %v815, %v815
      %v860 = vmul.f32 %v818, %v818
      %v861 = vadd.f32 %v845, %v846
      %v862 = vadd.f32 %v861, %v847
      %v863 = vadd.f32 %v862, %v848
      %v864 = vadd.f32 %v863, %v849
      %v865 = vadd.f32 %v864, %v850
      %v866 = vadd.f32 %v865, %v851
      %v867 = vadd.f32 %v866, %v852
      %v868 = vadd.f32 %v867, %v853
      %v869 = vadd.f32 %v868, %v854
      %v870 = vadd.f32 %v869, %v855
      %v871 = vadd.f32 %v870, %v856
      %v872 = vadd.f32 %v871, %v857
      %v873 = vadd.f32 %v872, %v858
      %v874 = vadd.f32 %v873, %v859
      %v875 = vsel %vm835, %v860, 0.0
      %v876 = vadd.f32 %v874, %v875
      %v877 = vrot.slane %v876, 4
      %v878 = vadd.f32 %v876, %v877
      %v879 = vrot.slane %v878, 2
      %v880 = vadd.f32 %v878, %v879
      %v881 = vrot.slane %v880, 1
      %v882 = vadd.f32 %v880, %v881
      %v883 = vmul.f32 %v882, 0.008
      %v884 = vmul.f32 %v844, %v844
      %v885 = vsub.f32 %v883, %v884
      %v886 = vmax.f32 %v885, 0.0
      %v887 = vsub.f32 %v759, %v844
      %v888 = vsub.f32 %v762, %v844
      %v889 = vsub.f32 %v767, %v844
      %v890 = vsub.f32 %v770, %v844
      %v891 = vsub.f32 %v775, %v844
      %v892 = vsub.f32 %v778, %v844
      %v893 = vsub.f32 %v783, %v844
      %v894 = vsub.f32 %v786, %v844
      %v895 = vsub.f32 %v791, %v844
      %v896 = vsub.f32 %v794, %v844
      %v897 = vsub.f32 %v799, %v844
      %v898 = vsub.f32 %v802, %v844
      %v899 = vsub.f32 %v807, %v844
      %v900 = vsub.f32 %v810, %v844
      %v901 = vsub.f32 %v815, %v844
      %v902 = vsub.f32 %v818, %v844
      %v903 = vadd.f32 %v886, 1e-05
      %v904 = vrsqrt.pop %v903
      %v905 = vmul.f32 %v887, %v904
      %v906 = vmul.f32 %v888, %v904
      %v907 = vmul.f32 %v889, %v904
      %v908 = vmul.f32 %v890, %v904
      %v909 = vmul.f32 %v891, %v904
      %v910 = vmul.f32 %v892, %v904
      %v911 = vmul.f32 %v893, %v904
      %v912 = vmul.f32 %v894, %v904
      %v913 = vmul.f32 %v895, %v904
      %v914 = vmul.f32 %v896, %v904
      %v915 = vmul.f32 %v897, %v904
      %v916 = vmul.f32 %v898, %v904
      %v917 = vmul.f32 %v899, %v904
      %v918 = vmul.f32 %v900, %v904
      %v919 = vmul.f32 %v901, %v904
      %v920 = vmul.f32 %v902, %v904
      %vm921 = vcmp.ge.f32.partialorder %v905, 0.0
      %vm922 = vcmp.ge.f32.partialorder %v906, 0.0
      %vm923 = vcmp.ge.f32.partialorder %v907, 0.0
      %vm924 = vcmp.ge.f32.partialorder %v908, 0.0
      %vm925 = vcmp.ge.f32.partialorder %v909, 0.0
      %vm926 = vcmp.ge.f32.partialorder %v910, 0.0
      %vm927 = vcmp.ge.f32.partialorder %v911, 0.0
      %vm928 = vcmp.ge.f32.partialorder %v912, 0.0
      %vm929 = vcmp.ge.f32.partialorder %v913, 0.0
      %vm930 = vcmp.ge.f32.partialorder %v914, 0.0
      %vm931 = vcmp.ge.f32.partialorder %v915, 0.0
      %vm932 = vcmp.ge.f32.partialorder %v916, 0.0
      %vm933 = vcmp.ge.f32.partialorder %v917, 0.0
      %vm934 = vcmp.ge.f32.partialorder %v918, 0.0
      %vm935 = vcmp.ge.f32.partialorder %v919, 0.0
      %vm936 = vcmp.ge.f32.partialorder %v920, 0.0
      %v937 = vmul.f32 %v905, 0.01
      %v938 = vmul.f32 %v906, 0.01
      %v939 = vmul.f32 %v907, 0.01
      %v940 = vmul.f32 %v908, 0.01
      %v941 = vmul.f32 %v909, 0.01
      %v942 = vmul.f32 %v910, 0.01
      %v943 = vmul.f32 %v911, 0.01
      %v944 = vmul.f32 %v912, 0.01
      %v945 = vmul.f32 %v913, 0.01
      %v946 = vmul.f32 %v914, 0.01
      %v947 = vmul.f32 %v915, 0.01
      %v948 = vmul.f32 %v916, 0.01
      %v949 = vmul.f32 %v917, 0.01
      %v950 = vmul.f32 %v918, 0.01
      %v951 = vmul.f32 %v919, 0.01
      %v952 = vmul.f32 %v920, 0.01
      %v953 = vsel %vm921, %v905, %v937
      %v954 = vsel %vm922, %v906, %v938
      %v955 = vsel %vm923, %v907, %v939
      %v956 = vsel %vm924, %v908, %v940
      %v957 = vsel %vm925, %v909, %v941
      %v958 = vsel %vm926, %v910, %v942
      %v959 = vsel %vm927, %v911, %v943
      %v960 = vsel %vm928, %v912, %v944
      %v961 = vsel %vm929, %v913, %v945
      %v962 = vsel %vm930, %v914, %v946
      %v963 = vsel %vm931, %v915, %v947
      %v964 = vsel %vm932, %v916, %v948
      %v965 = vsel %vm933, %v917, %v949
      %v966 = vsel %vm934, %v918, %v950
      %v967 = vsel %vm935, %v919, %v951
      %v968 = vsel %vm936, %v920, %v952
      %969 = vst [vmem:[%s170] sm:$0xff] %v953
      %970 = vst [vmem:[%s170 + $0x8] sm:$0xff] %v954
      %971 = vst [vmem:[%s170 + $0x10] sm:$0xff] %v955
      %972 = vst [vmem:[%s170 + $0x18] sm:$0xff] %v956
      %973 = vst [vmem:[%s170 + $0x20] sm:$0xff] %v957
      %974 = vst [vmem:[%s170 + $0x28] sm:$0xff] %v958
      %975 = vst [vmem:[%s170 + $0x30] sm:$0xff] %v959
      %976 = vst [vmem:[%s170 + $0x38] sm:$0xff] %v960
      %977 = vst [vmem:[%s170 + $0x40] sm:$0xff] %v961
      %978 = vst [vmem:[%s170 + $0x48] sm:$0xff] %v962
      %979 = vst [vmem:[%s170 + $0x50] sm:$0xff] %v963
      %980 = vst [vmem:[%s170 + $0x58] sm:$0xff] %v964
      %981 = vst [vmem:[%s170 + $0x60] sm:$0xff] %v965
      %982 = vst [vmem:[%s170 + $0x68] sm:$0xff] %v966
      %983 = vst [vmem:[%s170 + $0x70] sm:$0xff] %v967
      %984 = vst [vmem:[%s170 + $0x78] sm:$0x1f] %v968
      %p985 = scmp.lt.s32.totalorder %s14, 1
      %s986 = scalar_select %p985, %s14, 1
      %s987 = smul.addr %s986, 16
      %s988 = smul.addr %s987, 8
      %s989 = scalar_lea.vmem %s3, %s988
      // Predicated region
      $region33: #{_lambda_.5} parent=31 // pred_check
        %p990 = pneg %p100
      $region34: #{_lambda_.5} parent=31 // pred_check_branch
        %992 = sbr.rel (%p990) target = $region36
      $region35: #{_lambda_.5} parent=31 // pred_region
        _
      $region36: #{_lambda_.5} parent=31 // pred_fallthru
        _
    $region32: #{_lambda_.5} parent=5 // pred_fallthru
      _
    %p993 = scmp.le.s32.totalorder 2, %s9
    // Predicated region
    $region37: #{_lambda_.5} parent=5 // pred_check
      %p994 = pneg %p993
    $region38: #{_lambda_.5} parent=5 // pred_check_branch
      %996 = sbr.rel (%p994) target = $region40
    $region39: #{_lambda_.5} parent=5 // pred_region
      %s997 = ssub.s32 %s9, 2
      // Predicated region
      $region41: #{_lambda_.5} parent=39 // pred_check
        %p998 = pneg %p106
      $region42: #{_lambda_.5} parent=39 // pred_check_branch
        %1000 = sbr.rel (%p998) target = $region44
      $region43: #{_lambda_.5} parent=39 // pred_region
        %p1001 = scmp.lt.s32.totalorder %s15, 1
        %s1002 = scalar_select %p1001, %s15, 1
        %s1003 = smul.addr %s1002, 16
        %s1004 = smul.addr %s1003, 8
        %s1005 = scalar_lea.vmem %s3, %s1004
      $region44: #{_lambda_.5} parent=39 // pred_fallthru
        _
    $region40: #{_lambda_.5} parent=5 // pred_fallthru
      _
  $region6: #{_lambda_.5} parent=0 // loop_footer
    %s13 = sadd.s32 1, %s9
  $region7: #{_lambda_.5} parent=0 // loop_footer_branch
    %8 = sbr.rel target = $region3
  $region8: #{_lambda_.5} parent=0 // loop_exit
    _

// kernel: _lambda_.6
$region0: #{_lambda_.6}
  #allocation0 [shape = 'u32[]', space=smem, size = 0x4, offset = 0x4, fixed_abs, tag = 'smem constant byte address 0x4 - core index']
  #allocation1 [shape = 'u32[144,128]{1,0:T(1,128)}', space=vmem, size = 0x12000, scoped, tag = 'internal scratch']
  %s0 = inlined_call_operand.vmem [shape: bf16[2,27,1024], index: 0, kind: input, shape index: {}]
  %s1 = inlined_call_operand.vmem [shape: bf16[1024,128], index: 1, kind: input, shape index: {}]
  %s2 = inlined_call_operand.vmem [shape: f32[1,128], index: 2, kind: input, shape index: {}]
  %s3 = inlined_call_operand.vmem [shape: f32[2,27,128], index: 3, kind: output, shape index: {}]
  %s4 = sld [smem:[#allocation0]]
  $region45: #{_lambda_.6} parent=0
    _
  %s6 = ssub.s32 1, %s4
  %s7 = scalar_select 0, %s6, %s4
  loop: start=0, step=1, limit=4
  $region2: #{_lambda_.6} parent=0 // loop_pre_header
    _
  $region3: #{_lambda_.6} parent=0 // loop_header
    %s9 = sphi 0, %s13
    %p10 = scmp.ge.s32.totalorder %s9, 4
    %s19 = sphi 0, %s21
    %s22 = sphi 0, %s19
    %s23 = sphi 0, %s22
    %s39 = sphi 0, %s23
    %s43 = sphi 0, %s43
    %s45 = sphi 0, %s43
    %s46 = sphi 0, %s45
    %s60 = sphi 0, %s46
    %s64 = sphi 0, %s64
    %s66 = sphi 0, %s64
    %s67 = sphi 0, %s66
    %s81 = sphi 0, %s67
    %s87 = sphi 0, %s89
    %s90 = sphi 0, %s87
    %s91 = sphi 0, %s90
    %s107 = sphi 0, %s91
  $region4: #{_lambda_.6} parent=0 // loop_header_branch
    %12 = sbr.rel (%p10) target = $region8
  $region5: #{_lambda_.6} parent=0 // loop_body
    %s14 = ssub.s32 %s9, 1
    %s15 = ssub.s32 %s9, 2
    %s16 = sadd.s32 %s9, 1
    %s17 = ssub.s32 %s9, %s16
    %p18 = scmp.eq.s32.totalorder %s17, 0
    %s20 = sadd.s32 %s19, 1
    %s21 = scalar_select %p18, %s19, %s20
    %p24 = pneg %p18
    %p25 = scmp.eq.s32.totalorder %s9, 1
    %p26 = por %p24, %p25
    %p27 = scmp.ne.s32.totalorder %s19, %s22
    %p28 = scmp.eq.s32.totalorder %s9, 0
    %p29 = por %p27, %p28
    %p30 = scmp.ne.s32.totalorder %s19, %s22
    %p31 = scmp.eq.s32.totalorder %s14, 1
    %p32 = por %p30, %p31
    %p33 = scmp.ne.s32.totalorder %s22, %s23
    %p34 = scmp.eq.s32.totalorder %s14, 0
    %p35 = por %p33, %p34
    %p36 = scmp.ne.s32.totalorder %s22, %s23
    %p37 = scmp.eq.s32.totalorder %s15, 1
    %p38 = por %p36, %p37
    %p40 = scmp.ne.s32.totalorder %s23, %s39
    %p41 = scmp.eq.s32.totalorder %s15, 0
    %p42 = por %p40, %p41
    %s44 = sadd.s32 %s43, 1
    %p47 = scmp.eq.s32.totalorder %s9, 1
    %p48 = scmp.ne.s32.totalorder %s43, %s45
    %p49 = scmp.eq.s32.totalorder %s9, 0
    %p50 = por %p48, %p49
    %p51 = scmp.ne.s32.totalorder %s43, %s45
    %p52 = scmp.eq.s32.totalorder %s14, 1
    %p53 = por %p51, %p52
    %p54 = scmp.ne.s32.totalorder %s45, %s46
    %p55 = scmp.eq.s32.totalorder %s14, 0
    %p56 = por %p54, %p55
    %p57 = scmp.ne.s32.totalorder %s45, %s46
    %p58 = scmp.eq.s32.totalorder %s15, 1
    %p59 = por %p57, %p58
    %p61 = scmp.ne.s32.totalorder %s46, %s60
    %p62 = scmp.eq.s32.totalorder %s15, 0
    %p63 = por %p61, %p62
    %s65 = sadd.s32 %s64, 1
    %p68 = scmp.eq.s32.totalorder %s9, 1
    %p69 = scmp.ne.s32.totalorder %s64, %s66
    %p70 = scmp.eq.s32.totalorder %s9, 0
    %p71 = por %p69, %p70
    %p72 = scmp.ne.s32.totalorder %s64, %s66
    %p73 = scmp.eq.s32.totalorder %s14, 1
    %p74 = por %p72, %p73
    %p75 = scmp.ne.s32.totalorder %s66, %s67
    %p76 = scmp.eq.s32.totalorder %s14, 0
    %p77 = por %p75, %p76
    %p78 = scmp.ne.s32.totalorder %s66, %s67
    %p79 = scmp.eq.s32.totalorder %s15, 1
    %p80 = por %p78, %p79
    %p82 = scmp.ne.s32.totalorder %s67, %s81
    %p83 = scmp.eq.s32.totalorder %s15, 0
    %p84 = por %p82, %p83
    %s85 = ssub.s32 %s9, %s16
    %p86 = scmp.eq.s32.totalorder %s85, 0
    %s88 = sadd.s32 %s87, 1
    %s89 = scalar_select %p86, %s87, %s88
    %p92 = pneg %p86
    %p93 = scmp.eq.s32.totalorder %s9, 1
    %p94 = por %p92, %p93
    %p95 = scmp.ne.s32.totalorder %s87, %s90
    %p96 = scmp.eq.s32.totalorder %s9, 0
    %p97 = por %p95, %p96
    %p98 = scmp.ne.s32.totalorder %s87, %s90
    %p99 = scmp.eq.s32.totalorder %s14, 1
    %p100 = por %p98, %p99
    %p101 = scmp.ne.s32.totalorder %s90, %s91
    %p102 = scmp.eq.s32.totalorder %s14, 0
    %p103 = por %p101, %p102
    %p104 = scmp.ne.s32.totalorder %s90, %s91
    %p105 = scmp.eq.s32.totalorder %s15, 1
    %p106 = por %p104, %p105
    %p108 = scmp.ne.s32.totalorder %s91, %s107
    %p109 = scmp.eq.s32.totalorder %s15, 0
    %p110 = por %p108, %p109
    %p111 = scmp.le.s32.totalorder 1, %s9
    %p112 = scmp.lt.s32.totalorder %s9, 3
    %p113 = pnand %p111, %p112
    %p114 = pneg %p113
    // Predicated region
    $region9: #{_lambda_.6} parent=5 // pred_check
      _
    $region10: #{_lambda_.6} parent=5 // pred_check_branch
      %116 = sbr.rel (%p113) target = $region12
    $region11: #{_lambda_.6} parent=5 // pred_region
      %s117 = ssub.s32 %s9, 1
      // Predicated region
      $region13: #{_lambda_.6} parent=11 // pred_check
        %p118 = pneg %p56
      $region14: #{_lambda_.6} parent=11 // pred_check_branch
        %120 = sbr.rel (%p118) target = $region16
      $region15: #{_lambda_.6} parent=11 // pred_region
        _
      $region16: #{_lambda_.6} parent=11 // pred_fallthru
        _
      // Predicated region
      $region17: #{_lambda_.6} parent=11 // pred_check
        %p121 = pneg %p77
      $region18: #{_lambda_.6} parent=11 // pred_check_branch
        %123 = sbr.rel (%p121) target = $region20
      $region19: #{_lambda_.6} parent=11 // pred_region
        _
      $region20: #{_lambda_.6} parent=11 // pred_fallthru
        _
    $region12: #{_lambda_.6} parent=5 // pred_fallthru
      _
    %p124 = scmp.lt.s32.totalorder %s9, 2
    // Predicated region
    $region21: #{_lambda_.6} parent=5 // pred_check
      %p125 = pneg %p124
    $region22: #{_lambda_.6} parent=5 // pred_check_branch
      %127 = sbr.rel (%p125) target = $region24
    $region23: #{_lambda_.6} parent=5 // pred_region
      // Predicated region
      $region25: #{_lambda_.6} parent=23 // pred_check
        %p128 = pneg %p29
      $region26: #{_lambda_.6} parent=23 // pred_check_branch
        %130 = sbr.rel (%p128) target = $region28
      $region27: #{_lambda_.6} parent=23 // pred_region
        %p131 = scmp.lt.s32.totalorder %s9, 1
        %s132 = scalar_select %p131, %s9, 1
        %s133 = smul.addr %s132, 32
        %s134 = smul.addr %s133, 4
        %s135 = scalar_lea.vmem %s0, %s134
      $region28: #{_lambda_.6} parent=23 // pred_fallthru
        _
    $region24: #{_lambda_.6} parent=5 // pred_fallthru
      _
    %p136 = scmp.le.s32.totalorder 1, %s9
    %p137 = scmp.lt.s32.totalorder %s9, 3
    %p138 = pnand %p136, %p137
    %p139 = pneg %p138
    // Predicated region
    $region29: #{_lambda_.6} parent=5 // pred_check
      _
    $region30: #{_lambda_.6} parent=5 // pred_check_branch
      %141 = sbr.rel (%p138) target = $region32
    $region31: #{_lambda_.6} parent=5 // pred_region
      %s142 = ssub.s32 %s9, 1
      %p143 = scmp.lt.s32.totalorder %s14, 1
      %s144 = scalar_select %p143, %s14, 1
      %s145 = smul.addr %s144, 32
      %s146 = smul.addr %s145, 4
      %s147 = scalar_lea.vmem %s0, %s146
      %p148 = pneg %p35
      %p149 = pneg %p32
      %p150 = pneg %p56
      %p151 = pneg %p53
      %p152 = pneg %p77
      %p153 = pneg %p74
      %p154 = pneg %p103
      %p155 = pneg %p100
      %p156 = scmp.lt.s32.totalorder %s14, 1
      %s157 = scalar_select %p156, %s14, 1
      %s158 = smul.addr %s157, 4
      %s159 = smul.addr %s158, 8
      %s160 = scalar_lea.vmem %s3, %s159
      %p161 = scmp.lt.s32.totalorder %s14, 1
      %s162 = scalar_select %p161, %s14, 1
      %s163 = smul.addr %s162, 32
      %s164 = smul.addr %s163, 4
      %s165 = scalar_lea.vmem %s0, %s164
      %p166 = scmp.lt.s32.totalorder %s14, 1
      %s167 = scalar_select %p166, %s14, 1
      %s168 = smul.addr %s167, 4
      %s169 = smul.addr %s168, 8
      %s170 = scalar_lea.vmem %s3, %s169
      %v172 = vld [vmem:[%s165] sm:$0xff]
      %v173 = vld [vmem:[%s165 + $0x8] sm:$0xff]
      %v174 = vld [vmem:[%s165 + $0x10] sm:$0xff]
      %v175 = vld [vmem:[%s165 + $0x18] sm:$0xff]
      %v176 = vld [vmem:[%s165 + $0x20] sm:$0xff]
      %v177 = vld [vmem:[%s165 + $0x28] sm:$0xff]
      %v178 = vld [vmem:[%s165 + $0x30] sm:$0xff]
      %v179 = vld [vmem:[%s165 + $0x38] sm:$0xff]
      %v180 = vld [vmem:[%s165 + $0x40] sm:$0xff]
      %v181 = vld [vmem:[%s165 + $0x48] sm:$0xff]
      %v182 = vld [vmem:[%s165 + $0x50] sm:$0xff]
      %v183 = vld [vmem:[%s165 + $0x58] sm:$0xff]
      %v184 = vld [vmem:[%s165 + $0x60] sm:$0x33]
      %v185 = vld [vmem:[%s165 + $0x68] sm:$0x33]
      %v186 = vld [vmem:[%s165 + $0x70] sm:$0x33]
      %v187 = vld [vmem:[%s165 + $0x78] sm:$0x33]
      %v188 = vld [vmem:[%s1] sm:$0xf]
      %v189 = vld [vmem:[%s1 + $0x4] sm:$0xf]
      %v190 = vld [vmem:[%s1 + $0x8] sm:$0xf]
      %v191 = vld [vmem:[%s1 + $0xc] sm:$0xf]
      %v192 = vld [vmem:[%s1 + $0x10] sm:$0xf]
      %v193 = vld [vmem:[%s1 + $0x14] sm:$0xf]
      %v194 = vld [vmem:[%s1 + $0x18] sm:$0xf]
      %v195 = vld [vmem:[%s1 + $0x1c] sm:$0xf]
      %v196 = vld [vmem:[%s1 + $0x20] sm:$0xf]
      %v197 = vld [vmem:[%s1 + $0x24] sm:$0xf]
      %v198 = vld [vmem:[%s1 + $0x28] sm:$0xf]
      %v199 = vld [vmem:[%s1 + $0x2c] sm:$0xf]
      %v200 = vld [vmem:[%s1 + $0x30] sm:$0xf]
      %v201 = vld [vmem:[%s1 + $0x34] sm:$0xf]
      %v202 = vld [vmem:[%s1 + $0x38] sm:$0xf]
      %v203 = vld [vmem:[%s1 + $0x3c] sm:$0xf]
      %v204 = vld [vmem:[%s1 + $0x40] sm:$0xf]
      %v205 = vld [vmem:[%s1 + $0x44] sm:$0xf]
      %v206 = vld [vmem:[%s1 + $0x48] sm:$0xf]
      %v207 = vld [vmem:[%s1 + $0x4c] sm:$0xf]
      %v208 = vld [vmem:[%s1 + $0x50] sm:$0xf]
      %v209 = vld [vmem:[%s1 + $0x54] sm:$0xf]
      %v210 = vld [vmem:[%s1 + $0x58] sm:$0xf]
      %v211 = vld [vmem:[%s1 + $0x5c] sm:$0xf]
      %v212 = vld [vmem:[%s1 + $0x60] sm:$0xf]
      %v213 = vld [vmem:[%s1 + $0x64] sm:$0xf]
      %v214 = vld [vmem:[%s1 + $0x68] sm:$0xf]
      %v215 = vld [vmem:[%s1 + $0x6c] sm:$0xf]
      %v216 = vld [vmem:[%s1 + $0x70] sm:$0xf]
      %v217 = vld [vmem:[%s1 + $0x74] sm:$0xf]
      %v218 = vld [vmem:[%s1 + $0x78] sm:$0xf]
      %v219 = vld [vmem:[%s1 + $0x7c] sm:$0xf]
      %v220 = vld [vmem:[%s1 + $0x80] sm:$0xf]
      %v221 = vld [vmem:[%s1 + $0x84] sm:$0xf]
      %v222 = vld [vmem:[%s1 + $0x88] sm:$0xf]
      %v223 = vld [vmem:[%s1 + $0x8c] sm:$0xf]
      %v224 = vld [vmem:[%s1 + $0x90] sm:$0xf]
      %v225 = vld [vmem:[%s1 + $0x94] sm:$0xf]
      %v226 = vld [vmem:[%s1 + $0x98] sm:$0xf]
      %v227 = vld [vmem:[%s1 + $0x9c] sm:$0xf]
      %v228 = vld [vmem:[%s1 + $0xa0] sm:$0xf]
      %v229 = vld [vmem:[%s1 + $0xa4] sm:$0xf]
      %v230 = vld [vmem:[%s1 + $0xa8] sm:$0xf]
      %v231 = vld [vmem:[%s1 + $0xac] sm:$0xf]
      %v232 = vld [vmem:[%s1 + $0xb0] sm:$0xf]
      %v233 = vld [vmem:[%s1 + $0xb4] sm:$0xf]
      %v234 = vld [vmem:[%s1 + $0xb8] sm:$0xf]
      %v235 = vld [vmem:[%s1 + $0xbc] sm:$0xf]
      %v236 = vld [vmem:[%s1 + $0xc0] sm:$0xf]
      %v237 = vld [vmem:[%s1 + $0xc4] sm:$0xf]
      %v238 = vld [vmem:[%s1 + $0xc8] sm:$0xf]
      %v239 = vld [vmem:[%s1 + $0xcc] sm:$0xf]
      %v240 = vld [vmem:[%s1 + $0xd0] sm:$0xf]
      %v241 = vld [vmem:[%s1 + $0xd4] sm:$0xf]
      %v242 = vld [vmem:[%s1 + $0xd8] sm:$0xf]
      %v243 = vld [vmem:[%s1 + $0xdc] sm:$0xf]
      %v244 = vld [vmem:[%s1 + $0xe0] sm:$0xf]
      %v245 = vld [vmem:[%s1 + $0xe4] sm:$0xf]
      %v246 = vld [vmem:[%s1 + $0xe8] sm:$0xf]
      %v247 = vld [vmem:[%s1 + $0xec] sm:$0xf]
      %v248 = vld [vmem:[%s1 + $0xf0] sm:$0xf]
      %v249 = vld [vmem:[%s1 + $0xf4] sm:$0xf]
      %v250 = vld [vmem:[%s1 + $0xf8] sm:$0xf]
      %v251 = vld [vmem:[%s1 + $0xfc] sm:$0xf]
      %v252 = vld [vmem:[%s1 + $0x100] sm:$0xf]
      %v253 = vld [vmem:[%s1 + $0x104] sm:$0xf]
      %v254 = vld [vmem:[%s1 + $0x108] sm:$0xf]
      %v255 = vld [vmem:[%s1 + $0x10c] sm:$0xf]
      %v256 = vld [vmem:[%s1 + $0x110] sm:$0xf]
      %v257 = vld [vmem:[%s1 + $0x114] sm:$0xf]
      %v258 = vld [vmem:[%s1 + $0x118] sm:$0xf]
      %v259 = vld [vmem:[%s1 + $0x11c] sm:$0xf]
      %v260 = vld [vmem:[%s1 + $0x120] sm:$0xf]
      %v261 = vld [vmem:[%s1 + $0x124] sm:$0xf]
      %v262 = vld [vmem:[%s1 + $0x128] sm:$0xf]
      %v263 = vld [vmem:[%s1 + $0x12c] sm:$0xf]
      %v264 = vld [vmem:[%s1 + $0x130] sm:$0xf]
      %v265 = vld [vmem:[%s1 + $0x134] sm:$0xf]
      %v266 = vld [vmem:[%s1 + $0x138] sm:$0xf]
      %v267 = vld [vmem:[%s1 + $0x13c] sm:$0xf]
      %v268 = vld [vmem:[%s1 + $0x140] sm:$0xf]
      %v269 = vld [vmem:[%s1 + $0x144] sm:$0xf]
      %v270 = vld [vmem:[%s1 + $0x148] sm:$0xf]
      %v271 = vld [vmem:[%s1 + $0x14c] sm:$0xf]
      %v272 = vld [vmem:[%s1 + $0x150] sm:$0xf]
      %v273 = vld [vmem:[%s1 + $0x154] sm:$0xf]
      %v274 = vld [vmem:[%s1 + $0x158] sm:$0xf]
      %v275 = vld [vmem:[%s1 + $0x15c] sm:$0xf]
      %v276 = vld [vmem:[%s1 + $0x160] sm:$0xf]
      %v277 = vld [vmem:[%s1 + $0x164] sm:$0xf]
      %v278 = vld [vmem:[%s1 + $0x168] sm:$0xf]
      %v279 = vld [vmem:[%s1 + $0x16c] sm:$0xf]
      %v280 = vld [vmem:[%s1 + $0x170] sm:$0xf]
      %v281 = vld [vmem:[%s1 + $0x174] sm:$0xf]
      %v282 = vld [vmem:[%s1 + $0x178] sm:$0xf]
      %v283 = vld [vmem:[%s1 + $0x17c] sm:$0xf]
      %v284 = vld [vmem:[%s1 + $0x180] sm:$0xf]
      %v285 = vld [vmem:[%s1 + $0x184] sm:$0xf]
      %v286 = vld [vmem:[%s1 + $0x188] sm:$0xf]
      %v287 = vld [vmem:[%s1 + $0x18c] sm:$0xf]
      %v288 = vld [vmem:[%s1 + $0x190] sm:$0xf]
      %v289 = vld [vmem:[%s1 + $0x194] sm:$0xf]
      %v290 = vld [vmem:[%s1 + $0x198] sm:$0xf]
      %v291 = vld [vmem:[%s1 + $0x19c] sm:$0xf]
      %v292 = vld [vmem:[%s1 + $0x1a0] sm:$0xf]
      %v293 = vld [vmem:[%s1 + $0x1a4] sm:$0xf]
      %v294 = vld [vmem:[%s1 + $0x1a8] sm:$0xf]
      %v295 = vld [vmem:[%s1 + $0x1ac] sm:$0xf]
      %v296 = vld [vmem:[%s1 + $0x1b0] sm:$0xf]
      %v297 = vld [vmem:[%s1 + $0x1b4] sm:$0xf]
      %v298 = vld [vmem:[%s1 + $0x1b8] sm:$0xf]
      %v299 = vld [vmem:[%s1 + $0x1bc] sm:$0xf]
      %v300 = vld [vmem:[%s1 + $0x1c0] sm:$0xf]
      %v301 = vld [vmem:[%s1 + $0x1c4] sm:$0xf]
      %v302 = vld [vmem:[%s1 + $0x1c8] sm:$0xf]
      %v303 = vld [vmem:[%s1 + $0x1cc] sm:$0xf]
      %v304 = vld [vmem:[%s1 + $0x1d0] sm:$0xf]
      %v305 = vld [vmem:[%s1 + $0x1d4] sm:$0xf]
      %v306 = vld [vmem:[%s1 + $0x1d8] sm:$0xf]
      %v307 = vld [vmem:[%s1 + $0x1dc] sm:$0xf]
      %v308 = vld [vmem:[%s1 + $0x1e0] sm:$0xf]
      %v309 = vld [vmem:[%s1 + $0x1e4] sm:$0xf]
      %v310 = vld [vmem:[%s1 + $0x1e8] sm:$0xf]
      %v311 = vld [vmem:[%s1 + $0x1ec] sm:$0xf]
      %v312 = vld [vmem:[%s1 + $0x1f0] sm:$0xf]
      %v313 = vld [vmem:[%s1 + $0x1f4] sm:$0xf]
      %v314 = vld [vmem:[%s1 + $0x1f8] sm:$0xf]
      %v315 = vld [vmem:[%s1 + $0x1fc] sm:$0xf]
      %v316 = vld [vmem:[%s2] sm:$0x1]
      %v318 = vlaneseq
      %v319 = vshrl.u32 %v318, 7
      %v320 = vsub.s32 0, %v319
      %v321 = vrot.slane %v316, %v320
      %v339 = vunpack.c.l.b16 %v172
      %v340 = vunpack.c.h.b16 %v172
      %v341 = vunpack.c.l.b16 %v173
      %v342 = vunpack.c.h.b16 %v173
      %v343 = vunpack.c.l.b16 %v174
      %v344 = vunpack.c.h.b16 %v174
      %v345 = vunpack.c.l.b16 %v175
      %v346 = vunpack.c.h.b16 %v175
      %v347 = vunpack.c.l.b16 %v176
      %v348 = vunpack.c.h.b16 %v176
      %v349 = vunpack.c.l.b16 %v177
      %v350 = vunpack.c.h.b16 %v177
      %v351 = vunpack.c.l.b16 %v178
      %v352 = vunpack.c.h.b16 %v178
      %v353 = vunpack.c.l.b16 %v179
      %v354 = vunpack.c.h.b16 %v179
      %v355 = vunpack.c.l.b16 %v180
      %v356 = vunpack.c.h.b16 %v180
      %v357 = vunpack.c.l.b16 %v181
      %v358 = vunpack.c.h.b16 %v181
      %v359 = vunpack.c.l.b16 %v182
      %v360 = vunpack.c.h.b16 %v182
      %v361 = vunpack.c.l.b16 %v183
      %v362 = vunpack.c.h.b16 %v183
      %v363 = vunpack.c.l.b16 %v184
      %v364 = vunpack.c.h.b16 %v184
      %v365 = vunpack.c.l.b16 %v185
      %v366 = vunpack.c.h.b16 %v185
      %v367 = vunpack.c.l.b16 %v186
      %v368 = vunpack.c.h.b16 %v186
      %v369 = vunpack.c.l.b16 %v187
      %v370 = vunpack.c.h.b16 %v187
      %v371 = vpack.c.b16 %v347, %v339
      %v372 = vpack.c.b16 %v348, %v340
      %v373 = vpack.c.b16 %v349, %v341
      %v374 = vpack.c.b16 %v350, %v342
      %v375 = vpack.c.b16 %v351, %v343
      %v376 = vpack.c.b16 %v352, %v344
      %v377 = vpack.c.b16 %v353, %v345
      %v378 = vpack.c.b16 %v354, %v346
      %v379 = vpack.c.b16 %v363, %v355
      %v380 = vpack.c.b16 %v364, %v356
      %v381 = vpack.c.b16 %v365, %v357
      %v382 = vpack.c.b16 %v366, %v358
      %v383 = vpack.c.b16 %v367, %v359
      %v384 = vpack.c.b16 %v368, %v360
      %v385 = vpack.c.b16 %v369, %v361
      %v386 = vpack.c.b16 %v370, %v362
      %v531 = vunpack.c.l.b16 %v188
      %v532 = vunpack.c.l.b16 %v189
      %v533 = vunpack.c.l.b16 %v190
      %v534 = vunpack.c.l.b16 %v191
      %v535 = vunpack.c.l.b16 %v192
      %v536 = vunpack.c.l.b16 %v193
      %v537 = vunpack.c.l.b16 %v194
      %v538 = vunpack.c.l.b16 %v195
      %v539 = vunpack.c.l.b16 %v196
      %v540 = vunpack.c.l.b16 %v197
      %v541 = vunpack.c.l.b16 %v198
      %v542 = vunpack.c.l.b16 %v199
      %v543 = vunpack.c.l.b16 %v200
      %v544 = vunpack.c.l.b16 %v201
      %v545 = vunpack.c.l.b16 %v202
      %v546 = vunpack.c.l.b16 %v203
      %v547 = vunpack.c.l.b16 %v204
      %v548 = vunpack.c.l.b16 %v205
      %v549 = vunpack.c.l.b16 %v206
      %v550 = vunpack.c.l.b16 %v207
      %v551 = vunpack.c.l.b16 %v208
      %v552 = vunpack.c.l.b16 %v209
      %v553 = vunpack.c.l.b16 %v210
      %v554 = vunpack.c.l.b16 %v211
      %v555 = vunpack.c.l.b16 %v212
      %v556 = vunpack.c.l.b16 %v213
      %v557 = vunpack.c.l.b16 %v214
      %v558 = vunpack.c.l.b16 %v215
      %v559 = vunpack.c.l.b16 %v216
      %v560 = vunpack.c.l.b16 %v217
      %v561 = vunpack.c.l.b16 %v218
      %v562 = vunpack.c.l.b16 %v219
      %v563 = vunpack.c.l.b16 %v220
      %v564 = vunpack.c.l.b16 %v221
      %v565 = vunpack.c.l.b16 %v222
      %v566 = vunpack.c.l.b16 %v223
      %v567 = vunpack.c.l.b16 %v224
      %v568 = vunpack.c.l.b16 %v225
      %v569 = vunpack.c.l.b16 %v226
      %v570 = vunpack.c.l.b16 %v227
      %v571 = vunpack.c.l.b16 %v228
      %v572 = vunpack.c.l.b16 %v229
      %v573 = vunpack.c.l.b16 %v230
      %v574 = vunpack.c.l.b16 %v231
      %v575 = vunpack.c.l.b16 %v232
      %v576 = vunpack.c.l.b16 %v233
      %v577 = vunpack.c.l.b16 %v234
      %v578 = vunpack.c.l.b16 %v235
      %v579 = vunpack.c.l.b16 %v236
      %v580 = vunpack.c.l.b16 %v237
      %v581 = vunpack.c.l.b16 %v238
      %v582 = vunpack.c.l.b16 %v239
      %v583 = vunpack.c.l.b16 %v240
      %v584 = vunpack.c.l.b16 %v241
      %v585 = vunpack.c.l.b16 %v242
      %v586 = vunpack.c.l.b16 %v243
      %v587 = vunpack.c.l.b16 %v244
      %v588 = vunpack.c.l.b16 %v245
      %v589 = vunpack.c.l.b16 %v246
      %v590 = vunpack.c.l.b16 %v247
      %v591 = vunpack.c.l.b16 %v248
      %v592 = vunpack.c.l.b16 %v249
      %v593 = vunpack.c.l.b16 %v250
      %v594 = vunpack.c.l.b16 %v251
      %v595 = vunpack.c.l.b16 %v252
      %v596 = vunpack.c.l.b16 %v253
      %v597 = vunpack.c.l.b16 %v254
      %v598 = vunpack.c.l.b16 %v255
      %v599 = vunpack.c.l.b16 %v256
      %v600 = vunpack.c.l.b16 %v257
      %v601 = vunpack.c.l.b16 %v258
      %v602 = vunpack.c.l.b16 %v259
      %v603 = vunpack.c.l.b16 %v260
      %v604 = vunpack.c.l.b16 %v261
      %v605 = vunpack.c.l.b16 %v262
      %v606 = vunpack.c.l.b16 %v263
      %v607 = vunpack.c.l.b16 %v264
      %v608 = vunpack.c.l.b16 %v265
      %v609 = vunpack.c.l.b16 %v266
      %v610 = vunpack.c.l.b16 %v267
      %v611 = vunpack.c.l.b16 %v268
      %v612 = vunpack.c.l.b16 %v269
      %v613 = vunpack.c.l.b16 %v270
      %v614 = vunpack.c.l.b16 %v271
      %v615 = vunpack.c.l.b16 %v272
      %v616 = vunpack.c.l.b16 %v273
      %v617 = vunpack.c.l.b16 %v274
      %v618 = vunpack.c.l.b16 %v275
      %v619 = vunpack.c.l.b16 %v276
      %v620 = vunpack.c.l.b16 %v277
      %v621 = vunpack.c.l.b16 %v278
      %v622 = vunpack.c.l.b16 %v279
      %v623 = vunpack.c.l.b16 %v280
      %v624 = vunpack.c.l.b16 %v281
      %v625 = vunpack.c.l.b16 %v282
      %v626 = vunpack.c.l.b16 %v283
      %v627 = vunpack.c.l.b16 %v284
      %v628 = vunpack.c.l.b16 %v285
      %v629 = vunpack.c.l.b16 %v286
      %v630 = vunpack.c.l.b16 %v287
      %v631 = vunpack.c.l.b16 %v288
      %v632 = vunpack.c.l.b16 %v289
      %v633 = vunpack.c.l.b16 %v290
      %v634 = vunpack.c.l.b16 %v291
      %v635 = vunpack.c.l.b16 %v292
      %v636 = vunpack.c.l.b16 %v293
      %v637 = vunpack.c.l.b16 %v294
      %v638 = vunpack.c.l.b16 %v295
      %v639 = vunpack.c.l.b16 %v296
      %v640 = vunpack.c.l.b16 %v297
      %v641 = vunpack.c.l.b16 %v298
      %v642 = vunpack.c.l.b16 %v299
      %v643 = vunpack.c.l.b16 %v300
      %v644 = vunpack.c.l.b16 %v301
      %v645 = vunpack.c.l.b16 %v302
      %v646 = vunpack.c.l.b16 %v303
      %v647 = vunpack.c.l.b16 %v304
      %v648 = vunpack.c.l.b16 %v305
      %v649 = vunpack.c.l.b16 %v306
      %v650 = vunpack.c.l.b16 %v307
      %v651 = vunpack.c.l.b16 %v308
      %v652 = vunpack.c.l.b16 %v309
      %v653 = vunpack.c.l.b16 %v310
      %v654 = vunpack.c.l.b16 %v311
      %v655 = vunpack.c.l.b16 %v312
      %v656 = vunpack.c.l.b16 %v313
      %v657 = vunpack.c.l.b16 %v314
      %v658 = vunpack.c.l.b16 %v315
      %v659 = vpack.c.b16 %v532, %v531
      %v660 = vpack.c.b16 %v534, %v533
      %v661 = vpack.c.b16 %v536, %v535
      %v662 = vpack.c.b16 %v538, %v537
      %v663 = vpack.c.b16 %v540, %v539
      %v664 = vpack.c.b16 %v542, %v541
      %v665 = vpack.c.b16 %v544, %v543
      %v666 = vpack.c.b16 %v546, %v545
      %v667 = vpack.c.b16 %v548, %v547
      %v668 = vpack.c.b16 %v550, %v549
      %v669 = vpack.c.b16 %v552, %v551
      %v670 = vpack.c.b16 %v554, %v553
      %v671 = vpack.c.b16 %v556, %v555
      %v672 = vpack.c.b16 %v558, %v557
      %v673 = vpack.c.b16 %v560, %v559
      %v674 = vpack.c.b16 %v562, %v561
      %v675 = vpack.c.b16 %v564, %v563
      %v676 = vpack.c.b16 %v566, %v565
      %v677 = vpack.c.b16 %v568, %v567
      %v678 = vpack.c.b16 %v570, %v569
      %v679 = vpack.c.b16 %v572, %v571
      %v680 = vpack.c.b16 %v574, %v573
      %v681 = vpack.c.b16 %v576, %v575
      %v682 = vpack.c.b16 %v578, %v577
      %v683 = vpack.c.b16 %v580, %v579
      %v684 = vpack.c.b16 %v582, %v581
      %v685 = vpack.c.b16 %v584, %v583
      %v686 = vpack.c.b16 %v586, %v585
      %v687 = vpack.c.b16 %v588, %v587
      %v688 = vpack.c.b16 %v590, %v589
      %v689 = vpack.c.b16 %v592, %v591
      %v690 = vpack.c.b16 %v594, %v593
      %v691 = vpack.c.b16 %v596, %v595
      %v692 = vpack.c.b16 %v598, %v597
      %v693 = vpack.c.b16 %v600, %v599
      %v694 = vpack.c.b16 %v602, %v601
      %v695 = vpack.c.b16 %v604, %v603
      %v696 = vpack.c.b16 %v606, %v605
      %v697 = vpack.c.b16 %v608, %v607
      %v698 = vpack.c.b16 %v610, %v609
      %v699 = vpack.c.b16 %v612, %v611
      %v700 = vpack.c.b16 %v614, %v613
      %v701 = vpack.c.b16 %v616, %v615
      %v702 = vpack.c.b16 %v618, %v617
      %v703 = vpack.c.b16 %v620, %v619
      %v704 = vpack.c.b16 %v622, %v621
      %v705 = vpack.c.b16 %v624, %v623
      %v706 = vpack.c.b16 %v626, %v625
      %v707 = vpack.c.b16 %v628, %v627
      %v708 = vpack.c.b16 %v630, %v629
      %v709 = vpack.c.b16 %v632, %v631
      %v710 = vpack.c.b16 %v634, %v633
      %v711 = vpack.c.b16 %v636, %v635
      %v712 = vpack.c.b16 %v638, %v637
      %v713 = vpack.c.b16 %v640, %v639
      %v714 = vpack.c.b16 %v642, %v641
      %v715 = vpack.c.b16 %v644, %v643
      %v716 = vpack.c.b16 %v646, %v645
      %v717 = vpack.c.b16 %v648, %v647
      %v718 = vpack.c.b16 %v650, %v649
      %v719 = vpack.c.b16 %v652, %v651
      %v720 = vpack.c.b16 %v654, %v653
      %v721 = vpack.c.b16 %v656, %v655
      %v722 = vpack.c.b16 %v658, %v657
      %787 = vmatprep.subr.bf16.mxu0 0
      %788 = vmatpush1.bf16.msra.mxu0 %v659
      %789 = vmatprep.subr.bf16.mxu0 0
      %790 = vmatpush1.bf16.msra.mxu0 %v660
      %791 = vmatprep.subr.bf16.mxu0 0
      %792 = vmatpush1.bf16.msra.mxu0 %v661
      %793 = vmatprep.subr.bf16.mxu0 0
      %794 = vmatpush1.bf16.msra.mxu0 %v662
      %795 = vmatprep.subr.bf16.mxu0 0
      %796 = vmatpush1.bf16.msra.mxu0 %v663
      %797 = vmatprep.subr.bf16.mxu0 0
      %798 = vmatpush1.bf16.msra.mxu0 %v664
      %799 = vmatprep.subr.bf16.mxu0 0
      %800 = vmatpush1.bf16.msra.mxu0 %v665
      %801 = vmatprep.subr.bf16.mxu0 0
      %802 = vmatpush1.bf16.msra.mxu0 %v666
      %803 = vmatprep.subr.bf16.mxu0 0
      %804 = vmatpush1.bf16.msra.mxu0 %v667
      %805 = vmatprep.subr.bf16.mxu0 0
      %806 = vmatpush1.bf16.msra.mxu0 %v668
      %807 = vmatprep.subr.bf16.mxu0 0
      %808 = vmatpush1.bf16.msra.mxu0 %v669
      %809 = vmatprep.subr.bf16.mxu0 0
      %810 = vmatpush1.bf16.msra.mxu0 %v670
      %811 = vmatprep.subr.bf16.mxu0 0
      %812 = vmatpush1.bf16.msra.mxu0 %v671
      %813 = vmatprep.subr.bf16.mxu0 0
      %814 = vmatpush1.bf16.msra.mxu0 %v672
      %815 = vmatprep.subr.bf16.mxu0 0
      %816 = vmatpush1.bf16.msra.mxu0 %v673
      %817 = vmatprep.subr.bf16.mxu0 0
      %818 = vmatpush1.bf16.msra.mxu0 %v674
      %819 = vmatprep.mubr.bf16.mxu0 %v372
      %820 = vmatmul.mubr.bf16.gmra.mrb[0].mxu0 %v371
      %v821 = vpop.f32.mrb[0].mxu0
      %v822 = vadd.f32 %v321, %v821
      %v823 = vpop.f32.mrb[0].mxu0
      %v824 = vpop.f32.mrb[0].mxu0
      %v825 = vadd.f32 %v321, %v824
      %v826 = vpop.f32.mrb[0].mxu0
      %827 = vmatprep.mubr.bf16.mxu0 %v380
      %828 = vmatmul.mubr.bf16.gmra.mrb[0].mxu0 %v379
      %v829 = vpop.f32.mrb[0].mxu0
      %v830 = vadd.f32 %v321, %v829
      %v831 = vpop.f32.mrb[0].mxu0
      %v832 = vpop.f32.mrb[0].mxu0
      %v833 = vadd.f32 %v321, %v832
      %v834 = vpop.f32.mrb[0].mxu0
      %835 = vdwg.mxu0
      %836 = vmatprep.subr.bf16.mxu0 0
      %837 = vmatpush1.bf16.msra.mxu0 %v675
      %838 = vmatprep.subr.bf16.mxu0 0
      %839 = vmatpush1.bf16.msra.mxu0 %v676
      %840 = vmatprep.subr.bf16.mxu0 0
      %841 = vmatpush1.bf16.msra.mxu0 %v677
      %842 = vmatprep.subr.bf16.mxu0 0
      %843 = vmatpush1.bf16.msra.mxu0 %v678
      %844 = vmatprep.subr.bf16.mxu0 0
      %845 = vmatpush1.bf16.msra.mxu0 %v679
      %846 = vmatprep.subr.bf16.mxu0 0
      %847 = vmatpush1.bf16.msra.mxu0 %v680
      %848 = vmatprep.subr.bf16.mxu0 0
      %849 = vmatpush1.bf16.msra.mxu0 %v681
      %850 = vmatprep.subr.bf16.mxu0 0
      %851 = vmatpush1.bf16.msra.mxu0 %v682
      %852 = vmatprep.subr.bf16.mxu0 0
      %853 = vmatpush1.bf16.msra.mxu0 %v683
      %854 = vmatprep.subr.bf16.mxu0 0
      %855 = vmatpush1.bf16.msra.mxu0 %v684
      %856 = vmatprep.subr.bf16.mxu0 0
      %857 = vmatpush1.bf16.msra.mxu0 %v685
      %858 = vmatprep.subr.bf16.mxu0 0
      %859 = vmatpush1.bf16.msra.mxu0 %v686
      %860 = vmatprep.subr.bf16.mxu0 0
      %861 = vmatpush1.bf16.msra.mxu0 %v687
      %862 = vmatprep.subr.bf16.mxu0 0
      %863 = vmatpush1.bf16.msra.mxu0 %v688
      %864 = vmatprep.subr.bf16.mxu0 0
      %865 = vmatpush1.bf16.msra.mxu0 %v689
      %866 = vmatprep.subr.bf16.mxu0 0
      %867 = vmatpush1.bf16.msra.mxu0 %v690
      %868 = vmatprep.mubr.bf16.mxu0 %v374
      %869 = vmatmul.mubr.bf16.gmra.mrb[0].mxu0 %v373
      %v870 = vpop.f32.mrb[0].mxu0
      %v871 = vadd.f32 %v822, %v870
      %v872 = vpop.f32.mrb[0].mxu0
      %v873 = vpop.f32.mrb[0].mxu0
      %v874 = vadd.f32 %v825, %v873
      %v875 = vpop.f32.mrb[0].mxu0
      %876 = vmatprep.mubr.bf16.mxu0 %v382
      %877 = vmatmul.mubr.bf16.gmra.mrb[0].mxu0 %v381
      %v878 = vpop.f32.mrb[0].mxu0
      %v879 = vadd.f32 %v830, %v878
      %v880 = vpop.f32.mrb[0].mxu0
      %v881 = vpop.f32.mrb[0].mxu0
      %v882 = vadd.f32 %v833, %v881
      %v883 = vpop.f32.mrb[0].mxu0
      %884 = vdwg.mxu0
      %885 = vmatprep.subr.bf16.mxu0 0
      %886 = vmatpush1.bf16.msra.mxu0 %v691
      %887 = vmatprep.subr.bf16.mxu0 0
      %888 = vmatpush1.bf16.msra.mxu0 %v692
      %889 = vmatprep.subr.bf16.mxu0 0
      %890 = vmatpush1.bf16.msra.mxu0 %v693
      %891 = vmatprep.subr.bf16.mxu0 0
      %892 = vmatpush1.bf16.msra.mxu0 %v694
      %893 = vmatprep.subr.bf16.mxu0 0
      %894 = vmatpush1.bf16.msra.mxu0 %v695
      %895 = vmatprep.subr.bf16.mxu0 0
      %896 = vmatpush1.bf16.msra.mxu0 %v696
      %897 = vmatprep.subr.bf16.mxu0 0
      %898 = vmatpush1.bf16.msra.mxu0 %v697
      %899 = vmatprep.subr.bf16.mxu0 0
      %900 = vmatpush1.bf16.msra.mxu0 %v698
      %901 = vmatprep.subr.bf16.mxu0 0
      %902 = vmatpush1.bf16.msra.mxu0 %v699
      %903 = vmatprep.subr.bf16.mxu0 0
      %904 = vmatpush1.bf16.msra.mxu0 %v700
      %905 = vmatprep.subr.bf16.mxu0 0
      %906 = vmatpush1.bf16.msra.mxu0 %v701
      %907 = vmatprep.subr.bf16.mxu0 0
      %908 = vmatpush1.bf16.msra.mxu0 %v702
      %909 = vmatprep.subr.bf16.mxu0 0
      %910 = vmatpush1.bf16.msra.mxu0 %v703
      %911 = vmatprep.subr.bf16.mxu0 0
      %912 = vmatpush1.bf16.msra.mxu0 %v704
      %913 = vmatprep.subr.bf16.mxu0 0
      %914 = vmatpush1.bf16.msra.mxu0 %v705
      %915 = vmatprep.subr.bf16.mxu0 0
      %916 = vmatpush1.bf16.msra.mxu0 %v706
      %917 = vmatprep.mubr.bf16.mxu0 %v376
      %918 = vmatmul.mubr.bf16.gmra.mrb[0].mxu0 %v375
      %v919 = vpop.f32.mrb[0].mxu0
      %v920 = vadd.f32 %v871, %v919
      %v921 = vpop.f32.mrb[0].mxu0
      %v922 = vpop.f32.mrb[0].mxu0
      %v923 = vadd.f32 %v874, %v922
      %v924 = vpop.f32.mrb[0].mxu0
      %925 = vmatprep.mubr.bf16.mxu0 %v384
      %926 = vmatmul.mubr.bf16.gmra.mrb[0].mxu0 %v383
      %v927 = vpop.f32.mrb[0].mxu0
      %v928 = vadd.f32 %v879, %v927
      %v929 = vpop.f32.mrb[0].mxu0
      %v930 = vpop.f32.mrb[0].mxu0
      %v931 = vadd.f32 %v882, %v930
      %v932 = vpop.f32.mrb[0].mxu0
      %933 = vdwg.mxu0
      %934 = vmatprep.subr.bf16.mxu0 0
      %935 = vmatpush1.bf16.msra.mxu0 %v707
      %936 = vmatprep.subr.bf16.mxu0 0
      %937 = vmatpush1.bf16.msra.mxu0 %v708
      %938 = vmatprep.subr.bf16.mxu0 0
      %939 = vmatpush1.bf16.msra.mxu0 %v709
      %940 = vmatprep.subr.bf16.mxu0 0
      %941 = vmatpush1.bf16.msra.mxu0 %v710
      %942 = vmatprep.subr.bf16.mxu0 0
      %943 = vmatpush1.bf16.msra.mxu0 %v711
      %944 = vmatprep.subr.bf16.mxu0 0
      %945 = vmatpush1.bf16.msra.mxu0 %v712
      %946 = vmatprep.subr.bf16.mxu0 0
      %947 = vmatpush1.bf16.msra.mxu0 %v713
      %948 = vmatprep.subr.bf16.mxu0 0
      %949 = vmatpush1.bf16.msra.mxu0 %v714
      %950 = vmatprep.subr.bf16.mxu0 0
      %951 = vmatpush1.bf16.msra.mxu0 %v715
      %952 = vmatprep.subr.bf16.mxu0 0
      %953 = vmatpush1.bf16.msra.mxu0 %v716
      %954 = vmatprep.subr.bf16.mxu0 0
      %955 = vmatpush1.bf16.msra.mxu0 %v717
      %956 = vmatprep.subr.bf16.mxu0 0
      %957 = vmatpush1.bf16.msra.mxu0 %v718
      %958 = vmatprep.subr.bf16.mxu0 0
      %959 = vmatpush1.bf16.msra.mxu0 %v719
      %960 = vmatprep.subr.bf16.mxu0 0
      %961 = vmatpush1.bf16.msra.mxu0 %v720
      %962 = vmatprep.subr.bf16.mxu0 0
      %963 = vmatpush1.bf16.msra.mxu0 %v721
      %964 = vmatprep.subr.bf16.mxu0 0
      %965 = vmatpush1.bf16.msra.mxu0 %v722
      %966 = vmatprep.mubr.bf16.mxu0 %v378
      %967 = vmatmul.mubr.bf16.gmra.mrb[0].mxu0 %v377
      %v968 = vpop.f32.mrb[0].mxu0
      %v969 = vadd.f32 %v920, %v968
      %v970 = vpop.f32.mrb[0].mxu0
      %v971 = vpop.f32.mrb[0].mxu0
      %v972 = vadd.f32 %v923, %v971
      %v973 = vpop.f32.mrb[0].mxu0
      %974 = vmatprep.mubr.bf16.mxu0 %v386
      %975 = vmatmul.mubr.bf16.gmra.mrb[0].mxu0 %v385
      %v976 = vpop.f32.mrb[0].mxu0
      %v977 = vadd.f32 %v928, %v976
      %v978 = vpop.f32.mrb[0].mxu0
      %v979 = vpop.f32.mrb[0].mxu0
      %v980 = vadd.f32 %v931, %v979
      %v981 = vpop.f32.mrb[0].mxu0
      %982 = vdwg.mxu0
      %v983 = vadd.f32 %v969, %v972
      %v984 = vadd.f32 %v983, %v977
      %vm985 = vcmask 1042432
      %v986 = vsel %vm985, %v980, 0.0
      %v987 = vadd.f32 %v984, %v986
      %v988 = vrot.slane %v987, 4
      %v989 = vadd.f32 %v987, %v988
      %v990 = vrot.slane %v989, 2
      %v991 = vadd.f32 %v989, %v990
      %v992 = vrot.slane %v991, 1
      %v993 = vadd.f32 %v991, %v992
      %v994 = vmul.f32 %v993, 0.037037037
      %v995 = vmul.f32 %v969, %v969
      %v996 = vmul.f32 %v972, %v972
      %v997 = vmul.f32 %v977, %v977
      %v998 = vmul.f32 %v980, %v980
      %v999 = vadd.f32 %v995, %v996
      %v1000 = vadd.f32 %v999, %v997
      %v1001 = vsel %vm985, %v998, 0.0
      %v1002 = vadd.f32 %v1000, %v1001
      %v1003 = vrot.slane %v1002, 4
      %v1004 = vadd.f32 %v1002, %v1003
      %v1005 = vrot.slane %v1004, 2
      %v1006 = vadd.f32 %v1004, %v1005
      %v1007 = vrot.slane %v1006, 1
      %v1008 = vadd.f32 %v1006, %v1007
      %v1009 = vmul.f32 %v1008, 0.037037037
      %v1010 = vmul.f32 %v994, %v994
      %v1011 = vsub.f32 %v1009, %v1010
      %v1012 = vmax.f32 %v1011, 0.0
      %v1013 = vsub.f32 %v969, %v994
      %v1014 = vsub.f32 %v972, %v994
      %v1015 = vsub.f32 %v977, %v994
      %v1016 = vsub.f32 %v980, %v994
      %v1017 = vadd.f32 %v1012, 1e-05
      %v1018 = vrsqrt.pop %v1017
      %v1019 = vmul.f32 %v1013, %v1018
      %v1020 = vmul.f32 %v1014, %v1018
      %v1021 = vmul.f32 %v1015, %v1018
      %v1022 = vmul.f32 %v1016, %v1018
      %vm1023 = vcmp.ge.f32.partialorder %v1019, 0.0
      %vm1024 = vcmp.ge.f32.partialorder %v1020, 0.0
      %vm1025 = vcmp.ge.f32.partialorder %v1021, 0.0
      %vm1026 = vcmp.ge.f32.partialorder %v1022, 0.0
      %v1027 = vmul.f32 %v1019, 0.01
      %v1028 = vmul.f32 %v1020, 0.01
      %v1029 = vmul.f32 %v1021, 0.01
      %v1030 = vmul.f32 %v1022, 0.01
      %v1031 = vsel %vm1023, %v1019, %v1027
      %v1032 = vsel %vm1024, %v1020, %v1028
      %v1033 = vsel %vm1025, %v1021, %v1029
      %v1034 = vsel %vm1026, %v1022, %v1030
      %1035 = vst [vmem:[%s170] sm:$0xff] %v1031
      %1036 = vst [vmem:[%s170 + $0x8] sm:$0xff] %v1032
      %1037 = vst [vmem:[%s170 + $0x10] sm:$0xff] %v1033
      %1038 = vst [vmem:[%s170 + $0x18] sm:$0x7] %v1034
      %p1039 = scmp.lt.s32.totalorder %s14, 1
      %s1040 = scalar_select %p1039, %s14, 1
      %s1041 = smul.addr %s1040, 4
      %s1042 = smul.addr %s1041, 8
      %s1043 = scalar_lea.vmem %s3, %s1042
      // Predicated region
      $region33: #{_lambda_.6} parent=31 // pred_check
        %p1044 = pneg %p100
      $region34: #{_lambda_.6} parent=31 // pred_check_branch
        %1046 = sbr.rel (%p1044) target = $region36
      $region35: #{_lambda_.6} parent=31 // pred_region
        _
      $region36: #{_lambda_.6} parent=31 // pred_fallthru
        _
    $region32: #{_lambda_.6} parent=5 // pred_fallthru
      _
    %p1047 = scmp.le.s32.totalorder 2, %s9
    // Predicated region
    $region37: #{_lambda_.6} parent=5 // pred_check
      %p1048 = pneg %p1047
    $region38: #{_lambda_.6} parent=5 // pred_check_branch
      %1050 = sbr.rel (%p1048) target = $region40
    $region39: #{_lambda_.6} parent=5 // pred_region
      %s1051 = ssub.s32 %s9, 2
      // Predicated region
      $region41: #{_lambda_.6} parent=39 // pred_check
        %p1052 = pneg %p106
      $region42: #{_lambda_.6} parent=39 // pred_check_branch
        %1054 = sbr.rel (%p1052) target = $region44
      $region43: #{_lambda_.6} parent=39 // pred_region
        %p1055 = scmp.lt.s32.totalorder %s15, 1
        %s1056 = scalar_select %p1055, %s15, 1
        %s1057 = smul.addr %s1056, 4
        %s1058 = smul.addr %s1057, 8
        %s1059 = scalar_lea.vmem %s3, %s1058
      $region44: #{_lambda_.6} parent=39 // pred_fallthru
        _
    $region40: #{_lambda_.6} parent=5 // pred_fallthru
      _
  $region6: #{_lambda_.6} parent=0 // loop_footer
    %s13 = sadd.s32 1, %s9
  $region7: #{_lambda_.6} parent=0 // loop_footer_branch
    %8 = sbr.rel target = $region3
  $region8: #{_lambda_.6} parent=0 // loop_exit
    _

// kernel: _lambda_.7
$region0: #{_lambda_.7}
  #allocation0 [shape = 'u32[]', space=smem, size = 0x4, offset = 0x4, fixed_abs, tag = 'smem constant byte address 0x4 - core index']
  #allocation1 [shape = 'u32[144,128]{1,0:T(1,128)}', space=vmem, size = 0x12000, scoped, tag = 'internal scratch']
  %s0 = inlined_call_operand.vmem [shape: bf16[2,64,2048], index: 0, kind: input, shape index: {}]
  %s1 = inlined_call_operand.vmem [shape: bf16[2048,128], index: 1, kind: input, shape index: {}]
  %s2 = inlined_call_operand.vmem [shape: f32[1,128], index: 2, kind: input, shape index: {}]
  %s3 = inlined_call_operand.vmem [shape: f32[2,64,128], index: 3, kind: output, shape index: {}]
  %s4 = sld [smem:[#allocation0]]
  $region45: #{_lambda_.7} parent=0
    _
  %s6 = ssub.s32 1, %s4
  %s7 = scalar_select 0, %s6, %s4
  loop: start=0, step=1, limit=4
  $region2: #{_lambda_.7} parent=0 // loop_pre_header
    _
  $region3: #{_lambda_.7} parent=0 // loop_header
    %s9 = sphi 0, %s13
    %p10 = scmp.ge.s32.totalorder %s9, 4
    %s19 = sphi 0, %s21
    %s22 = sphi 0, %s19
    %s23 = sphi 0, %s22
    %s39 = sphi 0, %s23
    %s43 = sphi 0, %s43
    %s45 = sphi 0, %s43
    %s46 = sphi 0, %s45
    %s60 = sphi 0, %s46
    %s64 = sphi 0, %s64
    %s66 = sphi 0, %s64
    %s67 = sphi 0, %s66
    %s81 = sphi 0, %s67
    %s87 = sphi 0, %s89
    %s90 = sphi 0, %s87
    %s91 = sphi 0, %s90
    %s107 = sphi 0, %s91
  $region4: #{_lambda_.7} parent=0 // loop_header_branch
    %12 = sbr.rel (%p10) target = $region8
  $region5: #{_lambda_.7} parent=0 // loop_body
    %s14 = ssub.s32 %s9, 1
    %s15 = ssub.s32 %s9, 2
    %s16 = sadd.s32 %s9, 1
    %s17 = ssub.s32 %s9, %s16
    %p18 = scmp.eq.s32.totalorder %s17, 0
    %s20 = sadd.s32 %s19, 1
    %s21 = scalar_select %p18, %s19, %s20
    %p24 = pneg %p18
    %p25 = scmp.eq.s32.totalorder %s9, 1
    %p26 = por %p24, %p25
    %p27 = scmp.ne.s32.totalorder %s19, %s22
    %p28 = scmp.eq.s32.totalorder %s9, 0
    %p29 = por %p27, %p28
    %p30 = scmp.ne.s32.totalorder %s19, %s22
    %p31 = scmp.eq.s32.totalorder %s14, 1
    %p32 = por %p30, %p31
    %p33 = scmp.ne.s32.totalorder %s22, %s23
    %p34 = scmp.eq.s32.totalorder %s14, 0
    %p35 = por %p33, %p34
    %p36 = scmp.ne.s32.totalorder %s22, %s23
    %p37 = scmp.eq.s32.totalorder %s15, 1
    %p38 = por %p36, %p37
    %p40 = scmp.ne.s32.totalorder %s23, %s39
    %p41 = scmp.eq.s32.totalorder %s15, 0
    %p42 = por %p40, %p41
    %s44 = sadd.s32 %s43, 1
    %p47 = scmp.eq.s32.totalorder %s9, 1
    %p48 = scmp.ne.s32.totalorder %s43, %s45
    %p49 = scmp.eq.s32.totalorder %s9, 0
    %p50 = por %p48, %p49
    %p51 = scmp.ne.s32.totalorder %s43, %s45
    %p52 = scmp.eq.s32.totalorder %s14, 1
    %p53 = por %p51, %p52
    %p54 = scmp.ne.s32.totalorder %s45, %s46
    %p55 = scmp.eq.s32.totalorder %s14, 0
    %p56 = por %p54, %p55
    %p57 = scmp.ne.s32.totalorder %s45, %s46
    %p58 = scmp.eq.s32.totalorder %s15, 1
    %p59 = por %p57, %p58
    %p61 = scmp.ne.s32.totalorder %s46, %s60
    %p62 = scmp.eq.s32.totalorder %s15, 0
    %p63 = por %p61, %p62
    %s65 = sadd.s32 %s64, 1
    %p68 = scmp.eq.s32.totalorder %s9, 1
    %p69 = scmp.ne.s32.totalorder %s64, %s66
    %p70 = scmp.eq.s32.totalorder %s9, 0
    %p71 = por %p69, %p70
    %p72 = scmp.ne.s32.totalorder %s64, %s66
    %p73 = scmp.eq.s32.totalorder %s14, 1
    %p74 = por %p72, %p73
    %p75 = scmp.ne.s32.totalorder %s66, %s67
    %p76 = scmp.eq.s32.totalorder %s14, 0
    %p77 = por %p75, %p76
    %p78 = scmp.ne.s32.totalorder %s66, %s67
    %p79 = scmp.eq.s32.totalorder %s15, 1
    %p80 = por %p78, %p79
    %p82 = scmp.ne.s32.totalorder %s67, %s81
    %p83 = scmp.eq.s32.totalorder %s15, 0
    %p84 = por %p82, %p83
    %s85 = ssub.s32 %s9, %s16
    %p86 = scmp.eq.s32.totalorder %s85, 0
    %s88 = sadd.s32 %s87, 1
    %s89 = scalar_select %p86, %s87, %s88
    %p92 = pneg %p86
    %p93 = scmp.eq.s32.totalorder %s9, 1
    %p94 = por %p92, %p93
    %p95 = scmp.ne.s32.totalorder %s87, %s90
    %p96 = scmp.eq.s32.totalorder %s9, 0
    %p97 = por %p95, %p96
    %p98 = scmp.ne.s32.totalorder %s87, %s90
    %p99 = scmp.eq.s32.totalorder %s14, 1
    %p100 = por %p98, %p99
    %p101 = scmp.ne.s32.totalorder %s90, %s91
    %p102 = scmp.eq.s32.totalorder %s14, 0
    %p103 = por %p101, %p102
    %p104 = scmp.ne.s32.totalorder %s90, %s91
    %p105 = scmp.eq.s32.totalorder %s15, 1
    %p106 = por %p104, %p105
    %p108 = scmp.ne.s32.totalorder %s91, %s107
    %p109 = scmp.eq.s32.totalorder %s15, 0
    %p110 = por %p108, %p109
    %p111 = scmp.le.s32.totalorder 1, %s9
    %p112 = scmp.lt.s32.totalorder %s9, 3
    %p113 = pnand %p111, %p112
    %p114 = pneg %p113
    // Predicated region
    $region9: #{_lambda_.7} parent=5 // pred_check
      _
    $region10: #{_lambda_.7} parent=5 // pred_check_branch
      %116 = sbr.rel (%p113) target = $region12
    $region11: #{_lambda_.7} parent=5 // pred_region
      %s117 = ssub.s32 %s9, 1
      // Predicated region
      $region13: #{_lambda_.7} parent=11 // pred_check
        %p118 = pneg %p56
      $region14: #{_lambda_.7} parent=11 // pred_check_branch
        %120 = sbr.rel (%p118) target = $region16
      $region15: #{_lambda_.7} parent=11 // pred_region
        _
      $region16: #{_lambda_.7} parent=11 // pred_fallthru
        _
      // Predicated region
      $region17: #{_lambda_.7} parent=11 // pred_check
        %p121 = pneg %p77
      $region18: #{_lambda_.7} parent=11 // pred_check_branch
        %123 = sbr.rel (%p121) target = $region20
      $region19: #{_lambda_.7} parent=11 // pred_region
        _
      $region20: #{_lambda_.7} parent=11 // pred_fallthru
        _
    $region12: #{_lambda_.7} parent=5 // pred_fallthru
      _
    %p124 = scmp.lt.s32.totalorder %s9, 2
    // Predicated region
    $region21: #{_lambda_.7} parent=5 // pred_check
      %p125 = pneg %p124
    $region22: #{_lambda_.7} parent=5 // pred_check_branch
      %127 = sbr.rel (%p125) target = $region24
    $region23: #{_lambda_.7} parent=5 // pred_region
      // Predicated region
      $region25: #{_lambda_.7} parent=23 // pred_check
        %p128 = pneg %p29
      $region26: #{_lambda_.7} parent=23 // pred_check_branch
        %130 = sbr.rel (%p128) target = $region28
      $region27: #{_lambda_.7} parent=23 // pred_region
        %p131 = scmp.lt.s32.totalorder %s9, 1
        %s132 = scalar_select %p131, %s9, 1
        %s133 = smul.addr %s132, 128
        %s134 = smul.addr %s133, 4
        %s135 = scalar_lea.vmem %s0, %s134
      $region28: #{_lambda_.7} parent=23 // pred_fallthru
        _
    $region24: #{_lambda_.7} parent=5 // pred_fallthru
      _
    %p136 = scmp.le.s32.totalorder 1, %s9
    %p137 = scmp.lt.s32.totalorder %s9, 3
    %p138 = pnand %p136, %p137
    %p139 = pneg %p138
    // Predicated region
    $region29: #{_lambda_.7} parent=5 // pred_check
      _
    $region30: #{_lambda_.7} parent=5 // pred_check_branch
      %141 = sbr.rel (%p138) target = $region32
    $region31: #{_lambda_.7} parent=5 // pred_region
      %s142 = ssub.s32 %s9, 1
      %p143 = scmp.lt.s32.totalorder %s14, 1
      %s144 = scalar_select %p143, %s14, 1
      %s145 = smul.addr %s144, 128
      %s146 = smul.addr %s145, 4
      %s147 = scalar_lea.vmem %s0, %s146
      %p148 = pneg %p35
      %p149 = pneg %p32
      %p150 = pneg %p56
      %p151 = pneg %p53
      %p152 = pneg %p77
      %p153 = pneg %p74
      %p154 = pneg %p103
      %p155 = pneg %p100
      %p156 = scmp.lt.s32.totalorder %s14, 1
      %s157 = scalar_select %p156, %s14, 1
      %s158 = smul.addr %s157, 8
      %s159 = smul.addr %s158, 8
      %s160 = scalar_lea.vmem %s3, %s159
      %p161 = scmp.lt.s32.totalorder %s14, 1
      %s162 = scalar_select %p161, %s14, 1
      %s163 = smul.addr %s162, 128
      %s164 = smul.addr %s163, 4
      %s165 = scalar_lea.vmem %s0, %s164
      %p166 = scmp.lt.s32.totalorder %s14, 1
      %s167 = scalar_select %p166, %s14, 1
      %s168 = smul.addr %s167, 8
      %s169 = smul.addr %s168, 8
      %s170 = scalar_lea.vmem %s3, %s169
      %v172 = vld [vmem:[%s165] sm:$0xff]
      %v173 = vld [vmem:[%s165 + $0x8] sm:$0xff]
      %v174 = vld [vmem:[%s165 + $0x10] sm:$0xff]
      %v175 = vld [vmem:[%s165 + $0x18] sm:$0xff]
      %v176 = vld [vmem:[%s165 + $0x20] sm:$0xff]
      %v177 = vld [vmem:[%s165 + $0x28] sm:$0xff]
      %v178 = vld [vmem:[%s165 + $0x30] sm:$0xff]
      %v179 = vld [vmem:[%s165 + $0x38] sm:$0xff]
      %v180 = vld [vmem:[%s165 + $0x40] sm:$0xff]
      %v181 = vld [vmem:[%s165 + $0x48] sm:$0xff]
      %v182 = vld [vmem:[%s165 + $0x50] sm:$0xff]
      %v183 = vld [vmem:[%s165 + $0x58] sm:$0xff]
      %v184 = vld [vmem:[%s165 + $0x60] sm:$0xff]
      %v185 = vld [vmem:[%s165 + $0x68] sm:$0xff]
      %v186 = vld [vmem:[%s165 + $0x70] sm:$0xff]
      %v187 = vld [vmem:[%s165 + $0x78] sm:$0xff]
      %v188 = vld [vmem:[%s165 + $0x80] sm:$0xff]
      %v189 = vld [vmem:[%s165 + $0x88] sm:$0xff]
      %v190 = vld [vmem:[%s165 + $0x90] sm:$0xff]
      %v191 = vld [vmem:[%s165 + $0x98] sm:$0xff]
      %v192 = vld [vmem:[%s165 + $0xa0] sm:$0xff]
      %v193 = vld [vmem:[%s165 + $0xa8] sm:$0xff]
      %v194 = vld [vmem:[%s165 + $0xb0] sm:$0xff]
      %v195 = vld [vmem:[%s165 + $0xb8] sm:$0xff]
      %v196 = vld [vmem:[%s165 + $0xc0] sm:$0xff]
      %v197 = vld [vmem:[%s165 + $0xc8] sm:$0xff]
      %v198 = vld [vmem:[%s165 + $0xd0] sm:$0xff]
      %v199 = vld [vmem:[%s165 + $0xd8] sm:$0xff]
      %v200 = vld [vmem:[%s165 + $0xe0] sm:$0xff]
      %v201 = vld [vmem:[%s165 + $0xe8] sm:$0xff]
      %v202 = vld [vmem:[%s165 + $0xf0] sm:$0xff]
      %v203 = vld [vmem:[%s165 + $0xf8] sm:$0xff]
      %v204 = vld [vmem:[%s165 + $0x100] sm:$0xff]
      %v205 = vld [vmem:[%s165 + $0x108] sm:$0xff]
      %v206 = vld [vmem:[%s165 + $0x110] sm:$0xff]
      %v207 = vld [vmem:[%s165 + $0x118] sm:$0xff]
      %v208 = vld [vmem:[%s165 + $0x120] sm:$0xff]
      %v209 = vld [vmem:[%s165 + $0x128] sm:$0xff]
      %v210 = vld [vmem:[%s165 + $0x130] sm:$0xff]
      %v211 = vld [vmem:[%s165 + $0x138] sm:$0xff]
      %v212 = vld [vmem:[%s165 + $0x140] sm:$0xff]
      %v213 = vld [vmem:[%s165 + $0x148] sm:$0xff]
      %v214 = vld [vmem:[%s165 + $0x150] sm:$0xff]
      %v215 = vld [vmem:[%s165 + $0x158] sm:$0xff]
      %v216 = vld [vmem:[%s165 + $0x160] sm:$0xff]
      %v217 = vld [vmem:[%s165 + $0x168] sm:$0xff]
      %v218 = vld [vmem:[%s165 + $0x170] sm:$0xff]
      %v219 = vld [vmem:[%s165 + $0x178] sm:$0xff]
      %v220 = vld [vmem:[%s165 + $0x180] sm:$0xff]
      %v221 = vld [vmem:[%s165 + $0x188] sm:$0xff]
      %v222 = vld [vmem:[%s165 + $0x190] sm:$0xff]
      %v223 = vld [vmem:[%s165 + $0x198] sm:$0xff]
      %v224 = vld [vmem:[%s165 + $0x1a0] sm:$0xff]
      %v225 = vld [vmem:[%s165 + $0x1a8] sm:$0xff]
      %v226 = vld [vmem:[%s165 + $0x1b0] sm:$0xff]
      %v227 = vld [vmem:[%s165 + $0x1b8] sm:$0xff]
      %v228 = vld [vmem:[%s165 + $0x1c0] sm:$0xff]
      %v229 = vld [vmem:[%s165 + $0x1c8] sm:$0xff]
      %v230 = vld [vmem:[%s165 + $0x1d0] sm:$0xff]
      %v231 = vld [vmem:[%s165 + $0x1d8] sm:$0xff]
      %v232 = vld [vmem:[%s165 + $0x1e0] sm:$0xff]
      %v233 = vld [vmem:[%s165 + $0x1e8] sm:$0xff]
      %v234 = vld [vmem:[%s165 + $0x1f0] sm:$0xff]
      %v235 = vld [vmem:[%s165 + $0x1f8] sm:$0xff]
      %v236 = vld [vmem:[%s1] sm:$0xf]
      %v237 = vld [vmem:[%s1 + $0x4] sm:$0xf]
      %v238 = vld [vmem:[%s1 + $0x8] sm:$0xf]
      %v239 = vld [vmem:[%s1 + $0xc] sm:$0xf]
      %v240 = vld [vmem:[%s1 + $0x10] sm:$0xf]
      %v241 = vld [vmem:[%s1 + $0x14] sm:$0xf]
      %v242 = vld [vmem:[%s1 + $0x18] sm:$0xf]
      %v243 = vld [vmem:[%s1 + $0x1c] sm:$0xf]
      %v244 = vld [vmem:[%s1 + $0x20] sm:$0xf]
      %v245 = vld [vmem:[%s1 + $0x24] sm:$0xf]
      %v246 = vld [vmem:[%s1 + $0x28] sm:$0xf]
      %v247 = vld [vmem:[%s1 + $0x2c] sm:$0xf]
      %v248 = vld [vmem:[%s1 + $0x30] sm:$0xf]
      %v249 = vld [vmem:[%s1 + $0x34] sm:$0xf]
      %v250 = vld [vmem:[%s1 + $0x38] sm:$0xf]
      %v251 = vld [vmem:[%s1 + $0x3c] sm:$0xf]
      %v252 = vld [vmem:[%s1 + $0x40] sm:$0xf]
      %v253 = vld [vmem:[%s1 + $0x44] sm:$0xf]
      %v254 = vld [vmem:[%s1 + $0x48] sm:$0xf]
      %v255 = vld [vmem:[%s1 + $0x4c] sm:$0xf]
      %v256 = vld [vmem:[%s1 + $0x50] sm:$0xf]
      %v257 = vld [vmem:[%s1 + $0x54] sm:$0xf]
      %v258 = vld [vmem:[%s1 + $0x58] sm:$0xf]
      %v259 = vld [vmem:[%s1 + $0x5c] sm:$0xf]
      %v260 = vld [vmem:[%s1 + $0x60] sm:$0xf]
      %v261 = vld [vmem:[%s1 + $0x64] sm:$0xf]
      %v262 = vld [vmem:[%s1 + $0x68] sm:$0xf]
      %v263 = vld [vmem:[%s1 + $0x6c] sm:$0xf]
      %v264 = vld [vmem:[%s1 + $0x70] sm:$0xf]
      %v265 = vld [vmem:[%s1 + $0x74] sm:$0xf]
      %v266 = vld [vmem:[%s1 + $0x78] sm:$0xf]
      %v267 = vld [vmem:[%s1 + $0x7c] sm:$0xf]
      %v268 = vld [vmem:[%s1 + $0x80] sm:$0xf]
      %v269 = vld [vmem:[%s1 + $0x84] sm:$0xf]
      %v270 = vld [vmem:[%s1 + $0x88] sm:$0xf]
      %v271 = vld [vmem:[%s1 + $0x8c] sm:$0xf]
      %v272 = vld [vmem:[%s1 + $0x90] sm:$0xf]
      %v273 = vld [vmem:[%s1 + $0x94] sm:$0xf]
      %v274 = vld [vmem:[%s1 + $0x98] sm:$0xf]
      %v275 = vld [vmem:[%s1 + $0x9c] sm:$0xf]
      %v276 = vld [vmem:[%s1 + $0xa0] sm:$0xf]
      %v277 = vld [vmem:[%s1 + $0xa4] sm:$0xf]
      %v278 = vld [vmem:[%s1 + $0xa8] sm:$0xf]
      %v279 = vld [vmem:[%s1 + $0xac] sm:$0xf]
      %v280 = vld [vmem:[%s1 + $0xb0] sm:$0xf]
      %v281 = vld [vmem:[%s1 + $0xb4] sm:$0xf]
      %v282 = vld [vmem:[%s1 + $0xb8] sm:$0xf]
      %v283 = vld [vmem:[%s1 + $0xbc] sm:$0xf]
      %v284 = vld [vmem:[%s1 + $0xc0] sm:$0xf]
      %v285 = vld [vmem:[%s1 + $0xc4] sm:$0xf]
      %v286 = vld [vmem:[%s1 + $0xc8] sm:$0xf]
      %v287 = vld [vmem:[%s1 + $0xcc] sm:$0xf]
      %v288 = vld [vmem:[%s1 + $0xd0] sm:$0xf]
      %v289 = vld [vmem:[%s1 + $0xd4] sm:$0xf]
      %v290 = vld [vmem:[%s1 + $0xd8] sm:$0xf]
      %v291 = vld [vmem:[%s1 + $0xdc] sm:$0xf]
      %v292 = vld [vmem:[%s1 + $0xe0] sm:$0xf]
      %v293 = vld [vmem:[%s1 + $0xe4] sm:$0xf]
      %v294 = vld [vmem:[%s1 + $0xe8] sm:$0xf]
      %v295 = vld [vmem:[%s1 + $0xec] sm:$0xf]
      %v296 = vld [vmem:[%s1 + $0xf0] sm:$0xf]
      %v297 = vld [vmem:[%s1 + $0xf4] sm:$0xf]
      %v298 = vld [vmem:[%s1 + $0xf8] sm:$0xf]
      %v299 = vld [vmem:[%s1 + $0xfc] sm:$0xf]
      %v300 = vld [vmem:[%s1 + $0x100] sm:$0xf]
      %v301 = vld [vmem:[%s1 + $0x104] sm:$0xf]
      %v302 = vld [vmem:[%s1 + $0x108] sm:$0xf]
      %v303 = vld [vmem:[%s1 + $0x10c] sm:$0xf]
      %v304 = vld [vmem:[%s1 + $0x110] sm:$0xf]
      %v305 = vld [vmem:[%s1 + $0x114] sm:$0xf]
      %v306 = vld [vmem:[%s1 + $0x118] sm:$0xf]
      %v307 = vld [vmem:[%s1 + $0x11c] sm:$0xf]
      %v308 = vld [vmem:[%s1 + $0x120] sm:$0xf]
      %v309 = vld [vmem:[%s1 + $0x124] sm:$0xf]
      %v310 = vld [vmem:[%s1 + $0x128] sm:$0xf]
      %v311 = vld [vmem:[%s1 + $0x12c] sm:$0xf]
      %v312 = vld [vmem:[%s1 + $0x130] sm:$0xf]
      %v313 = vld [vmem:[%s1 + $0x134] sm:$0xf]
      %v314 = vld [vmem:[%s1 + $0x138] sm:$0xf]
      %v315 = vld [vmem:[%s1 + $0x13c] sm:$0xf]
      %v316 = vld [vmem:[%s1 + $0x140] sm:$0xf]
      %v317 = vld [vmem:[%s1 + $0x144] sm:$0xf]
      %v318 = vld [vmem:[%s1 + $0x148] sm:$0xf]
      %v319 = vld [vmem:[%s1 + $0x14c] sm:$0xf]
      %v320 = vld [vmem:[%s1 + $0x150] sm:$0xf]
      %v321 = vld [vmem:[%s1 + $0x154] sm:$0xf]
      %v322 = vld [vmem:[%s1 + $0x158] sm:$0xf]
      %v323 = vld [vmem:[%s1 + $0x15c] sm:$0xf]
      %v324 = vld [vmem:[%s1 + $0x160] sm:$0xf]
      %v325 = vld [vmem:[%s1 + $0x164] sm:$0xf]
      %v326 = vld [vmem:[%s1 + $0x168] sm:$0xf]
      %v327 = vld [vmem:[%s1 + $0x16c] sm:$0xf]
      %v328 = vld [vmem:[%s1 + $0x170] sm:$0xf]
      %v329 = vld [vmem:[%s1 + $0x174] sm:$0xf]
      %v330 = vld [vmem:[%s1 + $0x178] sm:$0xf]
      %v331 = vld [vmem:[%s1 + $0x17c] sm:$0xf]
      %v332 = vld [vmem:[%s1 + $0x180] sm:$0xf]
      %v333 = vld [vmem:[%s1 + $0x184] sm:$0xf]
      %v334 = vld [vmem:[%s1 + $0x188] sm:$0xf]
      %v335 = vld [vmem:[%s1 + $0x18c] sm:$0xf]
      %v336 = vld [vmem:[%s1 + $0x190] sm:$0xf]
      %v337 = vld [vmem:[%s1 + $0x194] sm:$0xf]
      %v338 = vld [vmem:[%s1 + $0x198] sm:$0xf]
      %v339 = vld [vmem:[%s1 + $0x19c] sm:$0xf]
      %v340 = vld [vmem:[%s1 + $0x1a0] sm:$0xf]
      %v341 = vld [vmem:[%s1 + $0x1a4] sm:$0xf]
      %v342 = vld [vmem:[%s1 + $0x1a8] sm:$0xf]
      %v343 = vld [vmem:[%s1 + $0x1ac] sm:$0xf]
      %v344 = vld [vmem:[%s1 + $0x1b0] sm:$0xf]
      %v345 = vld [vmem:[%s1 + $0x1b4] sm:$0xf]
      %v346 = vld [vmem:[%s1 + $0x1b8] sm:$0xf]
      %v347 = vld [vmem:[%s1 + $0x1bc] sm:$0xf]
      %v348 = vld [vmem:[%s1 + $0x1c0] sm:$0xf]
      %v349 = vld [vmem:[%s1 + $0x1c4] sm:$0xf]
      %v350 = vld [vmem:[%s1 + $0x1c8] sm:$0xf]
      %v351 = vld [vmem:[%s1 + $0x1cc] sm:$0xf]
      %v352 = vld [vmem:[%s1 + $0x1d0] sm:$0xf]
      %v353 = vld [vmem:[%s1 + $0x1d4] sm:$0xf]
      %v354 = vld [vmem:[%s1 + $0x1d8] sm:$0xf]
      %v355 = vld [vmem:[%s1 + $0x1dc] sm:$0xf]
      %v356 = vld [vmem:[%s1 + $0x1e0] sm:$0xf]
      %v357 = vld [vmem:[%s1 + $0x1e4] sm:$0xf]
      %v358 = vld [vmem:[%s1 + $0x1e8] sm:$0xf]
      %v359 = vld [vmem:[%s1 + $0x1ec] sm:$0xf]
      %v360 = vld [vmem:[%s1 + $0x1f0] sm:$0xf]
      %v361 = vld [vmem:[%s1 + $0x1f4] sm:$0xf]
      %v362 = vld [vmem:[%s1 + $0x1f8] sm:$0xf]
      %v363 = vld [vmem:[%s1 + $0x1fc] sm:$0xf]
      %v364 = vld [vmem:[%s1 + $0x200] sm:$0xf]
      %v365 = vld [vmem:[%s1 + $0x204] sm:$0xf]
      %v366 = vld [vmem:[%s1 + $0x208] sm:$0xf]
      %v367 = vld [vmem:[%s1 + $0x20c] sm:$0xf]
      %v368 = vld [vmem:[%s1 + $0x210] sm:$0xf]
      %v369 = vld [vmem:[%s1 + $0x214] sm:$0xf]
      %v370 = vld [vmem:[%s1 + $0x218] sm:$0xf]
      %v371 = vld [vmem:[%s1 + $0x21c] sm:$0xf]
      %v372 = vld [vmem:[%s1 + $0x220] sm:$0xf]
      %v373 = vld [vmem:[%s1 + $0x224] sm:$0xf]
      %v374 = vld [vmem:[%s1 + $0x228] sm:$0xf]
      %v375 = vld [vmem:[%s1 + $0x22c] sm:$0xf]
      %v376 = vld [vmem:[%s1 + $0x230] sm:$0xf]
      %v377 = vld [vmem:[%s1 + $0x234] sm:$0xf]
      %v378 = vld [vmem:[%s1 + $0x238] sm:$0xf]
      %v379 = vld [vmem:[%s1 + $0x23c] sm:$0xf]
      %v380 = vld [vmem:[%s1 + $0x240] sm:$0xf]
      %v381 = vld [vmem:[%s1 + $0x244] sm:$0xf]
      %v382 = vld [vmem:[%s1 + $0x248] sm:$0xf]
      %v383 = vld [vmem:[%s1 + $0x24c] sm:$0xf]
      %v384 = vld [vmem:[%s1 + $0x250] sm:$0xf]
      %v385 = vld [vmem:[%s1 + $0x254] sm:$0xf]
      %v386 = vld [vmem:[%s1 + $0x258] sm:$0xf]
      %v387 = vld [vmem:[%s1 + $0x25c] sm:$0xf]
      %v388 = vld [vmem:[%s1 + $0x260] sm:$0xf]
      %v389 = vld [vmem:[%s1 + $0x264] sm:$0xf]
      %v390 = vld [vmem:[%s1 + $0x268] sm:$0xf]
      %v391 = vld [vmem:[%s1 + $0x26c] sm:$0xf]
      %v392 = vld [vmem:[%s1 + $0x270] sm:$0xf]
      %v393 = vld [vmem:[%s1 + $0x274] sm:$0xf]
      %v394 = vld [vmem:[%s1 + $0x278] sm:$0xf]
      %v395 = vld [vmem:[%s1 + $0x27c] sm:$0xf]
      %v396 = vld [vmem:[%s1 + $0x280] sm:$0xf]
      %v397 = vld [vmem:[%s1 + $0x284] sm:$0xf]
      %v398 = vld [vmem:[%s1 + $0x288] sm:$0xf]
      %v399 = vld [vmem:[%s1 + $0x28c] sm:$0xf]
      %v400 = vld [vmem:[%s1 + $0x290] sm:$0xf]
      %v401 = vld [vmem:[%s1 + $0x294] sm:$0xf]
      %v402 = vld [vmem:[%s1 + $0x298] sm:$0xf]
      %v403 = vld [vmem:[%s1 + $0x29c] sm:$0xf]
      %v404 = vld [vmem:[%s1 + $0x2a0] sm:$0xf]
      %v405 = vld [vmem:[%s1 + $0x2a4] sm:$0xf]
      %v406 = vld [vmem:[%s1 + $0x2a8] sm:$0xf]
      %v407 = vld [vmem:[%s1 + $0x2ac] sm:$0xf]
      %v408 = vld [vmem:[%s1 + $0x2b0] sm:$0xf]
      %v409 = vld [vmem:[%s1 + $0x2b4] sm:$0xf]
      %v410 = vld [vmem:[%s1 + $0x2b8] sm:$0xf]
      %v411 = vld [vmem:[%s1 + $0x2bc] sm:$0xf]
      %v412 = vld [vmem:[%s1 + $0x2c0] sm:$0xf]
      %v413 = vld [vmem:[%s1 + $0x2c4] sm:$0xf]
      %v414 = vld [vmem:[%s1 + $0x2c8] sm:$0xf]
      %v415 = vld [vmem:[%s1 + $0x2cc] sm:$0xf]
      %v416 = vld [vmem:[%s1 + $0x2d0] sm:$0xf]
      %v417 = vld [vmem:[%s1 + $0x2d4] sm:$0xf]
      %v418 = vld [vmem:[%s1 + $0x2d8] sm:$0xf]
      %v419 = vld [vmem:[%s1 + $0x2dc] sm:$0xf]
      %v420 = vld [vmem:[%s1 + $0x2e0] sm:$0xf]
      %v421 = vld [vmem:[%s1 + $0x2e4] sm:$0xf]
      %v422 = vld [vmem:[%s1 + $0x2e8] sm:$0xf]
      %v423 = vld [vmem:[%s1 + $0x2ec] sm:$0xf]
      %v424 = vld [vmem:[%s1 + $0x2f0] sm:$0xf]
      %v425 = vld [vmem:[%s1 + $0x2f4] sm:$0xf]
      %v426 = vld [vmem:[%s1 + $0x2f8] sm:$0xf]
      %v427 = vld [vmem:[%s1 + $0x2fc] sm:$0xf]
      %v428 = vld [vmem:[%s1 + $0x300] sm:$0xf]
      %v429 = vld [vmem:[%s1 + $0x304] sm:$0xf]
      %v430 = vld [vmem:[%s1 + $0x308] sm:$0xf]
      %v431 = vld [vmem:[%s1 + $0x30c] sm:$0xf]
      %v432 = vld [vmem:[%s1 + $0x310] sm:$0xf]
      %v433 = vld [vmem:[%s1 + $0x314] sm:$0xf]
      %v434 = vld [vmem:[%s1 + $0x318] sm:$0xf]
      %v435 = vld [vmem:[%s1 + $0x31c] sm:$0xf]
      %v436 = vld [vmem:[%s1 + $0x320] sm:$0xf]
      %v437 = vld [vmem:[%s1 + $0x324] sm:$0xf]
      %v438 = vld [vmem:[%s1 + $0x328] sm:$0xf]
      %v439 = vld [vmem:[%s1 + $0x32c] sm:$0xf]
      %v440 = vld [vmem:[%s1 + $0x330] sm:$0xf]
      %v441 = vld [vmem:[%s1 + $0x334] sm:$0xf]
      %v442 = vld [vmem:[%s1 + $0x338] sm:$0xf]
      %v443 = vld [vmem:[%s1 + $0x33c] sm:$0xf]
      %v444 = vld [vmem:[%s1 + $0x340] sm:$0xf]
      %v445 = vld [vmem:[%s1 + $0x344] sm:$0xf]
      %v446 = vld [vmem:[%s1 + $0x348] sm:$0xf]
      %v447 = vld [vmem:[%s1 + $0x34c] sm:$0xf]
      %v448 = vld [vmem:[%s1 + $0x350] sm:$0xf]
      %v449 = vld [vmem:[%s1 + $0x354] sm:$0xf]
      %v450 = vld [vmem:[%s1 + $0x358] sm:$0xf]
      %v451 = vld [vmem:[%s1 + $0x35c] sm:$0xf]
      %v452 = vld [vmem:[%s1 + $0x360] sm:$0xf]
      %v453 = vld [vmem:[%s1 + $0x364] sm:$0xf]
      %v454 = vld [vmem:[%s1 + $0x368] sm:$0xf]
      %v455 = vld [vmem:[%s1 + $0x36c] sm:$0xf]
      %v456 = vld [vmem:[%s1 + $0x370] sm:$0xf]
      %v457 = vld [vmem:[%s1 + $0x374] sm:$0xf]
      %v458 = vld [vmem:[%s1 + $0x378] sm:$0xf]
      %v459 = vld [vmem:[%s1 + $0x37c] sm:$0xf]
      %v460 = vld [vmem:[%s1 + $0x380] sm:$0xf]
      %v461 = vld [vmem:[%s1 + $0x384] sm:$0xf]
      %v462 = vld [vmem:[%s1 + $0x388] sm:$0xf]
      %v463 = vld [vmem:[%s1 + $0x38c] sm:$0xf]
      %v464 = vld [vmem:[%s1 + $0x390] sm:$0xf]
      %v465 = vld [vmem:[%s1 + $0x394] sm:$0xf]
      %v466 = vld [vmem:[%s1 + $0x398] sm:$0xf]
      %v467 = vld [vmem:[%s1 + $0x39c] sm:$0xf]
      %v468 = vld [vmem:[%s1 + $0x3a0] sm:$0xf]
      %v469 = vld [vmem:[%s1 + $0x3a4] sm:$0xf]
      %v470 = vld [vmem:[%s1 + $0x3a8] sm:$0xf]
      %v471 = vld [vmem:[%s1 + $0x3ac] sm:$0xf]
      %v472 = vld [vmem:[%s1 + $0x3b0] sm:$0xf]
      %v473 = vld [vmem:[%s1 + $0x3b4] sm:$0xf]
      %v474 = vld [vmem:[%s1 + $0x3b8] sm:$0xf]
      %v475 = vld [vmem:[%s1 + $0x3bc] sm:$0xf]
      %v476 = vld [vmem:[%s1 + $0x3c0] sm:$0xf]
      %v477 = vld [vmem:[%s1 + $0x3c4] sm:$0xf]
      %v478 = vld [vmem:[%s1 + $0x3c8] sm:$0xf]
      %v479 = vld [vmem:[%s1 + $0x3cc] sm:$0xf]
      %v480 = vld [vmem:[%s1 + $0x3d0] sm:$0xf]
      %v481 = vld [vmem:[%s1 + $0x3d4] sm:$0xf]
      %v482 = vld [vmem:[%s1 + $0x3d8] sm:$0xf]
      %v483 = vld [vmem:[%s1 + $0x3dc] sm:$0xf]
      %v484 = vld [vmem:[%s1 + $0x3e0] sm:$0xf]
      %v485 = vld [vmem:[%s1 + $0x3e4] sm:$0xf]
      %v486 = vld [vmem:[%s1 + $0x3e8] sm:$0xf]
      %v487 = vld [vmem:[%s1 + $0x3ec] sm:$0xf]
      %v488 = vld [vmem:[%s1 + $0x3f0] sm:$0xf]
      %v489 = vld [vmem:[%s1 + $0x3f4] sm:$0xf]
      %v490 = vld [vmem:[%s1 + $0x3f8] sm:$0xf]
      %v491 = vld [vmem:[%s1 + $0x3fc] sm:$0xf]
      %v492 = vld [vmem:[%s2] sm:$0x1]
      %v494 = vlaneseq
      %v495 = vshrl.u32 %v494, 7
      %v496 = vsub.s32 0, %v495
      %v497 = vrot.slane %v492, %v496
      %v563 = vunpack.c.l.b16 %v172
      %v564 = vunpack.c.h.b16 %v172
      %v565 = vunpack.c.l.b16 %v173
      %v566 = vunpack.c.h.b16 %v173
      %v567 = vunpack.c.l.b16 %v174
      %v568 = vunpack.c.h.b16 %v174
      %v569 = vunpack.c.l.b16 %v175
      %v570 = vunpack.c.h.b16 %v175
      %v571 = vunpack.c.l.b16 %v176
      %v572 = vunpack.c.h.b16 %v176
      %v573 = vunpack.c.l.b16 %v177
      %v574 = vunpack.c.h.b16 %v177
      %v575 = vunpack.c.l.b16 %v178
      %v576 = vunpack.c.h.b16 %v178
      %v577 = vunpack.c.l.b16 %v179
      %v578 = vunpack.c.h.b16 %v179
      %v579 = vunpack.c.l.b16 %v180
      %v580 = vunpack.c.h.b16 %v180
      %v581 = vunpack.c.l.b16 %v181
      %v582 = vunpack.c.h.b16 %v181
      %v583 = vunpack.c.l.b16 %v182
      %v584 = vunpack.c.h.b16 %v182
      %v585 = vunpack.c.l.b16 %v183
      %v586 = vunpack.c.h.b16 %v183
      %v587 = vunpack.c.l.b16 %v184
      %v588 = vunpack.c.h.b16 %v184
      %v589 = vunpack.c.l.b16 %v185
      %v590 = vunpack.c.h.b16 %v185
      %v591 = vunpack.c.l.b16 %v186
      %v592 = vunpack.c.h.b16 %v186
      %v593 = vunpack.c.l.b16 %v187
      %v594 = vunpack.c.h.b16 %v187
      %v595 = vunpack.c.l.b16 %v188
      %v596 = vunpack.c.h.b16 %v188
      %v597 = vunpack.c.l.b16 %v189
      %v598 = vunpack.c.h.b16 %v189
      %v599 = vunpack.c.l.b16 %v190
      %v600 = vunpack.c.h.b16 %v190
      %v601 = vunpack.c.l.b16 %v191
      %v602 = vunpack.c.h.b16 %v191
      %v603 = vunpack.c.l.b16 %v192
      %v604 = vunpack.c.h.b16 %v192
      %v605 = vunpack.c.l.b16 %v193
      %v606 = vunpack.c.h.b16 %v193
      %v607 = vunpack.c.l.b16 %v194
      %v608 = vunpack.c.h.b16 %v194
      %v609 = vunpack.c.l.b16 %v195
      %v610 = vunpack.c.h.b16 %v195
      %v611 = vunpack.c.l.b16 %v196
      %v612 = vunpack.c.h.b16 %v196
      %v613 = vunpack.c.l.b16 %v197
      %v614 = vunpack.c.h.b16 %v197
      %v615 = vunpack.c.l.b16 %v198
      %v616 = vunpack.c.h.b16 %v198
      %v617 = vunpack.c.l.b16 %v199
      %v618 = vunpack.c.h.b16 %v199
      %v619 = vunpack.c.l.b16 %v200
      %v620 = vunpack.c.h.b16 %v200
      %v621 = vunpack.c.l.b16 %v201
      %v622 = vunpack.c.h.b16 %v201
      %v623 = vunpack.c.l.b16 %v202
      %v624 = vunpack.c.h.b16 %v202
      %v625 = vunpack.c.l.b16 %v203
      %v626 = vunpack.c.h.b16 %v203
      %v627 = vunpack.c.l.b16 %v204
      %v628 = vunpack.c.h.b16 %v204
      %v629 = vunpack.c.l.b16 %v205
      %v630 = vunpack.c.h.b16 %v205
      %v631 = vunpack.c.l.b16 %v206
      %v632 = vunpack.c.h.b16 %v206
      %v633 = vunpack.c.l.b16 %v207
      %v634 = vunpack.c.h.b16 %v207
      %v635 = vunpack.c.l.b16 %v208
      %v636 = vunpack.c.h.b16 %v208
      %v637 = vunpack.c.l.b16 %v209
      %v638 = vunpack.c.h.b16 %v209
      %v639 = vunpack.c.l.b16 %v210
      %v640 = vunpack.c.h.b16 %v210
      %v641 = vunpack.c.l.b16 %v211
      %v642 = vunpack.c.h.b16 %v211
      %v643 = vunpack.c.l.b16 %v212
      %v644 = vunpack.c.h.b16 %v212
      %v645 = vunpack.c.l.b16 %v213
      %v646 = vunpack.c.h.b16 %v213
      %v647 = vunpack.c.l.b16 %v214
      %v648 = vunpack.c.h.b16 %v214
      %v649 = vunpack.c.l.b16 %v215
      %v650 = vunpack.c.h.b16 %v215
      %v651 = vunpack.c.l.b16 %v216
      %v652 = vunpack.c.h.b16 %v216
      %v653 = vunpack.c.l.b16 %v217
      %v654 = vunpack.c.h.b16 %v217
      %v655 = vunpack.c.l.b16 %v218
      %v656 = vunpack.c.h.b16 %v218
      %v657 = vunpack.c.l.b16 %v219
      %v658 = vunpack.c.h.b16 %v219
      %v659 = vunpack.c.l.b16 %v220
      %v660 = vunpack.c.h.b16 %v220
      %v661 = vunpack.c.l.b16 %v221
      %v662 = vunpack.c.h.b16 %v221
      %v663 = vunpack.c.l.b16 %v222
      %v664 = vunpack.c.h.b16 %v222
      %v665 = vunpack.c.l.b16 %v223
      %v666 = vunpack.c.h.b16 %v223
      %v667 = vunpack.c.l.b16 %v224
      %v668 = vunpack.c.h.b16 %v224
      %v669 = vunpack.c.l.b16 %v225
      %v670 = vunpack.c.h.b16 %v225
      %v671 = vunpack.c.l.b16 %v226
      %v672 = vunpack.c.h.b16 %v226
      %v673 = vunpack.c.l.b16 %v227
      %v674 = vunpack.c.h.b16 %v227
      %v675 = vunpack.c.l.b16 %v228
      %v676 = vunpack.c.h.b16 %v228
      %v677 = vunpack.c.l.b16 %v229
      %v678 = vunpack.c.h.b16 %v229
      %v679 = vunpack.c.l.b16 %v230
      %v680 = vunpack.c.h.b16 %v230
      %v681 = vunpack.c.l.b16 %v231
      %v682 = vunpack.c.h.b16 %v231
      %v683 = vunpack.c.l.b16 %v232
      %v684 = vunpack.c.h.b16 %v232
      %v685 = vunpack.c.l.b16 %v233
      %v686 = vunpack.c.h.b16 %v233
      %v687 = vunpack.c.l.b16 %v234
      %v688 = vunpack.c.h.b16 %v234
      %v689 = vunpack.c.l.b16 %v235
      %v690 = vunpack.c.h.b16 %v235
      %v691 = vpack.c.b16 %v579, %v563
      %v692 = vpack.c.b16 %v580, %v564
      %v693 = vpack.c.b16 %v581, %v565
      %v694 = vpack.c.b16 %v582, %v566
      %v695 = vpack.c.b16 %v583, %v567
      %v696 = vpack.c.b16 %v584, %v568
      %v697 = vpack.c.b16 %v585, %v569
      %v698 = vpack.c.b16 %v586, %v570
      %v699 = vpack.c.b16 %v587, %v571
      %v700 = vpack.c.b16 %v588, %v572
      %v701 = vpack.c.b16 %v589, %v573
      %v702 = vpack.c.b16 %v590, %v574
      %v703 = vpack.c.b16 %v591, %v575
      %v704 = vpack.c.b16 %v592, %v576
      %v705 = vpack.c.b16 %v593, %v577
      %v706 = vpack.c.b16 %v594, %v578
      %v707 = vpack.c.b16 %v611, %v595
      %v708 = vpack.c.b16 %v612, %v596
      %v709 = vpack.c.b16 %v613, %v597
      %v710 = vpack.c.b16 %v614, %v598
      %v711 = vpack.c.b16 %v615, %v599
      %v712 = vpack.c.b16 %v616, %v600
      %v713 = vpack.c.b16 %v617, %v601
      %v714 = vpack.c.b16 %v618, %v602
      %v715 = vpack.c.b16 %v619, %v603
      %v716 = vpack.c.b16 %v620, %v604
      %v717 = vpack.c.b16 %v621, %v605
      %v718 = vpack.c.b16 %v622, %v606
      %v719 = vpack.c.b16 %v623, %v607
      %v720 = vpack.c.b16 %v624, %v608
      %v721 = vpack.c.b16 %v625, %v609
      %v722 = vpack.c.b16 %v626, %v610
      %v723 = vpack.c.b16 %v643, %v627
      %v724 = vpack.c.b16 %v644, %v628
      %v725 = vpack.c.b16 %v645, %v629
      %v726 = vpack.c.b16 %v646, %v630
      %v727 = vpack.c.b16 %v647, %v631
      %v728 = vpack.c.b16 %v648, %v632
      %v729 = vpack.c.b16 %v649, %v633
      %v730 = vpack.c.b16 %v650, %v634
      %v731 = vpack.c.b16 %v651, %v635
      %v732 = vpack.c.b16 %v652, %v636
      %v733 = vpack.c.b16 %v653, %v637
      %v734 = vpack.c.b16 %v654, %v638
      %v735 = vpack.c.b16 %v655, %v639
      %v736 = vpack.c.b16 %v656, %v640
      %v737 = vpack.c.b16 %v657, %v641
      %v738 = vpack.c.b16 %v658, %v642
      %v739 = vpack.c.b16 %v675, %v659
      %v740 = vpack.c.b16 %v676, %v660
      %v741 = vpack.c.b16 %v677, %v661
      %v742 = vpack.c.b16 %v678, %v662
      %v743 = vpack.c.b16 %v679, %v663
      %v744 = vpack.c.b16 %v680, %v664
      %v745 = vpack.c.b16 %v681, %v665
      %v746 = vpack.c.b16 %v682, %v666
      %v747 = vpack.c.b16 %v683, %v667
      %v748 = vpack.c.b16 %v684, %v668
      %v749 = vpack.c.b16 %v685, %v669
      %v750 = vpack.c.b16 %v686, %v670
      %v751 = vpack.c.b16 %v687, %v671
      %v752 = vpack.c.b16 %v688, %v672
      %v753 = vpack.c.b16 %v689, %v673
      %v754 = vpack.c.b16 %v690, %v674
      %v1075 = vunpack.c.l.b16 %v236
      %v1076 = vunpack.c.l.b16 %v237
      %v1077 = vunpack.c.l.b16 %v238
      %v1078 = vunpack.c.l.b16 %v239
      %v1079 = vunpack.c.l.b16 %v240
      %v1080 = vunpack.c.l.b16 %v241
      %v1081 = vunpack.c.l.b16 %v242
      %v1082 = vunpack.c.l.b16 %v243
      %v1083 = vunpack.c.l.b16 %v244
      %v1084 = vunpack.c.l.b16 %v245
      %v1085 = vunpack.c.l.b16 %v246
      %v1086 = vunpack.c.l.b16 %v247
      %v1087 = vunpack.c.l.b16 %v248
      %v1088 = vunpack.c.l.b16 %v249
      %v1089 = vunpack.c.l.b16 %v250
      %v1090 = vunpack.c.l.b16 %v251
      %v1091 = vunpack.c.l.b16 %v252
      %v1092 = vunpack.c.l.b16 %v253
      %v1093 = vunpack.c.l.b16 %v254
      %v1094 = vunpack.c.l.b16 %v255
      %v1095 = vunpack.c.l.b16 %v256
      %v1096 = vunpack.c.l.b16 %v257
      %v1097 = vunpack.c.l.b16 %v258
      %v1098 = vunpack.c.l.b16 %v259
      %v1099 = vunpack.c.l.b16 %v260
      %v1100 = vunpack.c.l.b16 %v261
      %v1101 = vunpack.c.l.b16 %v262
      %v1102 = vunpack.c.l.b16 %v263
      %v1103 = vunpack.c.l.b16 %v264
      %v1104 = vunpack.c.l.b16 %v265
      %v1105 = vunpack.c.l.b16 %v266
      %v1106 = vunpack.c.l.b16 %v267
      %v1107 = vunpack.c.l.b16 %v268
      %v1108 = vunpack.c.l.b16 %v269
      %v1109 = vunpack.c.l.b16 %v270
      %v1110 = vunpack.c.l.b16 %v271
      %v1111 = vunpack.c.l.b16 %v272
      %v1112 = vunpack.c.l.b16 %v273
      %v1113 = vunpack.c.l.b16 %v274
      %v1114 = vunpack.c.l.b16 %v275
      %v1115 = vunpack.c.l.b16 %v276
      %v1116 = vunpack.c.l.b16 %v277
      %v1117 = vunpack.c.l.b16 %v278
      %v1118 = vunpack.c.l.b16 %v279
      %v1119 = vunpack.c.l.b16 %v280
      %v1120 = vunpack.c.l.b16 %v281
      %v1121 = vunpack.c.l.b16 %v282
      %v1122 = vunpack.c.l.b16 %v283
      %v1123 = vunpack.c.l.b16 %v284
      %v1124 = vunpack.c.l.b16 %v285
      %v1125 = vunpack.c.l.b16 %v286
      %v1126 = vunpack.c.l.b16 %v287
      %v1127 = vunpack.c.l.b16 %v288
      %v1128 = vunpack.c.l.b16 %v289
      %v1129 = vunpack.c.l.b16 %v290
      %v1130 = vunpack.c.l.b16 %v291
      %v1131 = vunpack.c.l.b16 %v292
      %v1132 = vunpack.c.l.b16 %v293
      %v1133 = vunpack.c.l.b16 %v294
      %v1134 = vunpack.c.l.b16 %v295
      %v1135 = vunpack.c.l.b16 %v296
      %v1136 = vunpack.c.l.b16 %v297
      %v1137 = vunpack.c.l.b16 %v298
      %v1138 = vunpack.c.l.b16 %v299
      %v1139 = vunpack.c.l.b16 %v300
      %v1140 = vunpack.c.l.b16 %v301
      %v1141 = vunpack.c.l.b16 %v302
      %v1142 = vunpack.c.l.b16 %v303
      %v1143 = vunpack.c.l.b16 %v304
      %v1144 = vunpack.c.l.b16 %v305
      %v1145 = vunpack.c.l.b16 %v306
      %v1146 = vunpack.c.l.b16 %v307
      %v1147 = vunpack.c.l.b16 %v308
      %v1148 = vunpack.c.l.b16 %v309
      %v1149 = vunpack.c.l.b16 %v310
      %v1150 = vunpack.c.l.b16 %v311
      %v1151 = vunpack.c.l.b16 %v312
      %v1152 = vunpack.c.l.b16 %v313
      %v1153 = vunpack.c.l.b16 %v314
      %v1154 = vunpack.c.l.b16 %v315
      %v1155 = vunpack.c.l.b16 %v316
      %v1156 = vunpack.c.l.b16 %v317
      %v1157 = vunpack.c.l.b16 %v318
      %v1158 = vunpack.c.l.b16 %v319
      %v1159 = vunpack.c.l.b16 %v320
      %v1160 = vunpack.c.l.b16 %v321
      %v1161 = vunpack.c.l.b16 %v322
      %v1162 = vunpack.c.l.b16 %v323
      %v1163 = vunpack.c.l.b16 %v324
      %v1164 = vunpack.c.l.b16 %v325
      %v1165 = vunpack.c.l.b16 %v326
      %v1166 = vunpack.c.l.b16 %v327
      %v1167 = vunpack.c.l.b16 %v328
      %v1168 = vunpack.c.l.b16 %v329
      %v1169 = vunpack.c.l.b16 %v330
      %v1170 = vunpack.c.l.b16 %v331
      %v1171 = vunpack.c.l.b16 %v332
      %v1172 = vunpack.c.l.b16 %v333
      %v1173 = vunpack.c.l.b16 %v334
      %v1174 = vunpack.c.l.b16 %v335
      %v1175 = vunpack.c.l.b16 %v336
      %v1176 = vunpack.c.l.b16 %v337
      %v1177 = vunpack.c.l.b16 %v338
      %v1178 = vunpack.c.l.b16 %v339
      %v1179 = vunpack.c.l.b16 %v340
      %v1180 = vunpack.c.l.b16 %v341
      %v1181 = vunpack.c.l.b16 %v342
      %v1182 = vunpack.c.l.b16 %v343
      %v1183 = vunpack.c.l.b16 %v344
      %v1184 = vunpack.c.l.b16 %v345
      %v1185 = vunpack.c.l.b16 %v346
      %v1186 = vunpack.c.l.b16 %v347
      %v1187 = vunpack.c.l.b16 %v348
      %v1188 = vunpack.c.l.b16 %v349
      %v1189 = vunpack.c.l.b16 %v350
      %v1190 = vunpack.c.l.b16 %v351
      %v1191 = vunpack.c.l.b16 %v352
      %v1192 = vunpack.c.l.b16 %v353
      %v1193 = vunpack.c.l.b16 %v354
      %v1194 = vunpack.c.l.b16 %v355
      %v1195 = vunpack.c.l.b16 %v356
      %v1196 = vunpack.c.l.b16 %v357
      %v1197 = vunpack.c.l.b16 %v358
      %v1198 = vunpack.c.l.b16 %v359
      %v1199 = vunpack.c.l.b16 %v360
      %v1200 = vunpack.c.l.b16 %v361
      %v1201 = vunpack.c.l.b16 %v362
      %v1202 = vunpack.c.l.b16 %v363
      %v1203 = vunpack.c.l.b16 %v364
      %v1204 = vunpack.c.l.b16 %v365
      %v1205 = vunpack.c.l.b16 %v366
      %v1206 = vunpack.c.l.b16 %v367
      %v1207 = vunpack.c.l.b16 %v368
      %v1208 = vunpack.c.l.b16 %v369
      %v1209 = vunpack.c.l.b16 %v370
      %v1210 = vunpack.c.l.b16 %v371
      %v1211 = vunpack.c.l.b16 %v372
      %v1212 = vunpack.c.l.b16 %v373
      %v1213 = vunpack.c.l.b16 %v374
      %v1214 = vunpack.c.l.b16 %v375
      %v1215 = vunpack.c.l.b16 %v376
      %v1216 = vunpack.c.l.b16 %v377
      %v1217 = vunpack.c.l.b16 %v378
      %v1218 = vunpack.c.l.b16 %v379
      %v1219 = vunpack.c.l.b16 %v380
      %v1220 = vunpack.c.l.b16 %v381
      %v1221 = vunpack.c.l.b16 %v382
      %v1222 = vunpack.c.l.b16 %v383
      %v1223 = vunpack.c.l.b16 %v384
      %v1224 = vunpack.c.l.b16 %v385
      %v1225 = vunpack.c.l.b16 %v386
      %v1226 = vunpack.c.l.b16 %v387
      %v1227 = vunpack.c.l.b16 %v388
      %v1228 = vunpack.c.l.b16 %v389
      %v1229 = vunpack.c.l.b16 %v390
      %v1230 = vunpack.c.l.b16 %v391
      %v1231 = vunpack.c.l.b16 %v392
      %v1232 = vunpack.c.l.b16 %v393
      %v1233 = vunpack.c.l.b16 %v394
      %v1234 = vunpack.c.l.b16 %v395
      %v1235 = vunpack.c.l.b16 %v396
      %v1236 = vunpack.c.l.b16 %v397
      %v1237 = vunpack.c.l.b16 %v398
      %v1238 = vunpack.c.l.b16 %v399
      %v1239 = vunpack.c.l.b16 %v400
      %v1240 = vunpack.c.l.b16 %v401
      %v1241 = vunpack.c.l.b16 %v402
      %v1242 = vunpack.c.l.b16 %v403
      %v1243 = vunpack.c.l.b16 %v404
      %v1244 = vunpack.c.l.b16 %v405
      %v1245 = vunpack.c.l.b16 %v406
      %v1246 = vunpack.c.l.b16 %v407
      %v1247 = vunpack.c.l.b16 %v408
      %v1248 = vunpack.c.l.b16 %v409
      %v1249 = vunpack.c.l.b16 %v410
      %v1250 = vunpack.c.l.b16 %v411
      %v1251 = vunpack.c.l.b16 %v412
      %v1252 = vunpack.c.l.b16 %v413
      %v1253 = vunpack.c.l.b16 %v414
      %v1254 = vunpack.c.l.b16 %v415
      %v1255 = vunpack.c.l.b16 %v416
      %v1256 = vunpack.c.l.b16 %v417
      %v1257 = vunpack.c.l.b16 %v418
      %v1258 = vunpack.c.l.b16 %v419
      %v1259 = vunpack.c.l.b16 %v420
      %v1260 = vunpack.c.l.b16 %v421
      %v1261 = vunpack.c.l.b16 %v422
      %v1262 = vunpack.c.l.b16 %v423
      %v1263 = vunpack.c.l.b16 %v424
      %v1264 = vunpack.c.l.b16 %v425
      %v1265 = vunpack.c.l.b16 %v426
      %v1266 = vunpack.c.l.b16 %v427
      %v1267 = vunpack.c.l.b16 %v428
      %v1268 = vunpack.c.l.b16 %v429
      %v1269 = vunpack.c.l.b16 %v430
      %v1270 = vunpack.c.l.b16 %v431
      %v1271 = vunpack.c.l.b16 %v432
      %v1272 = vunpack.c.l.b16 %v433
      %v1273 = vunpack.c.l.b16 %v434
      %v1274 = vunpack.c.l.b16 %v435
      %v1275 = vunpack.c.l.b16 %v436
      %v1276 = vunpack.c.l.b16 %v437
      %v1277 = vunpack.c.l.b16 %v438
      %v1278 = vunpack.c.l.b16 %v439
      %v1279 = vunpack.c.l.b16 %v440
      %v1280 = vunpack.c.l.b16 %v441
      %v1281 = vunpack.c.l.b16 %v442
      %v1282 = vunpack.c.l.b16 %v443
      %v1283 = vunpack.c.l.b16 %v444
      %v1284 = vunpack.c.l.b16 %v445
      %v1285 = vunpack.c.l.b16 %v446
      %v1286 = vunpack.c.l.b16 %v447
      %v1287 = vunpack.c.l.b16 %v448
      %v1288 = vunpack.c.l.b16 %v449
      %v1289 = vunpack.c.l.b16 %v450
      %v1290 = vunpack.c.l.b16 %v451
      %v1291 = vunpack.c.l.b16 %v452
      %v1292 = vunpack.c.l.b16 %v453
      %v1293 = vunpack.c.l.b16 %v454
      %v1294 = vunpack.c.l.b16 %v455
      %v1295 = vunpack.c.l.b16 %v456
      %v1296 = vunpack.c.l.b16 %v457
      %v1297 = vunpack.c.l.b16 %v458
      %v1298 = vunpack.c.l.b16 %v459
      %v1299 = vunpack.c.l.b16 %v460
      %v1300 = vunpack.c.l.b16 %v461
      %v1301 = vunpack.c.l.b16 %v462
      %v1302 = vunpack.c.l.b16 %v463
      %v1303 = vunpack.c.l.b16 %v464
      %v1304 = vunpack.c.l.b16 %v465
      %v1305 = vunpack.c.l.b16 %v466
      %v1306 = vunpack.c.l.b16 %v467
      %v1307 = vunpack.c.l.b16 %v468
      %v1308 = vunpack.c.l.b16 %v469
      %v1309 = vunpack.c.l.b16 %v470
      %v1310 = vunpack.c.l.b16 %v471
      %v1311 = vunpack.c.l.b16 %v472
      %v1312 = vunpack.c.l.b16 %v473
      %v1313 = vunpack.c.l.b16 %v474
      %v1314 = vunpack.c.l.b16 %v475
      %v1315 = vunpack.c.l.b16 %v476
      %v1316 = vunpack.c.l.b16 %v477
      %v1317 = vunpack.c.l.b16 %v478
      %v1318 = vunpack.c.l.b16 %v479
      %v1319 = vunpack.c.l.b16 %v480
      %v1320 = vunpack.c.l.b16 %v481
      %v1321 = vunpack.c.l.b16 %v482
      %v1322 = vunpack.c.l.b16 %v483
      %v1323 = vunpack.c.l.b16 %v484
      %v1324 = vunpack.c.l.b16 %v485
      %v1325 = vunpack.c.l.b16 %v486
      %v1326 = vunpack.c.l.b16 %v487
      %v1327 = vunpack.c.l.b16 %v488
      %v1328 = vunpack.c.l.b16 %v489
      %v1329 = vunpack.c.l.b16 %v490
      %v1330 = vunpack.c.l.b16 %v491
      %v1331 = vpack.c.b16 %v1076, %v1075
      %v1332 = vpack.c.b16 %v1078, %v1077
      %v1333 = vpack.c.b16 %v1080, %v1079
      %v1334 = vpack.c.b16 %v1082, %v1081
      %v1335 = vpack.c.b16 %v1084, %v1083
      %v1336 = vpack.c.b16 %v1086, %v1085
      %v1337 = vpack.c.b16 %v1088, %v1087
      %v1338 = vpack.c.b16 %v1090, %v1089
      %v1339 = vpack.c.b16 %v1092, %v1091
      %v1340 = vpack.c.b16 %v1094, %v1093
      %v1341 = vpack.c.b16 %v1096, %v1095
      %v1342 = vpack.c.b16 %v1098, %v1097
      %v1343 = vpack.c.b16 %v1100, %v1099
      %v1344 = vpack.c.b16 %v1102, %v1101
      %v1345 = vpack.c.b16 %v1104, %v1103
      %v1346 = vpack.c.b16 %v1106, %v1105
      %v1347 = vpack.c.b16 %v1108, %v1107
      %v1348 = vpack.c.b16 %v1110, %v1109
      %v1349 = vpack.c.b16 %v1112, %v1111
      %v1350 = vpack.c.b16 %v1114, %v1113
      %v1351 = vpack.c.b16 %v1116, %v1115
      %v1352 = vpack.c.b16 %v1118, %v1117
      %v1353 = vpack.c.b16 %v1120, %v1119
      %v1354 = vpack.c.b16 %v1122, %v1121
      %v1355 = vpack.c.b16 %v1124, %v1123
      %v1356 = vpack.c.b16 %v1126, %v1125
      %v1357 = vpack.c.b16 %v1128, %v1127
      %v1358 = vpack.c.b16 %v1130, %v1129
      %v1359 = vpack.c.b16 %v1132, %v1131
      %v1360 = vpack.c.b16 %v1134, %v1133
      %v1361 = vpack.c.b16 %v1136, %v1135
      %v1362 = vpack.c.b16 %v1138, %v1137
      %v1363 = vpack.c.b16 %v1140, %v1139
      %v1364 = vpack.c.b16 %v1142, %v1141
      %v1365 = vpack.c.b16 %v1144, %v1143
      %v1366 = vpack.c.b16 %v1146, %v1145
      %v1367 = vpack.c.b16 %v1148, %v1147
      %v1368 = vpack.c.b16 %v1150, %v1149
      %v1369 = vpack.c.b16 %v1152, %v1151
      %v1370 = vpack.c.b16 %v1154, %v1153
      %v1371 = vpack.c.b16 %v1156, %v1155
      %v1372 = vpack.c.b16 %v1158, %v1157
      %v1373 = vpack.c.b16 %v1160, %v1159
      %v1374 = vpack.c.b16 %v1162, %v1161
      %v1375 = vpack.c.b16 %v1164, %v1163
      %v1376 = vpack.c.b16 %v1166, %v1165
      %v1377 = vpack.c.b16 %v1168, %v1167
      %v1378 = vpack.c.b16 %v1170, %v1169
      %v1379 = vpack.c.b16 %v1172, %v1171
      %v1380 = vpack.c.b16 %v1174, %v1173
      %v1381 = vpack.c.b16 %v1176, %v1175
      %v1382 = vpack.c.b16 %v1178, %v1177
      %v1383 = vpack.c.b16 %v1180, %v1179
      %v1384 = vpack.c.b16 %v1182, %v1181
      %v1385 = vpack.c.b16 %v1184, %v1183
      %v1386 = vpack.c.b16 %v1186, %v1185
      %v1387 = vpack.c.b16 %v1188, %v1187
      %v1388 = vpack.c.b16 %v1190, %v1189
      %v1389 = vpack.c.b16 %v1192, %v1191
      %v1390 = vpack.c.b16 %v1194, %v1193
      %v1391 = vpack.c.b16 %v1196, %v1195
      %v1392 = vpack.c.b16 %v1198, %v1197
      %v1393 = vpack.c.b16 %v1200, %v1199
      %v1394 = vpack.c.b16 %v1202, %v1201
      %v1395 = vpack.c.b16 %v1204, %v1203
      %v1396 = vpack.c.b16 %v1206, %v1205
      %v1397 = vpack.c.b16 %v1208, %v1207
      %v1398 = vpack.c.b16 %v1210, %v1209
      %v1399 = vpack.c.b16 %v1212, %v1211
      %v1400 = vpack.c.b16 %v1214, %v1213
      %v1401 = vpack.c.b16 %v1216, %v1215
      %v1402 = vpack.c.b16 %v1218, %v1217
      %v1403 = vpack.c.b16 %v1220, %v1219
      %v1404 = vpack.c.b16 %v1222, %v1221
      %v1405 = vpack.c.b16 %v1224, %v1223
      %v1406 = vpack.c.b16 %v1226, %v1225
      %v1407 = vpack.c.b16 %v1228, %v1227
      %v1408 = vpack.c.b16 %v1230, %v1229
      %v1409 = vpack.c.b16 %v1232, %v1231
      %v1410 = vpack.c.b16 %v1234, %v1233
      %v1411 = vpack.c.b16 %v1236, %v1235
      %v1412 = vpack.c.b16 %v1238, %v1237
      %v1413 = vpack.c.b16 %v1240, %v1239
      %v1414 = vpack.c.b16 %v1242, %v1241
      %v1415 = vpack.c.b16 %v1244, %v1243
      %v1416 = vpack.c.b16 %v1246, %v1245
      %v1417 = vpack.c.b16 %v1248, %v1247
      %v1418 = vpack.c.b16 %v1250, %v1249
      %v1419 = vpack.c.b16 %v1252, %v1251
      %v1420 = vpack.c.b16 %v1254, %v1253
      %v1421 = vpack.c.b16 %v1256, %v1255
      %v1422 = vpack.c.b16 %v1258, %v1257
      %v1423 = vpack.c.b16 %v1260, %v1259
      %v1424 = vpack.c.b16 %v1262, %v1261
      %v1425 = vpack.c.b16 %v1264, %v1263
      %v1426 = vpack.c.b16 %v1266, %v1265
      %v1427 = vpack.c.b16 %v1268, %v1267
      %v1428 = vpack.c.b16 %v1270, %v1269
      %v1429 = vpack.c.b16 %v1272, %v1271
      %v1430 = vpack.c.b16 %v1274, %v1273
      %v1431 = vpack.c.b16 %v1276, %v1275
      %v1432 = vpack.c.b16 %v1278, %v1277
      %v1433 = vpack.c.b16 %v1280, %v1279
      %v1434 = vpack.c.b16 %v1282, %v1281
      %v1435 = vpack.c.b16 %v1284, %v1283
      %v1436 = vpack.c.b16 %v1286, %v1285
      %v1437 = vpack.c.b16 %v1288, %v1287
      %v1438 = vpack.c.b16 %v1290, %v1289
      %v1439 = vpack.c.b16 %v1292, %v1291
      %v1440 = vpack.c.b16 %v1294, %v1293
      %v1441 = vpack.c.b16 %v1296, %v1295
      %v1442 = vpack.c.b16 %v1298, %v1297
      %v1443 = vpack.c.b16 %v1300, %v1299
      %v1444 = vpack.c.b16 %v1302, %v1301
      %v1445 = vpack.c.b16 %v1304, %v1303
      %v1446 = vpack.c.b16 %v1306, %v1305
      %v1447 = vpack.c.b16 %v1308, %v1307
      %v1448 = vpack.c.b16 %v1310, %v1309
      %v1449 = vpack.c.b16 %v1312, %v1311
      %v1450 = vpack.c.b16 %v1314, %v1313
      %v1451 = vpack.c.b16 %v1316, %v1315
      %v1452 = vpack.c.b16 %v1318, %v1317
      %v1453 = vpack.c.b16 %v1320, %v1319
      %v1454 = vpack.c.b16 %v1322, %v1321
      %v1455 = vpack.c.b16 %v1324, %v1323
      %v1456 = vpack.c.b16 %v1326, %v1325
      %v1457 = vpack.c.b16 %v1328, %v1327
      %v1458 = vpack.c.b16 %v1330, %v1329
      %1587 = vmatprep.subr.bf16.mxu0 0
      %1588 = vmatpush1.bf16.msra.mxu0 %v1331
      %1589 = vmatprep.subr.bf16.mxu0 0
      %1590 = vmatpush1.bf16.msra.mxu0 %v1332
      %1591 = vmatprep.subr.bf16.mxu0 0
      %1592 = vmatpush1.bf16.msra.mxu0 %v1333
      %1593 = vmatprep.subr.bf16.mxu0 0
      %1594 = vmatpush1.bf16.msra.mxu0 %v1334
      %1595 = vmatprep.subr.bf16.mxu0 0
      %1596 = vmatpush1.bf16.msra.mxu0 %v1335
      %1597 = vmatprep.subr.bf16.mxu0 0
      %1598 = vmatpush1.bf16.msra.mxu0 %v1336
      %1599 = vmatprep.subr.bf16.mxu0 0
      %1600 = vmatpush1.bf16.msra.mxu0 %v1337
      %1601 = vmatprep.subr.bf16.mxu0 0
      %1602 = vmatpush1.bf16.msra.mxu0 %v1338
      %1603 = vmatprep.subr.bf16.mxu0 0
      %1604 = vmatpush1.bf16.msra.mxu0 %v1339
      %1605 = vmatprep.subr.bf16.mxu0 0
      %1606 = vmatpush1.bf16.msra.mxu0 %v1340
      %1607 = vmatprep.subr.bf16.mxu0 0
      %1608 = vmatpush1.bf16.msra.mxu0 %v1341
      %1609 = vmatprep.subr.bf16.mxu0 0
      %1610 = vmatpush1.bf16.msra.mxu0 %v1342
      %1611 = vmatprep.subr.bf16.mxu0 0
      %1612 = vmatpush1.bf16.msra.mxu0 %v1343
      %1613 = vmatprep.subr.bf16.mxu0 0
      %1614 = vmatpush1.bf16.msra.mxu0 %v1344
      %1615 = vmatprep.subr.bf16.mxu0 0
      %1616 = vmatpush1.bf16.msra.mxu0 %v1345
      %1617 = vmatprep.subr.bf16.mxu0 0
      %1618 = vmatpush1.bf16.msra.mxu0 %v1346
      %1619 = vmatprep.mubr.bf16.mxu0 %v692
      %1620 = vmatmul.mubr.bf16.gmra.mrb[0].mxu0 %v691
      %v1621 = vpop.f32.mrb[0].mxu0
      %v1622 = vadd.f32 %v497, %v1621
      %v1623 = vpop.f32.mrb[0].mxu0
      %v1624 = vpop.f32.mrb[0].mxu0
      %v1625 = vadd.f32 %v497, %v1624
      %v1626 = vpop.f32.mrb[0].mxu0
      %1627 = vmatprep.mubr.bf16.mxu0 %v708
      %1628 = vmatmul.mubr.bf16.gmra.mrb[0].mxu0 %v707
      %v1629 = vpop.f32.mrb[0].mxu0
      %v1630 = vadd.f32 %v497, %v1629
      %v1631 = vpop.f32.mrb[0].mxu0
      %v1632 = vpop.f32.mrb[0].mxu0
      %v1633 = vadd.f32 %v497, %v1632
      %v1634 = vpop.f32.mrb[0].mxu0
      %1635 = vmatprep.mubr.bf16.mxu0 %v724
      %1636 = vmatmul.mubr.bf16.gmra.mrb[0].mxu0 %v723
      %v1637 = vpop.f32.mrb[0].mxu0
      %v1638 = vadd.f32 %v497, %v1637
      %v1639 = vpop.f32.mrb[0].mxu0
      %v1640 = vpop.f32.mrb[0].mxu0
      %v1641 = vadd.f32 %v497, %v1640
      %v1642 = vpop.f32.mrb[0].mxu0
      %1643 = vmatprep.mubr.bf16.mxu0 %v740
      %1644 = vmatmul.mubr.bf16.gmra.mrb[0].mxu0 %v739
      %v1645 = vpop.f32.mrb[0].mxu0
      %v1646 = vadd.f32 %v497, %v1645
      %v1647 = vpop.f32.mrb[0].mxu0
      %v1648 = vpop.f32.mrb[0].mxu0
      %v1649 = vadd.f32 %v497, %v1648
      %v1650 = vpop.f32.mrb[0].mxu0
      %1651 = vdwg.mxu0
      %1652 = vmatprep.subr.bf16.mxu0 0
      %1653 = vmatpush1.bf16.msra.mxu0 %v1347
      %1654 = vmatprep.subr.bf16.mxu0 0
      %1655 = vmatpush1.bf16.msra.mxu0 %v1348
      %1656 = vmatprep.subr.bf16.mxu0 0
      %1657 = vmatpush1.bf16.msra.mxu0 %v1349
      %1658 = vmatprep.subr.bf16.mxu0 0
      %1659 = vmatpush1.bf16.msra.mxu0 %v1350
      %1660 = vmatprep.subr.bf16.mxu0 0
      %1661 = vmatpush1.bf16.msra.mxu0 %v1351
      %1662 = vmatprep.subr.bf16.mxu0 0
      %1663 = vmatpush1.bf16.msra.mxu0 %v1352
      %1664 = vmatprep.subr.bf16.mxu0 0
      %1665 = vmatpush1.bf16.msra.mxu0 %v1353
      %1666 = vmatprep.subr.bf16.mxu0 0
      %1667 = vmatpush1.bf16.msra.mxu0 %v1354
      %1668 = vmatprep.subr.bf16.mxu0 0
      %1669 = vmatpush1.bf16.msra.mxu0 %v1355
      %1670 = vmatprep.subr.bf16.mxu0 0
      %1671 = vmatpush1.bf16.msra.mxu0 %v1356
      %1672 = vmatprep.subr.bf16.mxu0 0
      %1673 = vmatpush1.bf16.msra.mxu0 %v1357
      %1674 = vmatprep.subr.bf16.mxu0 0
      %1675 = vmatpush1.bf16.msra.mxu0 %v1358
      %1676 = vmatprep.subr.bf16.mxu0 0
      %1677 = vmatpush1.bf16.msra.mxu0 %v1359
      %1678 = vmatprep.subr.bf16.mxu0 0
      %1679 = vmatpush1.bf16.msra.mxu0 %v1360
      %1680 = vmatprep.subr.bf16.mxu0 0
      %1681 = vmatpush1.bf16.msra.mxu0 %v1361
      %1682 = vmatprep.subr.bf16.mxu0 0
      %1683 = vmatpush1.bf16.msra.mxu0 %v1362
      %1684 = vmatprep.mubr.bf16.mxu0 %v694
      %1685 = vmatmul.mubr.bf16.gmra.mrb[0].mxu0 %v693
      %v1686 = vpop.f32.mrb[0].mxu0
      %v1687 = vadd.f32 %v1622, %v1686
      %v1688 = vpop.f32.mrb[0].mxu0
      %v1689 = vpop.f32.mrb[0].mxu0
      %v1690 = vadd.f32 %v1625, %v1689
      %v1691 = vpop.f32.mrb[0].mxu0
      %1692 = vmatprep.mubr.bf16.mxu0 %v710
      %1693 = vmatmul.mubr.bf16.gmra.mrb[0].mxu0 %v709
      %v1694 = vpop.f32.mrb[0].mxu0
      %v1695 = vadd.f32 %v1630, %v1694
      %v1696 = vpop.f32.mrb[0].mxu0
      %v1697 = vpop.f32.mrb[0].mxu0
      %v1698 = vadd.f32 %v1633, %v1697
      %v1699 = vpop.f32.mrb[0].mxu0
      %1700 = vmatprep.mubr.bf16.mxu0 %v726
      %1701 = vmatmul.mubr.bf16.gmra.mrb[0].mxu0 %v725
      %v1702 = vpop.f32.mrb[0].mxu0
      %v1703 = vadd.f32 %v1638, %v1702
      %v1704 = vpop.f32.mrb[0].mxu0
      %v1705 = vpop.f32.mrb[0].mxu0
      %v1706 = vadd.f32 %v1641, %v1705
      %v1707 = vpop.f32.mrb[0].mxu0
      %1708 = vmatprep.mubr.bf16.mxu0 %v742
      %1709 = vmatmul.mubr.bf16.gmra.mrb[0].mxu0 %v741
      %v1710 = vpop.f32.mrb[0].mxu0
      %v1711 = vadd.f32 %v1646, %v1710
      %v1712 = vpop.f32.mrb[0].mxu0
      %v1713 = vpop.f32.mrb[0].mxu0
      %v1714 = vadd.f32 %v1649, %v1713
      %v1715 = vpop.f32.mrb[0].mxu0
      %1716 = vdwg.mxu0
      %1717 = vmatprep.subr.bf16.mxu0 0
      %1718 = vmatpush1.bf16.msra.mxu0 %v1363
      %1719 = vmatprep.subr.bf16.mxu0 0
      %1720 = vmatpush1.bf16.msra.mxu0 %v1364
      %1721 = vmatprep.subr.bf16.mxu0 0
      %1722 = vmatpush1.bf16.msra.mxu0 %v1365
      %1723 = vmatprep.subr.bf16.mxu0 0
      %1724 = vmatpush1.bf16.msra.mxu0 %v1366
      %1725 = vmatprep.subr.bf16.mxu0 0
      %1726 = vmatpush1.bf16.msra.mxu0 %v1367
      %1727 = vmatprep.subr.bf16.mxu0 0
      %1728 = vmatpush1.bf16.msra.mxu0 %v1368
      %1729 = vmatprep.subr.bf16.mxu0 0
      %1730 = vmatpush1.bf16.msra.mxu0 %v1369
      %1731 = vmatprep.subr.bf16.mxu0 0
      %1732 = vmatpush1.bf16.msra.mxu0 %v1370
      %1733 = vmatprep.subr.bf16.mxu0 0
      %1734 = vmatpush1.bf16.msra.mxu0 %v1371
      %1735 = vmatprep.subr.bf16.mxu0 0
      %1736 = vmatpush1.bf16.msra.mxu0 %v1372
      %1737 = vmatprep.subr.bf16.mxu0 0
      %1738 = vmatpush1.bf16.msra.mxu0 %v1373
      %1739 = vmatprep.subr.bf16.mxu0 0
      %1740 = vmatpush1.bf16.msra.mxu0 %v1374
      %1741 = vmatprep.subr.bf16.mxu0 0
      %1742 = vmatpush1.bf16.msra.mxu0 %v1375
      %1743 = vmatprep.subr.bf16.mxu0 0
      %1744 = vmatpush1.bf16.msra.mxu0 %v1376
      %1745 = vmatprep.subr.bf16.mxu0 0
      %1746 = vmatpush1.bf16.msra.mxu0 %v1377
      %1747 = vmatprep.subr.bf16.mxu0 0
      %1748 = vmatpush1.bf16.msra.mxu0 %v1378
      %1749 = vmatprep.mubr.bf16.mxu0 %v696
      %1750 = vmatmul.mubr.bf16.gmra.mrb[0].mxu0 %v695
      %v1751 = vpop.f32.mrb[0].mxu0
      %v1752 = vadd.f32 %v1687, %v1751
      %v1753 = vpop.f32.mrb[0].mxu0
      %v1754 = vpop.f32.mrb[0].mxu0
      %v1755 = vadd.f32 %v1690, %v1754
      %v1756 = vpop.f32.mrb[0].mxu0
      %1757 = vmatprep.mubr.bf16.mxu0 %v712
      %1758 = vmatmul.mubr.bf16.gmra.mrb[0].mxu0 %v711
      %v1759 = vpop.f32.mrb[0].mxu0
      %v1760 = vadd.f32 %v1695, %v1759
      %v1761 = vpop.f32.mrb[0].mxu0
      %v1762 = vpop.f32.mrb[0].mxu0
      %v1763 = vadd.f32 %v1698, %v1762
      %v1764 = vpop.f32.mrb[0].mxu0
      %1765 = vmatprep.mubr.bf16.mxu0 %v728
      %1766 = vmatmul.mubr.bf16.gmra.mrb[0].mxu0 %v727
      %v1767 = vpop.f32.mrb[0].mxu0
      %v1768 = vadd.f32 %v1703, %v1767
      %v1769 = vpop.f32.mrb[0].mxu0
      %v1770 = vpop.f32.mrb[0].mxu0
      %v1771 = vadd.f32 %v1706, %v1770
      %v1772 = vpop.f32.mrb[0].mxu0
      %1773 = vmatprep.mubr.bf16.mxu0 %v744
      %1774 = vmatmul.mubr.bf16.gmra.mrb[0].mxu0 %v743
      %v1775 = vpop.f32.mrb[0].mxu0
      %v1776 = vadd.f32 %v1711, %v1775
      %v1777 = vpop.f32.mrb[0].mxu0
      %v1778 = vpop.f32.mrb[0].mxu0
      %v1779 = vadd.f32 %v1714, %v1778
      %v1780 = vpop.f32.mrb[0].mxu0
      %1781 = vdwg.mxu0
      %1782 = vmatprep.subr.bf16.mxu0 0
      %1783 = vmatpush1.bf16.msra.mxu0 %v1379
      %1784 = vmatprep.subr.bf16.mxu0 0
      %1785 = vmatpush1.bf16.msra.mxu0 %v1380
      %1786 = vmatprep.subr.bf16.mxu0 0
      %1787 = vmatpush1.bf16.msra.mxu0 %v1381
      %1788 = vmatprep.subr.bf16.mxu0 0
      %1789 = vmatpush1.bf16.msra.mxu0 %v1382
      %1790 = vmatprep.subr.bf16.mxu0 0
      %1791 = vmatpush1.bf16.msra.mxu0 %v1383
      %1792 = vmatprep.subr.bf16.mxu0 0
      %1793 = vmatpush1.bf16.msra.mxu0 %v1384
      %1794 = vmatprep.subr.bf16.mxu0 0
      %1795 = vmatpush1.bf16.msra.mxu0 %v1385
      %1796 = vmatprep.subr.bf16.mxu0 0
      %1797 = vmatpush1.bf16.msra.mxu0 %v1386
      %1798 = vmatprep.subr.bf16.mxu0 0
      %1799 = vmatpush1.bf16.msra.mxu0 %v1387
      %1800 = vmatprep.subr.bf16.mxu0 0
      %1801 = vmatpush1.bf16.msra.mxu0 %v1388
      %1802 = vmatprep.subr.bf16.mxu0 0
      %1803 = vmatpush1.bf16.msra.mxu0 %v1389
      %1804 = vmatprep.subr.bf16.mxu0 0
      %1805 = vmatpush1.bf16.msra.mxu0 %v1390
      %1806 = vmatprep.subr.bf16.mxu0 0
      %1807 = vmatpush1.bf16.msra.mxu0 %v1391
      %1808 = vmatprep.subr.bf16.mxu0 0
      %1809 = vmatpush1.bf16.msra.mxu0 %v1392
      %1810 = vmatprep.subr.bf16.mxu0 0
      %1811 = vmatpush1.bf16.msra.mxu0 %v1393
      %1812 = vmatprep.subr.bf16.mxu0 0
      %1813 = vmatpush1.bf16.msra.mxu0 %v1394
      %1814 = vmatprep.mubr.bf16.mxu0 %v698
      %1815 = vmatmul.mubr.bf16.gmra.mrb[0].mxu0 %v697
      %v1816 = vpop.f32.mrb[0].mxu0
      %v1817 = vadd.f32 %v1752, %v1816
      %v1818 = vpop.f32.mrb[0].mxu0
      %v1819 = vpop.f32.mrb[0].mxu0
      %v1820 = vadd.f32 %v1755, %v1819
      %v1821 = vpop.f32.mrb[0].mxu0
      %1822 = vmatprep.mubr.bf16.mxu0 %v714
      %1823 = vmatmul.mubr.bf16.gmra.mrb[0].mxu0 %v713
      %v1824 = vpop.f32.mrb[0].mxu0
      %v1825 = vadd.f32 %v1760, %v1824
      %v1826 = vpop.f32.mrb[0].mxu0
      %v1827 = vpop.f32.mrb[0].mxu0
      %v1828 = vadd.f32 %v1763, %v1827
      %v1829 = vpop.f32.mrb[0].mxu0
      %1830 = vmatprep.mubr.bf16.mxu0 %v730
      %1831 = vmatmul.mubr.bf16.gmra.mrb[0].mxu0 %v729
      %v1832 = vpop.f32.mrb[0].mxu0
      %v1833 = vadd.f32 %v1768, %v1832
      %v1834 = vpop.f32.mrb[0].mxu0
      %v1835 = vpop.f32.mrb[0].mxu0
      %v1836 = vadd.f32 %v1771, %v1835
      %v1837 = vpop.f32.mrb[0].mxu0
      %1838 = vmatprep.mubr.bf16.mxu0 %v746
      %1839 = vmatmul.mubr.bf16.gmra.mrb[0].mxu0 %v745
      %v1840 = vpop.f32.mrb[0].mxu0
      %v1841 = vadd.f32 %v1776, %v1840
      %v1842 = vpop.f32.mrb[0].mxu0
      %v1843 = vpop.f32.mrb[0].mxu0
      %v1844 = vadd.f32 %v1779, %v1843
      %v1845 = vpop.f32.mrb[0].mxu0
      %1846 = vdwg.mxu0
      %1847 = vmatprep.subr.bf16.mxu0 0
      %1848 = vmatpush1.bf16.msra.mxu0 %v1395
      %1849 = vmatprep.subr.bf16.mxu0 0
      %1850 = vmatpush1.bf16.msra.mxu0 %v1396
      %1851 = vmatprep.subr.bf16.mxu0 0
      %1852 = vmatpush1.bf16.msra.mxu0 %v1397
      %1853 = vmatprep.subr.bf16.mxu0 0
      %1854 = vmatpush1.bf16.msra.mxu0 %v1398
      %1855 = vmatprep.subr.bf16.mxu0 0
      %1856 = vmatpush1.bf16.msra.mxu0 %v1399
      %1857 = vmatprep.subr.bf16.mxu0 0
      %1858 = vmatpush1.bf16.msra.mxu0 %v1400
      %1859 = vmatprep.subr.bf16.mxu0 0
      %1860 = vmatpush1.bf16.msra.mxu0 %v1401
      %1861 = vmatprep.subr.bf16.mxu0 0
      %1862 = vmatpush1.bf16.msra.mxu0 %v1402
      %1863 = vmatprep.subr.bf16.mxu0 0
      %1864 = vmatpush1.bf16.msra.mxu0 %v1403
      %1865 = vmatprep.subr.bf16.mxu0 0
      %1866 = vmatpush1.bf16.msra.mxu0 %v1404
      %1867 = vmatprep.subr.bf16.mxu0 0
      %1868 = vmatpush1.bf16.msra.mxu0 %v1405
      %1869 = vmatprep.subr.bf16.mxu0 0
      %1870 = vmatpush1.bf16.msra.mxu0 %v1406
      %1871 = vmatprep.subr.bf16.mxu0 0
      %1872 = vmatpush1.bf16.msra.mxu0 %v1407
      %1873 = vmatprep.subr.bf16.mxu0 0
      %1874 = vmatpush1.bf16.msra.mxu0 %v1408
      %1875 = vmatprep.subr.bf16.mxu0 0
      %1876 = vmatpush1.bf16.msra.mxu0 %v1409
      %1877 = vmatprep.subr.bf16.mxu0 0
      %1878 = vmatpush1.bf16.msra.mxu0 %v1410
      %1879 = vmatprep.mubr.bf16.mxu0 %v700
      %1880 = vmatmul.mubr.bf16.gmra.mrb[0].mxu0 %v699
      %v1881 = vpop.f32.mrb[0].mxu0
      %v1882 = vadd.f32 %v1817, %v1881
      %v1883 = vpop.f32.mrb[0].mxu0
      %v1884 = vpop.f32.mrb[0].mxu0
      %v1885 = vadd.f32 %v1820, %v1884
      %v1886 = vpop.f32.mrb[0].mxu0
      %1887 = vmatprep.mubr.bf16.mxu0 %v716
      %1888 = vmatmul.mubr.bf16.gmra.mrb[0].mxu0 %v715
      %v1889 = vpop.f32.mrb[0].mxu0
      %v1890 = vadd.f32 %v1825, %v1889
      %v1891 = vpop.f32.mrb[0].mxu0
      %v1892 = vpop.f32.mrb[0].mxu0
      %v1893 = vadd.f32 %v1828, %v1892
      %v1894 = vpop.f32.mrb[0].mxu0
      %1895 = vmatprep.mubr.bf16.mxu0 %v732
      %1896 = vmatmul.mubr.bf16.gmra.mrb[0].mxu0 %v731
      %v1897 = vpop.f32.mrb[0].mxu0
      %v1898 = vadd.f32 %v1833, %v1897
      %v1899 = vpop.f32.mrb[0].mxu0
      %v1900 = vpop.f32.mrb[0].mxu0
      %v1901 = vadd.f32 %v1836, %v1900
      %v1902 = vpop.f32.mrb[0].mxu0
      %1903 = vmatprep.mubr.bf16.mxu0 %v748
      %1904 = vmatmul.mubr.bf16.gmra.mrb[0].mxu0 %v747
      %v1905 = vpop.f32.mrb[0].mxu0
      %v1906 = vadd.f32 %v1841, %v1905
      %v1907 = vpop.f32.mrb[0].mxu0
      %v1908 = vpop.f32.mrb[0].mxu0
      %v1909 = vadd.f32 %v1844, %v1908
      %v1910 = vpop.f32.mrb[0].mxu0
      %1911 = vdwg.mxu0
      %1912 = vmatprep.subr.bf16.mxu0 0
      %1913 = vmatpush1.bf16.msra.mxu0 %v1411
      %1914 = vmatprep.subr.bf16.mxu0 0
      %1915 = vmatpush1.bf16.msra.mxu0 %v1412
      %1916 = vmatprep.subr.bf16.mxu0 0
      %1917 = vmatpush1.bf16.msra.mxu0 %v1413
      %1918 = vmatprep.subr.bf16.mxu0 0
      %1919 = vmatpush1.bf16.msra.mxu0 %v1414
      %1920 = vmatprep.subr.bf16.mxu0 0
      %1921 = vmatpush1.bf16.msra.mxu0 %v1415
      %1922 = vmatprep.subr.bf16.mxu0 0
      %1923 = vmatpush1.bf16.msra.mxu0 %v1416
      %1924 = vmatprep.subr.bf16.mxu0 0
      %1925 = vmatpush1.bf16.msra.mxu0 %v1417
      %1926 = vmatprep.subr.bf16.mxu0 0
      %1927 = vmatpush1.bf16.msra.mxu0 %v1418
      %1928 = vmatprep.subr.bf16.mxu0 0
      %1929 = vmatpush1.bf16.msra.mxu0 %v1419
      %1930 = vmatprep.subr.bf16.mxu0 0
      %1931 = vmatpush1.bf16.msra.mxu0 %v1420
      %1932 = vmatprep.subr.bf16.mxu0 0
      %1933 = vmatpush1.bf16.msra.mxu0 %v1421
      %1934 = vmatprep.subr.bf16.mxu0 0
      %1935 = vmatpush1.bf16.msra.mxu0 %v1422
      %1936 = vmatprep.subr.bf16.mxu0 0
      %1937 = vmatpush1.bf16.msra.mxu0 %v1423
      %1938 = vmatprep.subr.bf16.mxu0 0
      %1939 = vmatpush1.bf16.msra.mxu0 %v1424
      %1940 = vmatprep.subr.bf16.mxu0 0
      %1941 = vmatpush1.bf16.msra.mxu0 %v1425
      %1942 = vmatprep.subr.bf16.mxu0 0
      %1943 = vmatpush1.bf16.msra.mxu0 %v1426
      %1944 = vmatprep.mubr.bf16.mxu0 %v702
      %1945 = vmatmul.mubr.bf16.gmra.mrb[0].mxu0 %v701
      %v1946 = vpop.f32.mrb[0].mxu0
      %v1947 = vadd.f32 %v1882, %v1946
      %v1948 = vpop.f32.mrb[0].mxu0
      %v1949 = vpop.f32.mrb[0].mxu0
      %v1950 = vadd.f32 %v1885, %v1949
      %v1951 = vpop.f32.mrb[0].mxu0
      %1952 = vmatprep.mubr.bf16.mxu0 %v718
      %1953 = vmatmul.mubr.bf16.gmra.mrb[0].mxu0 %v717
      %v1954 = vpop.f32.mrb[0].mxu0
      %v1955 = vadd.f32 %v1890, %v1954
      %v1956 = vpop.f32.mrb[0].mxu0
      %v1957 = vpop.f32.mrb[0].mxu0
      %v1958 = vadd.f32 %v1893, %v1957
      %v1959 = vpop.f32.mrb[0].mxu0
      %1960 = vmatprep.mubr.bf16.mxu0 %v734
      %1961 = vmatmul.mubr.bf16.gmra.mrb[0].mxu0 %v733
      %v1962 = vpop.f32.mrb[0].mxu0
      %v1963 = vadd.f32 %v1898, %v1962
      %v1964 = vpop.f32.mrb[0].mxu0
      %v1965 = vpop.f32.mrb[0].mxu0
      %v1966 = vadd.f32 %v1901, %v1965
      %v1967 = vpop.f32.mrb[0].mxu0
      %1968 = vmatprep.mubr.bf16.mxu0 %v750
      %1969 = vmatmul.mubr.bf16.gmra.mrb[0].mxu0 %v749
      %v1970 = vpop.f32.mrb[0].mxu0
      %v1971 = vadd.f32 %v1906, %v1970
      %v1972 = vpop.f32.mrb[0].mxu0
      %v1973 = vpop.f32.mrb[0].mxu0
      %v1974 = vadd.f32 %v1909, %v1973
      %v1975 = vpop.f32.mrb[0].mxu0
      %1976 = vdwg.mxu0
      %1977 = vmatprep.subr.bf16.mxu0 0
      %1978 = vmatpush1.bf16.msra.mxu0 %v1427
      %1979 = vmatprep.subr.bf16.mxu0 0
      %1980 = vmatpush1.bf16.msra.mxu0 %v1428
      %1981 = vmatprep.subr.bf16.mxu0 0
      %1982 = vmatpush1.bf16.msra.mxu0 %v1429
      %1983 = vmatprep.subr.bf16.mxu0 0
      %1984 = vmatpush1.bf16.msra.mxu0 %v1430
      %1985 = vmatprep.subr.bf16.mxu0 0
      %1986 = vmatpush1.bf16.msra.mxu0 %v1431
      %1987 = vmatprep.subr.bf16.mxu0 0
      %1988 = vmatpush1.bf16.msra.mxu0 %v1432
      %1989 = vmatprep.subr.bf16.mxu0 0
      %1990 = vmatpush1.bf16.msra.mxu0 %v1433
      %1991 = vmatprep.subr.bf16.mxu0 0
      %1992 = vmatpush1.bf16.msra.mxu0 %v1434
      %1993 = vmatprep.subr.bf16.mxu0 0
      %1994 = vmatpush1.bf16.msra.mxu0 %v1435
      %1995 = vmatprep.subr.bf16.mxu0 0
      %1996 = vmatpush1.bf16.msra.mxu0 %v1436
      %1997 = vmatprep.subr.bf16.mxu0 0
      %1998 = vmatpush1.bf16.msra.mxu0 %v1437
      %1999 = vmatprep.subr.bf16.mxu0 0
      %2000 = vmatpush1.bf16.msra.mxu0 %v1438
      %2001 = vmatprep.subr.bf16.mxu0 0
      %2002 = vmatpush1.bf16.msra.mxu0 %v1439
      %2003 = vmatprep.subr.bf16.mxu0 0
      %2004 = vmatpush1.bf16.msra.mxu0 %v1440
      %2005 = vmatprep.subr.bf16.mxu0 0
      %2006 = vmatpush1.bf16.msra.mxu0 %v1441
      %2007 = vmatprep.subr.bf16.mxu0 0
      %2008 = vmatpush1.bf16.msra.mxu0 %v1442
      %2009 = vmatprep.mubr.bf16.mxu0 %v704
      %2010 = vmatmul.mubr.bf16.gmra.mrb[0].mxu0 %v703
      %v2011 = vpop.f32.mrb[0].mxu0
      %v2012 = vadd.f32 %v1947, %v2011
      %v2013 = vpop.f32.mrb[0].mxu0
      %v2014 = vpop.f32.mrb[0].mxu0
      %v2015 = vadd.f32 %v1950, %v2014
      %v2016 = vpop.f32.mrb[0].mxu0
      %2017 = vmatprep.mubr.bf16.mxu0 %v720
      %2018 = vmatmul.mubr.bf16.gmra.mrb[0].mxu0 %v719
      %v2019 = vpop.f32.mrb[0].mxu0
      %v2020 = vadd.f32 %v1955, %v2019
      %v2021 = vpop.f32.mrb[0].mxu0
      %v2022 = vpop.f32.mrb[0].mxu0
      %v2023 = vadd.f32 %v1958, %v2022
      %v2024 = vpop.f32.mrb[0].mxu0
      %2025 = vmatprep.mubr.bf16.mxu0 %v736
      %2026 = vmatmul.mubr.bf16.gmra.mrb[0].mxu0 %v735
      %v2027 = vpop.f32.mrb[0].mxu0
      %v2028 = vadd.f32 %v1963, %v2027
      %v2029 = vpop.f32.mrb[0].mxu0
      %v2030 = vpop.f32.mrb[0].mxu0
      %v2031 = vadd.f32 %v1966, %v2030
      %v2032 = vpop.f32.mrb[0].mxu0
      %2033 = vmatprep.mubr.bf16.mxu0 %v752
      %2034 = vmatmul.mubr.bf16.gmra.mrb[0].mxu0 %v751
      %v2035 = vpop.f32.mrb[0].mxu0
      %v2036 = vadd.f32 %v1971, %v2035
      %v2037 = vpop.f32.mrb[0].mxu0
      %v2038 = vpop.f32.mrb[0].mxu0
      %v2039 = vadd.f32 %v1974, %v2038
      %v2040 = vpop.f32.mrb[0].mxu0
      %2041 = vdwg.mxu0
      %2042 = vmatprep.subr.bf16.mxu0 0
      %2043 = vmatpush1.bf16.msra.mxu0 %v1443
      %2044 = vmatprep.subr.bf16.mxu0 0
      %2045 = vmatpush1.bf16.msra.mxu0 %v1444
      %2046 = vmatprep.subr.bf16.mxu0 0
      %2047 = vmatpush1.bf16.msra.mxu0 %v1445
      %2048 = vmatprep.subr.bf16.mxu0 0
      %2049 = vmatpush1.bf16.msra.mxu0 %v1446
      %2050 = vmatprep.subr.bf16.mxu0 0
      %2051 = vmatpush1.bf16.msra.mxu0 %v1447
      %2052 = vmatprep.subr.bf16.mxu0 0
      %2053 = vmatpush1.bf16.msra.mxu0 %v1448
      %2054 = vmatprep.subr.bf16.mxu0 0
      %2055 = vmatpush1.bf16.msra.mxu0 %v1449
      %2056 = vmatprep.subr.bf16.mxu0 0
      %2057 = vmatpush1.bf16.msra.mxu0 %v1450
      %2058 = vmatprep.subr.bf16.mxu0 0
      %2059 = vmatpush1.bf16.msra.mxu0 %v1451
      %2060 = vmatprep.subr.bf16.mxu0 0
      %2061 = vmatpush1.bf16.msra.mxu0 %v1452
      %2062 = vmatprep.subr.bf16.mxu0 0
      %2063 = vmatpush1.bf16.msra.mxu0 %v1453
      %2064 = vmatprep.subr.bf16.mxu0 0
      %2065 = vmatpush1.bf16.msra.mxu0 %v1454
      %2066 = vmatprep.subr.bf16.mxu0 0
      %2067 = vmatpush1.bf16.msra.mxu0 %v1455
      %2068 = vmatprep.subr.bf16.mxu0 0
      %2069 = vmatpush1.bf16.msra.mxu0 %v1456
      %2070 = vmatprep.subr.bf16.mxu0 0
      %2071 = vmatpush1.bf16.msra.mxu0 %v1457
      %2072 = vmatprep.subr.bf16.mxu0 0
      %2073 = vmatpush1.bf16.msra.mxu0 %v1458
      %2074 = vmatprep.mubr.bf16.mxu0 %v706
      %2075 = vmatmul.mubr.bf16.gmra.mrb[0].mxu0 %v705
      %v2076 = vpop.f32.mrb[0].mxu0
      %v2077 = vadd.f32 %v2012, %v2076
      %v2078 = vpop.f32.mrb[0].mxu0
      %v2079 = vpop.f32.mrb[0].mxu0
      %v2080 = vadd.f32 %v2015, %v2079
      %v2081 = vpop.f32.mrb[0].mxu0
      %2082 = vmatprep.mubr.bf16.mxu0 %v722
      %2083 = vmatmul.mubr.bf16.gmra.mrb[0].mxu0 %v721
      %v2084 = vpop.f32.mrb[0].mxu0
      %v2085 = vadd.f32 %v2020, %v2084
      %v2086 = vpop.f32.mrb[0].mxu0
      %v2087 = vpop.f32.mrb[0].mxu0
      %v2088 = vadd.f32 %v2023, %v2087
      %v2089 = vpop.f32.mrb[0].mxu0
      %2090 = vmatprep.mubr.bf16.mxu0 %v738
      %2091 = vmatmul.mubr.bf16.gmra.mrb[0].mxu0 %v737
      %v2092 = vpop.f32.mrb[0].mxu0
      %v2093 = vadd.f32 %v2028, %v2092
      %v2094 = vpop.f32.mrb[0].mxu0
      %v2095 = vpop.f32.mrb[0].mxu0
      %v2096 = vadd.f32 %v2031, %v2095
      %v2097 = vpop.f32.mrb[0].mxu0
      %2098 = vmatprep.mubr.bf16.mxu0 %v754
      %2099 = vmatmul.mubr.bf16.gmra.mrb[0].mxu0 %v753
      %v2100 = vpop.f32.mrb[0].mxu0
      %v2101 = vadd.f32 %v2036, %v2100
      %v2102 = vpop.f32.mrb[0].mxu0
      %v2103 = vpop.f32.mrb[0].mxu0
      %v2104 = vadd.f32 %v2039, %v2103
      %v2105 = vpop.f32.mrb[0].mxu0
      %2106 = vdwg.mxu0
      %2107 = vst [vmem:[%s170] sm:$0xff] %v2077
      %2108 = vst [vmem:[%s170 + $0x8] sm:$0xff] %v2080
      %2109 = vst [vmem:[%s170 + $0x10] sm:$0xff] %v2085
      %2110 = vst [vmem:[%s170 + $0x18] sm:$0xff] %v2088
      %2111 = vst [vmem:[%s170 + $0x20] sm:$0xff] %v2093
      %2112 = vst [vmem:[%s170 + $0x28] sm:$0xff] %v2096
      %2113 = vst [vmem:[%s170 + $0x30] sm:$0xff] %v2101
      %2114 = vst [vmem:[%s170 + $0x38] sm:$0xff] %v2104
      %p2115 = scmp.lt.s32.totalorder %s14, 1
      %s2116 = scalar_select %p2115, %s14, 1
      %s2117 = smul.addr %s2116, 8
      %s2118 = smul.addr %s2117, 8
      %s2119 = scalar_lea.vmem %s3, %s2118
      // Predicated region
      $region33: #{_lambda_.7} parent=31 // pred_check
        %p2120 = pneg %p100
      $region34: #{_lambda_.7} parent=31 // pred_check_branch
        %2122 = sbr.rel (%p2120) target = $region36
      $region35: #{_lambda_.7} parent=31 // pred_region
        _
      $region36: #{_lambda_.7} parent=31 // pred_fallthru
        _
    $region32: #{_lambda_.7} parent=5 // pred_fallthru
      _
    %p2123 = scmp.le.s32.totalorder 2, %s9
    // Predicated region
    $region37: #{_lambda_.7} parent=5 // pred_check
      %p2124 = pneg %p2123
    $region38: #{_lambda_.7} parent=5 // pred_check_branch
      %2126 = sbr.rel (%p2124) target = $region40
    $region39: #{_lambda_.7} parent=5 // pred_region
      %s2127 = ssub.s32 %s9, 2
      // Predicated region
      $region41: #{_lambda_.7} parent=39 // pred_check
        %p2128 = pneg %p106
      $region42: #{_lambda_.7} parent=39 // pred_check_branch
        %2130 = sbr.rel (%p2128) target = $region44
      $region43: #{_lambda_.7} parent=39 // pred_region
        %p2131 = scmp.lt.s32.totalorder %s15, 1
        %s2132 = scalar_select %p2131, %s15, 1
        %s2133 = smul.addr %s2132, 8
        %s2134 = smul.addr %s2133, 8
        %s2135 = scalar_lea.vmem %s3, %s2134
      $region44: #{_lambda_.7} parent=39 // pred_fallthru
        _
    $region40: #{_lambda_.7} parent=5 // pred_fallthru
      _
  $region6: #{_lambda_.7} parent=0 // loop_footer
    %s13 = sadd.s32 1, %s9
  $region7: #{_lambda_.7} parent=0 // loop_footer_branch
    %8 = sbr.rel target = $region3
  $region8: #{_lambda_.7} parent=0 // loop_exit
    _

</llo_original>
